<compile_context>
chip_gen: v5e
topology: v5e:2x2
jax: 0.10.0
libtpu: 0.0.40
codegen_flags: <defaults>
</compile_context>

<pallas_src>
import math
import numpy as np

import jax
import jax.numpy as jnp
from jax.experimental import pallas as pl
from jax.experimental.pallas import tpu as pltpu


def _round_up(x, m):
    return ((x + m - 1) // m) * m


# ----------------------------------------------------------------------------
# Parameter initialization (deterministic, PyTorch-like uniform bounds)
# ----------------------------------------------------------------------------
def conv_params(key, c_in, c_out, ksize):
    # weight layout: (K, C_in, C_out)  ==  torch_weight.permute(2, 1, 0)
    k1, k2 = jax.random.split(key)
    bound = 1.0 / math.sqrt(c_in * ksize)
    w = jax.random.uniform(k1, (ksize, c_in, c_out), jnp.float32, -bound, bound)
    b = jax.random.uniform(k2, (1, c_out), jnp.float32, -bound, bound)
    return w, b


def linear_params(key, d_in, d_out):
    # weight layout: (d_in, d_out) == torch_weight.T
    k1, k2 = jax.random.split(key)
    bound = 1.0 / math.sqrt(d_in)
    w = jax.random.uniform(k1, (d_in, d_out), jnp.float32, -bound, bound)
    b = jax.random.uniform(k2, (1, d_out), jnp.float32, -bound, bound)
    return w, b


def init_wavenet_params(key, dim, stacks, layers, init_conv_kernel, dim_time_mult):
    params = {}
    key, k = jax.random.split(key)
    params["init_conv"] = conv_params(k, dim, dim, init_conv_kernel)
    params["stacks"] = []
    for s in range(stacks):
        is_last = s == stacks - 1
        stack_p = []
        for _ in range(layers):
            key, k1, k2, k3, k4 = jax.random.split(key, 5)
            blk = {}
            blk["w_conv"], blk["b_conv"] = conv_params(k1, dim, dim, 3)
            blk["w_res"], blk["b_res"] = conv_params(k2, dim, dim, 1)
            if is_last:
                blk["w_skip"], blk["b_skip"] = conv_params(k3, dim, dim, 1)
            if dim_time_mult is not None:
                blk["w_t"], blk["b_t"] = linear_params(k4, dim * dim_time_mult, dim * 2)
            stack_p.append(blk)
        params["stacks"].append(stack_p)
    key, k = jax.random.split(key)
    params["final_conv"] = conv_params(k, dim, dim, 1)
    return params


# ----------------------------------------------------------------------------
# Fused Wavenet Pallas kernel
# ----------------------------------------------------------------------------
def make_wavenet_kernel(*, stacks, layers, K0, K, Np, Cp, maxpad_r, cond_time):
    """One kernel invocation = full Wavenet forward for one batch element."""

    def kernel(*refs):
        it = iter(refs)
        x_ref = next(it)                      # (1, Np, Cp)
        w0_ref = next(it)                     # (K0*Cp, Cp)
        b0_ref = next(it)                     # (1, Cp)
        wconv_ref = next(it)                  # (stacks, layers, K*Cp, Cp)
        bconv_ref = next(it)                  # (stacks, layers, 1, Cp)
        wres_ref = next(it)                   # (stacks, layers, Cp, Cp)
        bres_ref = next(it)                   # (stacks, layers, 1, Cp)
        wskip_ref = next(it)                  # (layers, Cp, Cp)
        bskip_ref = next(it)                  # (layers, 1, Cp)
        if cond_time:
            filmg_ref = next(it)              # (1, stacks*layers, Cp)
            filmb_ref = next(it)              # (1, stacks*layers, Cp)
        wfin_ref = next(it)                   # (Cp, Cp)
        bfin_ref = next(it)                   # (1, Cp)
        out_ref = next(it)                    # (1, Np, Cp)
        xpad_ref = next(it)                   # VMEM (maxpad_r + Np, Cp)

        # Zero the causal left-pad region once.  Only rows [maxpad_r:] are
        # ever (re)written below, so the pad stays zero for every conv.
        xpad_ref[0:maxpad_r, :] = jnp.zeros((maxpad_r, Cp), jnp.float32)

        if cond_time:
            film_g = filmg_ref[0]             # (stacks*layers, Cp)
            film_b = filmb_ref[0]

        def dilated_conv(y, w_cat, b, k_taps, dil):
            # Causal dilated conv as one MXU matmul on the lane-concat of
            # the K shifted taps:  (Np, K*Cp) @ (K*Cp, Cp).
            pad = dil * (k_taps - 1)
            xpad_ref[maxpad_r:, :] = y
            taps = [xpad_ref[pl.ds(maxpad_r - pad + k * dil, Np), :]
                    for k in range(k_taps)]
            xs = taps[0] if k_taps == 1 else jnp.concatenate(taps, axis=-1)
            return jnp.dot(xs, w_cat, preferred_element_type=jnp.float32) + b

        # init causal conv
        x0 = dilated_conv(x_ref[0], w0_ref[...], b0_ref[...], K0, 1)

        # Each "layer" index i is an independent chain through the stacks
        # (stack s block i feeds stack s+1 block i); all chains start at x0.
        skip = jnp.zeros((Np, Cp), jnp.float32)
        for i in range(layers):
            dil = 2 ** i
            y = x0
            for s in range(stacks):
                res = (jnp.dot(y, wres_ref[s, i],
                               preferred_element_type=jnp.float32)
                       + bres_ref[s, i])
                acc = dilated_conv(y, wconv_ref[s, i], bconv_ref[s, i], K, dil)
                if cond_time:
                    idx = s * layers + i
                    acc = acc * film_g[idx:idx + 1] + film_b[idx:idx + 1]
                # tanh(a) * sigmoid(a); sigmoid via tanh(a/2) (f32, 2 EUP ops)
                gated = jnp.tanh(acc) * (0.5 * jnp.tanh(0.5 * acc) + 0.5)
                y = gated + res
            # skip conv only exists on the last stack; accumulate in VMEM
            skip = skip + (jnp.dot(y, wskip_ref[i],
                                   preferred_element_type=jnp.float32)
                           + bskip_ref[i])

        # final 1x1 conv on the skip sum
        out_ref[0] = (jnp.dot(skip, wfin_ref[...],
                              preferred_element_type=jnp.float32)
                      + bfin_ref[...])

    return kernel


# ----------------------------------------------------------------------------
# Parameter packing (channel pad to Cp, taps flattened to K*Cp rows)
# ----------------------------------------------------------------------------
def _pack_params(params, t, *, stacks, layers, dim, dim_time_mult, Cp):
    cond_time = dim_time_mult is not None
    C = dim
    dc = Cp - C

    def pad_w_cat(w):                     # (K, C, C) -> (K*Cp, Cp)
        K = w.shape[0]
        wp = jnp.pad(w, ((0, 0), (0, dc), (0, dc)))
        return wp.reshape(K * Cp, Cp)

    def pad_w1(w):                        # (1, C, C) -> (Cp, Cp)
        return jnp.pad(w[0], ((0, dc), (0, dc)))

    def pad_b(b):                         # (1, C) -> (1, Cp)
        return jnp.pad(b, ((0, 0), (0, dc)))

    w0, b0 = params["init_conv"]
    packed = {
        "w0": pad_w_cat(w0),
        "b0": pad_b(b0),
        "wconv": jnp.stack([jnp.stack([pad_w_cat(params["stacks"][s][l]["w_conv"])
                                       for l in range(layers)]) for s in range(stacks)]),
        "bconv": jnp.stack([jnp.stack([pad_b(params["stacks"][s][l]["b_conv"])
                                       for l in range(layers)]) for s in range(stacks)]),
        "wres": jnp.stack([jnp.stack([pad_w1(params["stacks"][s][l]["w_res"])
                                      for l in range(layers)]) for s in range(stacks)]),
        "bres": jnp.stack([jnp.stack([pad_b(params["stacks"][s][l]["b_res"])
                                      for l in range(layers)]) for s in range(stacks)]),
        "wskip": jnp.stack([pad_w1(params["stacks"][stacks - 1][l]["w_skip"])
                            for l in range(layers)]),
        "bskip": jnp.stack([pad_b(params["stacks"][stacks - 1][l]["b_skip"])
                            for l in range(layers)]),
        "wfin": pad_w1(params["final_conv"][0]),
        "bfin": pad_b(params["final_conv"][1]),
    }
    if cond_time:
        # FiLM (gamma, beta) = Linear(t): grid/loop-invariant -> precompute once.
        g_rows, b_rows = [], []
        for s in range(stacks):
            for l in range(layers):
                blk = params["stacks"][s][l]
                gb = t.astype(jnp.float32) @ blk["w_t"] + blk["b_t"]   # (B, 2C)
                g_rows.append(jnp.pad(gb[:, :C], ((0, 0), (0, dc))))
                b_rows.append(jnp.pad(gb[:, C:], ((0, 0), (0, dc))))
        packed["filmg"] = jnp.stack(g_rows, axis=1)    # (B, stacks*layers, Cp)
        packed["filmb"] = jnp.stack(b_rows, axis=1)
    return packed


# ----------------------------------------------------------------------------
# Full Wavenet forward (single pallas_call)
# ----------------------------------------------------------------------------
def wavenet_forward(x_bcn, t, params, *, stacks, layers, dim_time_mult):
    cond_time = dim_time_mult is not None
    B, C, N = x_bcn.shape
    Cp = _round_up(C, 128)                 # lane-dense channels
    Np = _round_up(N, 8)                   # sublane-aligned sequence
    K0 = params["init_conv"][0].shape[0]
    K = params["stacks"][0][0]["w_conv"].shape[0]
    maxpad = max(K0 - 1, (K - 1) * (2 ** (layers - 1)), 1)
    maxpad_r = _round_up(maxpad, 8)

    # NCL -> NLC, pad channels / length with zeros (causal convs: tail pad and
    # zero channels do not perturb the real outputs; sliced off at the end).
    x = jnp.transpose(x_bcn, (0, 2, 1)).astype(jnp.float32)
    x = jnp.pad(x, ((0, 0), (0, Np - N), (0, Cp - C)))

    p = _pack_params(params, t, stacks=stacks, layers=layers, dim=C,
                     dim_time_mult=dim_time_mult, Cp=Cp)

    in_arrays = [x, p["w0"], p["b0"], p["wconv"], p["bconv"],
                 p["wres"], p["bres"], p["wskip"], p["bskip"]]
    if cond_time:
        in_arrays += [p["filmg"], p["filmb"]]
    in_arrays += [p["wfin"], p["bfin"]]

    def rep_spec(a):
        nd = a.ndim
        return pl.BlockSpec(a.shape, lambda b, _nd=nd: (0,) * _nd)

    in_specs = [pl.BlockSpec((1, Np, Cp), lambda b: (b, 0, 0)),
                rep_spec(p["w0"]), rep_spec(p["b0"]),
                rep_spec(p["wconv"]), rep_spec(p["bconv"]),
                rep_spec(p["wres"]), rep_spec(p["bres"]),
                rep_spec(p["wskip"]), rep_spec(p["bskip"])]
    if cond_time:
        film_spec = pl.BlockSpec((1, stacks * layers, Cp), lambda b: (b, 0, 0))
        in_specs += [film_spec, film_spec]
    in_specs += [rep_spec(p["wfin"]), rep_spec(p["bfin"])]

    out = pl.pallas_call(
        make_wavenet_kernel(stacks=stacks, layers=layers, K0=K0, K=K,
                            Np=Np, Cp=Cp, maxpad_r=maxpad_r,
                            cond_time=cond_time),
        out_shape=jax.ShapeDtypeStruct((B, Np, Cp), jnp.float32),
        grid=(B,),
        in_specs=in_specs,
        out_specs=pl.BlockSpec((1, Np, Cp), lambda b: (b, 0, 0)),
        scratch_shapes=[pltpu.VMEM((maxpad_r + Np, Cp), jnp.float32)],
        compiler_params=pltpu.CompilerParams(
            dimension_semantics=("parallel",),
            vmem_limit_bytes=48 * 1024 * 1024),   # explicit, safe on v7x 64MiB
    )(*in_arrays)

    y = out[:, :N, :C]
    return jnp.transpose(y, (0, 2, 1))            # back to (B, C, N)


# ----------------------------------------------------------------------------
# Pure-JAX reference (for correctness check)
# ----------------------------------------------------------------------------
def ref_causal_conv(x, w, b, dilation):
    K = w.shape[0]
    pad = dilation * (K - 1)
    xp = jnp.pad(x, ((0, 0), (pad, 0), (0, 0)))
    N = x.shape[1]
    acc = jnp.zeros(x.shape[:2] + (w.shape[2],), jnp.float32)
    for k in range(K):
        acc = acc + jnp.einsum(
            "bnc,cd->bnd", xp[:, k * dilation: k * dilation + N], w[k],
            precision=jax.lax.Precision.HIGHEST,
        )
    return acc + b[None]


def ref_resblock(x, blk, dilation, cond_time, has_skip, t):
    res = ref_causal_conv(x, blk["w_res"], blk["b_res"], 1)
    h = ref_causal_conv(x, blk["w_conv"], blk["b_conv"], dilation)
    if cond_time:
        gb = t @ blk["w_t"] + blk["b_t"]
        C = x.shape[-1]
        h = h * gb[:, None, :C] + gb[:, None, C:]
    h = jnp.tanh(h) * jax.nn.sigmoid(h)
    y = h + res
    sk = ref_causal_conv(y, blk["w_skip"], blk["b_skip"], 1) if has_skip else None
    return y, sk


def wavenet_reference(x_bcn, t, params, *, stacks, layers, dim_time_mult):
    cond_time = dim_time_mult is not None
    x = jnp.transpose(x_bcn, (0, 2, 1)).astype(jnp.float32)
    w0, b0 = params["init_conv"]
    x = ref_causal_conv(x, w0, b0, 1)
    inputs = [x] * layers
    skips = []
    for s in range(stacks):
        is_last = s == stacks - 1
        new_inputs = []
        for i in range(layers):
            y, sk = ref_resblock(inputs[i], params["stacks"][s][i], 2 ** i,
                                 cond_time, is_last, t)
            new_inputs.append(y)
            if is_last:
                skips.append(sk)
        inputs = new_inputs
    ssum = jnp.sum(jnp.stack(skips, 0), axis=0)
    wf, bf = params["final_conv"]
    y = ref_causal_conv(ssum, wf, bf, 1)
    return jnp.transpose(y, (0, 2, 1))


# ----------------------------------------------------------------------------
if __name__ == "__main__":
    B, dim, N = 2, 64, 64
    stacks, layers = 2, 3
    init_conv_kernel = 3
    dim_time_mult = 2

    key = jax.random.PRNGKey(0)
    kx, kt, kp = jax.random.split(key, 3)
    x = jax.random.normal(kx, (B, dim, N), jnp.float32)          # PyTorch NCL layout
    t = jax.random.normal(kt, (B, dim * dim_time_mult), jnp.float32)
    params = init_wavenet_params(kp, dim, stacks, layers, init_conv_kernel, dim_time_mult)

    out = wavenet_forward(x, t, params, stacks=stacks, layers=layers,
                          dim_time_mult=dim_time_mult)
    out = jax.block_until_ready(out)
    assert out.shape == (B, dim, N), out.shape

    ref = wavenet_reference(x, t, params, stacks=stacks, layers=layers,
                            dim_time_mult=dim_time_mult)
    np.testing.assert_allclose(np.asarray(out), np.asarray(ref), atol=2e-2, rtol=2e-2)

    print("KERNEL_OK")
</pallas_src>

<mosaic_0001>
module attributes {stable_mosaic.version = 11 : i64} {
  func.func @kernel(%arg0: i32, %arg1: memref<1x64x128xf32, #tpu.memory_space<vmem>>, %arg2: memref<384x128xf32, #tpu.memory_space<vmem>>, %arg3: memref<1x128xf32, #tpu.memory_space<vmem>>, %arg4: memref<2x3x384x128xf32, #tpu.memory_space<vmem>>, %arg5: memref<2x3x1x128xf32, #tpu.memory_space<vmem>>, %arg6: memref<2x3x128x128xf32, #tpu.memory_space<vmem>>, %arg7: memref<2x3x1x128xf32, #tpu.memory_space<vmem>>, %arg8: memref<3x128x128xf32, #tpu.memory_space<vmem>>, %arg9: memref<3x1x128xf32, #tpu.memory_space<vmem>>, %arg10: memref<1x6x128xf32, #tpu.memory_space<vmem>>, %arg11: memref<1x6x128xf32, #tpu.memory_space<vmem>>, %arg12: memref<128x128xf32, #tpu.memory_space<vmem>>, %arg13: memref<1x128xf32, #tpu.memory_space<vmem>>, %arg14: memref<1x64x128xf32, #tpu.memory_space<vmem>>, %arg15: memref<72x128xf32, #tpu.memory_space<vmem>>) attributes {dimension_semantics = [#tpu.dimension_semantics<parallel>], iteration_bounds = array<i64: 2>, scalar_prefetch = 0 : i64, scratch_operands = 1 : i64, tpu.core_type = #tpu.core_type<tc>, window_params = [{transform_indices = @transform_0, window_bounds = array<i64: 1, 64, 128>}, {pipeline_mode = #tpu.pipeline_mode<synchronous>, transform_indices = @transform_1, window_bounds = array<i64: 384, 128>}, {pipeline_mode = #tpu.pipeline_mode<synchronous>, transform_indices = @transform_2, window_bounds = array<i64: 1, 128>}, {pipeline_mode = #tpu.pipeline_mode<synchronous>, transform_indices = @transform_3, window_bounds = array<i64: 2, 3, 384, 128>}, {pipeline_mode = #tpu.pipeline_mode<synchronous>, transform_indices = @transform_4, window_bounds = array<i64: 2, 3, 1, 128>}, {pipeline_mode = #tpu.pipeline_mode<synchronous>, transform_indices = @transform_5, window_bounds = array<i64: 2, 3, 128, 128>}, {pipeline_mode = #tpu.pipeline_mode<synchronous>, transform_indices = @transform_6, window_bounds = array<i64: 2, 3, 1, 128>}, {pipeline_mode = #tpu.pipeline_mode<synchronous>, transform_indices = @transform_7, window_bounds = array<i64: 3, 128, 128>}, {pipeline_mode = #tpu.pipeline_mode<synchronous>, transform_indices = @transform_8, window_bounds = array<i64: 3, 1, 128>}, {transform_indices = @transform_9, window_bounds = array<i64: 1, 6, 128>}, {transform_indices = @transform_10, window_bounds = array<i64: 1, 6, 128>}, {pipeline_mode = #tpu.pipeline_mode<synchronous>, transform_indices = @transform_11, window_bounds = array<i64: 128, 128>}, {pipeline_mode = #tpu.pipeline_mode<synchronous>, transform_indices = @transform_12, window_bounds = array<i64: 1, 128>}, {transform_indices = @transform_13, window_bounds = array<i64: 1, 64, 128>}]} {
    %cst = arith.constant 0.000000e+00 : f32
    %0 = vector.broadcast %cst : f32 to vector<8x128xf32>
    %c0 = arith.constant 0 : index
    %c0_0 = arith.constant 0 : index
    %1 = vector.load %arg15[%c0, %c0_0] : memref<72x128xf32, #tpu.memory_space<vmem>>, vector<8x128xf32>
    tpu.vector_store %arg15[%c0, %c0_0], %0 {strides = array<i32>} : memref<72x128xf32, #tpu.memory_space<vmem>>, vector<8x128xf32>,
    %c0_1 = arith.constant 0 : index
    %c0_2 = arith.constant 0 : index
    %c0_3 = arith.constant 0 : index
    %2 = vector.load %arg10[%c0_1, %c0_2, %c0_3] : memref<1x6x128xf32, #tpu.memory_space<vmem>>, vector<1x6x128xf32>
    %3 = vector.shape_cast %2 : vector<1x6x128xf32> to vector<6x128xf32>
    %c0_4 = arith.constant 0 : index
    %c0_5 = arith.constant 0 : index
    %c0_6 = arith.constant 0 : index
    %4 = vector.load %arg11[%c0_4, %c0_5, %c0_6] : memref<1x6x128xf32, #tpu.memory_space<vmem>>, vector<1x6x128xf32>
    %5 = vector.shape_cast %4 : vector<1x6x128xf32> to vector<6x128xf32>
    %c0_7 = arith.constant 0 : index
    %c0_8 = arith.constant 0 : index
    %c0_9 = arith.constant 0 : index
    %6 = vector.load %arg1[%c0_7, %c0_8, %c0_9] : memref<1x64x128xf32, #tpu.memory_space<vmem>>, vector<1x64x128xf32>
    %7 = vector.shape_cast %6 : vector<1x64x128xf32> to vector<64x128xf32>
    %c0_10 = arith.constant 0 : index
    %c0_11 = arith.constant 0 : index
    %8 = vector.load %arg2[%c0_10, %c0_11] : memref<384x128xf32, #tpu.memory_space<vmem>>, vector<384x128xf32>
    %c0_12 = arith.constant 0 : index
    %c0_13 = arith.constant 0 : index
    %9 = vector.load %arg3[%c0_12, %c0_13] : memref<1x128xf32, #tpu.memory_space<vmem>>, vector<1x128xf32>
    %c8 = arith.constant 8 : index
    %c0_14 = arith.constant 0 : index
    %10 = vector.load %arg15[%c8, %c0_14] : memref<72x128xf32, #tpu.memory_space<vmem>>, vector<64x128xf32>
    tpu.vector_store %arg15[%c8, %c0_14], %7 {strides = array<i32>} : memref<72x128xf32, #tpu.memory_space<vmem>>, vector<64x128xf32>,
    %c6 = arith.constant 6 : index
    %c0_15 = arith.constant 0 : index
    %11 = vector.load %arg15[%c6, %c0_15] : memref<72x128xf32, #tpu.memory_space<vmem>>, vector<64x128xf32>
    %c7 = arith.constant 7 : index
    %c0_16 = arith.constant 0 : index
    %12 = vector.load %arg15[%c7, %c0_16] : memref<72x128xf32, #tpu.memory_space<vmem>>, vector<64x128xf32>
    %c8_17 = arith.constant 8 : index
    %c0_18 = arith.constant 0 : index
    %13 = vector.load %arg15[%c8_17, %c0_18] : memref<72x128xf32, #tpu.memory_space<vmem>>, vector<64x128xf32>
    %14 = tpu.concatenate %11, %12, %13 in 1 : vector<64x128xf32>, vector<64x128xf32>, vector<64x128xf32> -> vector<64x384xf32>
    %cst_19 = arith.constant dense<0.000000e+00> : vector<64x128xf32>
    %15 = tpu.matmul %14, %8, %cst_19 {dimension_numbers = #tpu.dot_dimension_numbers<[1], [0], [0], [1], [0, 0, 1, 1], [], []>} : vector<64x384xf32>, vector<384x128xf32>, vector<64x128xf32> -> vector<64x128xf32>
    %16 = vector.broadcast %9 : vector<1x128xf32> to vector<64x128xf32>
    %17 = arith.addf %15, %16 : vector<64x128xf32>
    %cst_20 = arith.constant 0.000000e+00 : f32
    %18 = vector.broadcast %cst_20 : f32 to vector<64x128xf32>
    %c0_21 = arith.constant 0 : index
    %c0_22 = arith.constant 0 : index
    %c0_23 = arith.constant 0 : index
    %c0_24 = arith.constant 0 : index
    %19 = vector.load %arg6[%c0_21, %c0_22, %c0_23, %c0_24] : memref<2x3x128x128xf32, #tpu.memory_space<vmem>>, vector<1x1x128x128xf32>
    %20 = vector.shape_cast %19 : vector<1x1x128x128xf32> to vector<128x128xf32>
    %cst_25 = arith.constant dense<0.000000e+00> : vector<64x128xf32>
    %21 = tpu.matmul %17, %20, %cst_25 {dimension_numbers = #tpu.dot_dimension_numbers<[1], [0], [0], [1], [0, 0, 1, 1], [], []>} : vector<64x128xf32>, vector<128x128xf32>, vector<64x128xf32> -> vector<64x128xf32>
    %c0_26 = arith.constant 0 : index
    %c0_27 = arith.constant 0 : index
    %c0_28 = arith.constant 0 : index
    %c0_29 = arith.constant 0 : index
    %22 = vector.load %arg7[%c0_26, %c0_27, %c0_28, %c0_29] : memref<2x3x1x128xf32, #tpu.memory_space<vmem>>, vector<1x1x1x128xf32>
    %23 = vector.shape_cast %22 : vector<1x1x1x128xf32> to vector<1x128xf32>
    %24 = vector.broadcast %23 : vector<1x128xf32> to vector<64x128xf32>
    %25 = arith.addf %21, %24 : vector<64x128xf32>
    %c0_30 = arith.constant 0 : index
    %c0_31 = arith.constant 0 : index
    %c0_32 = arith.constant 0 : index
    %c0_33 = arith.constant 0 : index
    %26 = vector.load %arg4[%c0_30, %c0_31, %c0_32, %c0_33] : memref<2x3x384x128xf32, #tpu.memory_space<vmem>>, vector<1x1x384x128xf32>
    %27 = vector.shape_cast %26 : vector<1x1x384x128xf32> to vector<384x128xf32>
    %c0_34 = arith.constant 0 : index
    %c0_35 = arith.constant 0 : index
    %c0_36 = arith.constant 0 : index
    %c0_37 = arith.constant 0 : index
    %28 = vector.load %arg5[%c0_34, %c0_35, %c0_36, %c0_37] : memref<2x3x1x128xf32, #tpu.memory_space<vmem>>, vector<1x1x1x128xf32>
    %29 = vector.shape_cast %28 : vector<1x1x1x128xf32> to vector<1x128xf32>
    %c8_38 = arith.constant 8 : index
    %c0_39 = arith.constant 0 : index
    %30 = vector.load %arg15[%c8_38, %c0_39] : memref<72x128xf32, #tpu.memory_space<vmem>>, vector<64x128xf32>
    tpu.vector_store %arg15[%c8_38, %c0_39], %17 {strides = array<i32>} : memref<72x128xf32, #tpu.memory_space<vmem>>, vector<64x128xf32>,
    %c6_40 = arith.constant 6 : index
    %c0_41 = arith.constant 0 : index
    %31 = vector.load %arg15[%c6_40, %c0_41] : memref<72x128xf32, #tpu.memory_space<vmem>>, vector<64x128xf32>
    %c7_42 = arith.constant 7 : index
    %c0_43 = arith.constant 0 : index
    %32 = vector.load %arg15[%c7_42, %c0_43] : memref<72x128xf32, #tpu.memory_space<vmem>>, vector<64x128xf32>
    %c8_44 = arith.constant 8 : index
    %c0_45 = arith.constant 0 : index
    %33 = vector.load %arg15[%c8_44, %c0_45] : memref<72x128xf32, #tpu.memory_space<vmem>>, vector<64x128xf32>
    %34 = tpu.concatenate %31, %32, %33 in 1 : vector<64x128xf32>, vector<64x128xf32>, vector<64x128xf32> -> vector<64x384xf32>
    %cst_46 = arith.constant dense<0.000000e+00> : vector<64x128xf32>
    %35 = tpu.matmul %34, %27, %cst_46 {dimension_numbers = #tpu.dot_dimension_numbers<[1], [0], [0], [1], [0, 0, 1, 1], [], []>} : vector<64x384xf32>, vector<384x128xf32>, vector<64x128xf32> -> vector<64x128xf32>
    %36 = vector.broadcast %29 : vector<1x128xf32> to vector<64x128xf32>
    %37 = arith.addf %35, %36 : vector<64x128xf32>
    %38 = vector.extract_strided_slice %3 {offsets = [0, 0], sizes = [1, 128], strides = [1, 1]} : vector<6x128xf32> to vector<1x128xf32>
    %39 = vector.broadcast %38 : vector<1x128xf32> to vector<64x128xf32>
    %40 = arith.mulf %37, %39 : vector<64x128xf32>
    %41 = vector.extract_strided_slice %5 {offsets = [0, 0], sizes = [1, 128], strides = [1, 1]} : vector<6x128xf32> to vector<1x128xf32>
    %42 = vector.broadcast %41 : vector<1x128xf32> to vector<64x128xf32>
    %43 = arith.addf %40, %42 : vector<64x128xf32>
    %44 = math.tanh %43 : vector<64x128xf32>
    %cst_47 = arith.constant 5.000000e-01 : f32
    %45 = vector.broadcast %cst_47 : f32 to vector<64x128xf32>
    %46 = arith.mulf %45, %43 : vector<64x128xf32>
    %47 = math.tanh %46 : vector<64x128xf32>
    %cst_48 = arith.constant 5.000000e-01 : f32
    %48 = vector.broadcast %cst_48 : f32 to vector<64x128xf32>
    %49 = arith.mulf %48, %47 : vector<64x128xf32>
    %cst_49 = arith.constant 5.000000e-01 : f32
    %50 = vector.broadcast %cst_49 : f32 to vector<64x128xf32>
    %51 = arith.addf %49, %50 : vector<64x128xf32>
    %52 = arith.mulf %44, %51 : vector<64x128xf32>
    %53 = arith.addf %52, %25 : vector<64x128xf32>
    %c1 = arith.constant 1 : index
    %c0_50 = arith.constant 0 : index
    %c0_51 = arith.constant 0 : index
    %c0_52 = arith.constant 0 : index
    %54 = vector.load %arg6[%c1, %c0_50, %c0_51, %c0_52] : memref<2x3x128x128xf32, #tpu.memory_space<vmem>>, vector<1x1x128x128xf32>
    %55 = vector.shape_cast %54 : vector<1x1x128x128xf32> to vector<128x128xf32>
    %cst_53 = arith.constant dense<0.000000e+00> : vector<64x128xf32>
    %56 = tpu.matmul %53, %55, %cst_53 {dimension_numbers = #tpu.dot_dimension_numbers<[1], [0], [0], [1], [0, 0, 1, 1], [], []>} : vector<64x128xf32>, vector<128x128xf32>, vector<64x128xf32> -> vector<64x128xf32>
    %c1_54 = arith.constant 1 : index
    %c0_55 = arith.constant 0 : index
    %c0_56 = arith.constant 0 : index
    %c0_57 = arith.constant 0 : index
    %57 = vector.load %arg7[%c1_54, %c0_55, %c0_56, %c0_57] : memref<2x3x1x128xf32, #tpu.memory_space<vmem>>, vector<1x1x1x128xf32>
    %58 = vector.shape_cast %57 : vector<1x1x1x128xf32> to vector<1x128xf32>
    %59 = vector.broadcast %58 : vector<1x128xf32> to vector<64x128xf32>
    %60 = arith.addf %56, %59 : vector<64x128xf32>
    %c1_58 = arith.constant 1 : index
    %c0_59 = arith.constant 0 : index
    %c0_60 = arith.constant 0 : index
    %c0_61 = arith.constant 0 : index
    %61 = vector.load %arg4[%c1_58, %c0_59, %c0_60, %c0_61] : memref<2x3x384x128xf32, #tpu.memory_space<vmem>>, vector<1x1x384x128xf32>
    %62 = vector.shape_cast %61 : vector<1x1x384x128xf32> to vector<384x128xf32>
    %c1_62 = arith.constant 1 : index
    %c0_63 = arith.constant 0 : index
    %c0_64 = arith.constant 0 : index
    %c0_65 = arith.constant 0 : index
    %63 = vector.load %arg5[%c1_62, %c0_63, %c0_64, %c0_65] : memref<2x3x1x128xf32, #tpu.memory_space<vmem>>, vector<1x1x1x128xf32>
    %64 = vector.shape_cast %63 : vector<1x1x1x128xf32> to vector<1x128xf32>
    %c8_66 = arith.constant 8 : index
    %c0_67 = arith.constant 0 : index
    %65 = vector.load %arg15[%c8_66, %c0_67] : memref<72x128xf32, #tpu.memory_space<vmem>>, vector<64x128xf32>
    tpu.vector_store %arg15[%c8_66, %c0_67], %53 {strides = array<i32>} : memref<72x128xf32, #tpu.memory_space<vmem>>, vector<64x128xf32>,
    %c6_68 = arith.constant 6 : index
    %c0_69 = arith.constant 0 : index
    %66 = vector.load %arg15[%c6_68, %c0_69] : memref<72x128xf32, #tpu.memory_space<vmem>>, vector<64x128xf32>
    %c7_70 = arith.constant 7 : index
    %c0_71 = arith.constant 0 : index
    %67 = vector.load %arg15[%c7_70, %c0_71] : memref<72x128xf32, #tpu.memory_space<vmem>>, vector<64x128xf32>
    %c8_72 = arith.constant 8 : index
    %c0_73 = arith.constant 0 : index
    %68 = vector.load %arg15[%c8_72, %c0_73] : memref<72x128xf32, #tpu.memory_space<vmem>>, vector<64x128xf32>
    %69 = tpu.concatenate %66, %67, %68 in 1 : vector<64x128xf32>, vector<64x128xf32>, vector<64x128xf32> -> vector<64x384xf32>
    %cst_74 = arith.constant dense<0.000000e+00> : vector<64x128xf32>
    %70 = tpu.matmul %69, %62, %cst_74 {dimension_numbers = #tpu.dot_dimension_numbers<[1], [0], [0], [1], [0, 0, 1, 1], [], []>} : vector<64x384xf32>, vector<384x128xf32>, vector<64x128xf32> -> vector<64x128xf32>
    %71 = vector.broadcast %64 : vector<1x128xf32> to vector<64x128xf32>
    %72 = arith.addf %70, %71 : vector<64x128xf32>
    %73 = vector.extract_strided_slice %3 {offsets = [3, 0], sizes = [1, 128], strides = [1, 1]} : vector<6x128xf32> to vector<1x128xf32>
    %74 = vector.broadcast %73 : vector<1x128xf32> to vector<64x128xf32>
    %75 = arith.mulf %72, %74 : vector<64x128xf32>
    %76 = vector.extract_strided_slice %5 {offsets = [3, 0], sizes = [1, 128], strides = [1, 1]} : vector<6x128xf32> to vector<1x128xf32>
    %77 = vector.broadcast %76 : vector<1x128xf32> to vector<64x128xf32>
    %78 = arith.addf %75, %77 : vector<64x128xf32>
    %79 = math.tanh %78 : vector<64x128xf32>
    %cst_75 = arith.constant 5.000000e-01 : f32
    %80 = vector.broadcast %cst_75 : f32 to vector<64x128xf32>
    %81 = arith.mulf %80, %78 : vector<64x128xf32>
    %82 = math.tanh %81 : vector<64x128xf32>
    %cst_76 = arith.constant 5.000000e-01 : f32
    %83 = vector.broadcast %cst_76 : f32 to vector<64x128xf32>
    %84 = arith.mulf %83, %82 : vector<64x128xf32>
    %cst_77 = arith.constant 5.000000e-01 : f32
    %85 = vector.broadcast %cst_77 : f32 to vector<64x128xf32>
    %86 = arith.addf %84, %85 : vector<64x128xf32>
    %87 = arith.mulf %79, %86 : vector<64x128xf32>
    %88 = arith.addf %87, %60 : vector<64x128xf32>
    %c0_78 = arith.constant 0 : index
    %c0_79 = arith.constant 0 : index
    %c0_80 = arith.constant 0 : index
    %89 = vector.load %arg8[%c0_78, %c0_79, %c0_80] : memref<3x128x128xf32, #tpu.memory_space<vmem>>, vector<1x128x128xf32>
    %90 = vector.shape_cast %89 : vector<1x128x128xf32> to vector<128x128xf32>
    %cst_81 = arith.constant dense<0.000000e+00> : vector<64x128xf32>
    %91 = tpu.matmul %88, %90, %cst_81 {dimension_numbers = #tpu.dot_dimension_numbers<[1], [0], [0], [1], [0, 0, 1, 1], [], []>} : vector<64x128xf32>, vector<128x128xf32>, vector<64x128xf32> -> vector<64x128xf32>
    %c0_82 = arith.constant 0 : index
    %c0_83 = arith.constant 0 : index
    %c0_84 = arith.constant 0 : index
    %92 = vector.load %arg9[%c0_82, %c0_83, %c0_84] : memref<3x1x128xf32, #tpu.memory_space<vmem>>, vector<1x1x128xf32>
    %93 = vector.shape_cast %92 : vector<1x1x128xf32> to vector<1x128xf32>
    %94 = vector.broadcast %93 : vector<1x128xf32> to vector<64x128xf32>
    %95 = arith.addf %91, %94 : vector<64x128xf32>
    %96 = arith.addf %18, %95 : vector<64x128xf32>
    %c0_85 = arith.constant 0 : index
    %c1_86 = arith.constant 1 : index
    %c0_87 = arith.constant 0 : index
    %c0_88 = arith.constant 0 : index
    %97 = vector.load %arg6[%c0_85, %c1_86, %c0_87, %c0_88] : memref<2x3x128x128xf32, #tpu.memory_space<vmem>>, vector<1x1x128x128xf32>
    %98 = vector.shape_cast %97 : vector<1x1x128x128xf32> to vector<128x128xf32>
    %cst_89 = arith.constant dense<0.000000e+00> : vector<64x128xf32>
    %99 = tpu.matmul %17, %98, %cst_89 {dimension_numbers = #tpu.dot_dimension_numbers<[1], [0], [0], [1], [0, 0, 1, 1], [], []>} : vector<64x128xf32>, vector<128x128xf32>, vector<64x128xf32> -> vector<64x128xf32>
    %c0_90 = arith.constant 0 : index
    %c1_91 = arith.constant 1 : index
    %c0_92 = arith.constant 0 : index
    %c0_93 = arith.constant 0 : index
    %100 = vector.load %arg7[%c0_90, %c1_91, %c0_92, %c0_93] : memref<2x3x1x128xf32, #tpu.memory_space<vmem>>, vector<1x1x1x128xf32>
    %101 = vector.shape_cast %100 : vector<1x1x1x128xf32> to vector<1x128xf32>
    %102 = vector.broadcast %101 : vector<1x128xf32> to vector<64x128xf32>
    %103 = arith.addf %99, %102 : vector<64x128xf32>
    %c0_94 = arith.constant 0 : index
    %c1_95 = arith.constant 1 : index
    %c0_96 = arith.constant 0 : index
    %c0_97 = arith.constant 0 : index
    %104 = vector.load %arg4[%c0_94, %c1_95, %c0_96, %c0_97] : memref<2x3x384x128xf32, #tpu.memory_space<vmem>>, vector<1x1x384x128xf32>
    %105 = vector.shape_cast %104 : vector<1x1x384x128xf32> to vector<384x128xf32>
    %c0_98 = arith.constant 0 : index
    %c1_99 = arith.constant 1 : index
    %c0_100 = arith.constant 0 : index
    %c0_101 = arith.constant 0 : index
    %106 = vector.load %arg5[%c0_98, %c1_99, %c0_100, %c0_101] : memref<2x3x1x128xf32, #tpu.memory_space<vmem>>, vector<1x1x1x128xf32>
    %107 = vector.shape_cast %106 : vector<1x1x1x128xf32> to vector<1x128xf32>
    %c8_102 = arith.constant 8 : index
    %c0_103 = arith.constant 0 : index
    %108 = vector.load %arg15[%c8_102, %c0_103] : memref<72x128xf32, #tpu.memory_space<vmem>>, vector<64x128xf32>
    tpu.vector_store %arg15[%c8_102, %c0_103], %17 {strides = array<i32>} : memref<72x128xf32, #tpu.memory_space<vmem>>, vector<64x128xf32>,
    %c4 = arith.constant 4 : index
    %c0_104 = arith.constant 0 : index
    %109 = vector.load %arg15[%c4, %c0_104] : memref<72x128xf32, #tpu.memory_space<vmem>>, vector<64x128xf32>
    %c6_105 = arith.constant 6 : index
    %c0_106 = arith.constant 0 : index
    %110 = vector.load %arg15[%c6_105, %c0_106] : memref<72x128xf32, #tpu.memory_space<vmem>>, vector<64x128xf32>
    %c8_107 = arith.constant 8 : index
    %c0_108 = arith.constant 0 : index
    %111 = vector.load %arg15[%c8_107, %c0_108] : memref<72x128xf32, #tpu.memory_space<vmem>>, vector<64x128xf32>
    %112 = tpu.concatenate %109, %110, %111 in 1 : vector<64x128xf32>, vector<64x128xf32>, vector<64x128xf32> -> vector<64x384xf32>
    %cst_109 = arith.constant dense<0.000000e+00> : vector<64x128xf32>
    %113 = tpu.matmul %112, %105, %cst_109 {dimension_numbers = #tpu.dot_dimension_numbers<[1], [0], [0], [1], [0, 0, 1, 1], [], []>} : vector<64x384xf32>, vector<384x128xf32>, vector<64x128xf32> -> vector<64x128xf32>
    %114 = vector.broadcast %107 : vector<1x128xf32> to vector<64x128xf32>
    %115 = arith.addf %113, %114 : vector<64x128xf32>
    %116 = vector.extract_strided_slice %3 {offsets = [1, 0], sizes = [1, 128], strides = [1, 1]} : vector<6x128xf32> to vector<1x128xf32>
    %117 = vector.broadcast %116 : vector<1x128xf32> to vector<64x128xf32>
    %118 = arith.mulf %115, %117 : vector<64x128xf32>
    %119 = vector.extract_strided_slice %5 {offsets = [1, 0], sizes = [1, 128], strides = [1, 1]} : vector<6x128xf32> to vector<1x128xf32>
    %120 = vector.broadcast %119 : vector<1x128xf32> to vector<64x128xf32>
    %121 = arith.addf %118, %120 : vector<64x128xf32>
    %122 = math.tanh %121 : vector<64x128xf32>
    %cst_110 = arith.constant 5.000000e-01 : f32
    %123 = vector.broadcast %cst_110 : f32 to vector<64x128xf32>
    %124 = arith.mulf %123, %121 : vector<64x128xf32>
    %125 = math.tanh %124 : vector<64x128xf32>
    %cst_111 = arith.constant 5.000000e-01 : f32
    %126 = vector.broadcast %cst_111 : f32 to vector<64x128xf32>
    %127 = arith.mulf %126, %125 : vector<64x128xf32>
    %cst_112 = arith.constant 5.000000e-01 : f32
    %128 = vector.broadcast %cst_112 : f32 to vector<64x128xf32>
    %129 = arith.addf %127, %128 : vector<64x128xf32>
    %130 = arith.mulf %122, %129 : vector<64x128xf32>
    %131 = arith.addf %130, %103 : vector<64x128xf32>
    %c1_113 = arith.constant 1 : index
    %c1_114 = arith.constant 1 : index
    %c0_115 = arith.constant 0 : index
    %c0_116 = arith.constant 0 : index
    %132 = vector.load %arg6[%c1_113, %c1_114, %c0_115, %c0_116] : memref<2x3x128x128xf32, #tpu.memory_space<vmem>>, vector<1x1x128x128xf32>
    %133 = vector.shape_cast %132 : vector<1x1x128x128xf32> to vector<128x128xf32>
    %cst_117 = arith.constant dense<0.000000e+00> : vector<64x128xf32>
    %134 = tpu.matmul %131, %133, %cst_117 {dimension_numbers = #tpu.dot_dimension_numbers<[1], [0], [0], [1], [0, 0, 1, 1], [], []>} : vector<64x128xf32>, vector<128x128xf32>, vector<64x128xf32> -> vector<64x128xf32>
    %c1_118 = arith.constant 1 : index
    %c1_119 = arith.constant 1 : index
    %c0_120 = arith.constant 0 : index
    %c0_121 = arith.constant 0 : index
    %135 = vector.load %arg7[%c1_118, %c1_119, %c0_120, %c0_121] : memref<2x3x1x128xf32, #tpu.memory_space<vmem>>, vector<1x1x1x128xf32>
    %136 = vector.shape_cast %135 : vector<1x1x1x128xf32> to vector<1x128xf32>
    %137 = vector.broadcast %136 : vector<1x128xf32> to vector<64x128xf32>
    %138 = arith.addf %134, %137 : vector<64x128xf32>
    %c1_122 = arith.constant 1 : index
    %c1_123 = arith.constant 1 : index
    %c0_124 = arith.constant 0 : index
    %c0_125 = arith.constant 0 : index
    %139 = vector.load %arg4[%c1_122, %c1_123, %c0_124, %c0_125] : memref<2x3x384x128xf32, #tpu.memory_space<vmem>>, vector<1x1x384x128xf32>
    %140 = vector.shape_cast %139 : vector<1x1x384x128xf32> to vector<384x128xf32>
    %c1_126 = arith.constant 1 : index
    %c1_127 = arith.constant 1 : index
    %c0_128 = arith.constant 0 : index
    %c0_129 = arith.constant 0 : index
    %141 = vector.load %arg5[%c1_126, %c1_127, %c0_128, %c0_129] : memref<2x3x1x128xf32, #tpu.memory_space<vmem>>, vector<1x1x1x128xf32>
    %142 = vector.shape_cast %141 : vector<1x1x1x128xf32> to vector<1x128xf32>
    %c8_130 = arith.constant 8 : index
    %c0_131 = arith.constant 0 : index
    %143 = vector.load %arg15[%c8_130, %c0_131] : memref<72x128xf32, #tpu.memory_space<vmem>>, vector<64x128xf32>
    tpu.vector_store %arg15[%c8_130, %c0_131], %131 {strides = array<i32>} : memref<72x128xf32, #tpu.memory_space<vmem>>, vector<64x128xf32>,
    %c4_132 = arith.constant 4 : index
    %c0_133 = arith.constant 0 : index
    %144 = vector.load %arg15[%c4_132, %c0_133] : memref<72x128xf32, #tpu.memory_space<vmem>>, vector<64x128xf32>
    %c6_134 = arith.constant 6 : index
    %c0_135 = arith.constant 0 : index
    %145 = vector.load %arg15[%c6_134, %c0_135] : memref<72x128xf32, #tpu.memory_space<vmem>>, vector<64x128xf32>
    %c8_136 = arith.constant 8 : index
    %c0_137 = arith.constant 0 : index
    %146 = vector.load %arg15[%c8_136, %c0_137] : memref<72x128xf32, #tpu.memory_space<vmem>>, vector<64x128xf32>
    %147 = tpu.concatenate %144, %145, %146 in 1 : vector<64x128xf32>, vector<64x128xf32>, vector<64x128xf32> -> vector<64x384xf32>
    %cst_138 = arith.constant dense<0.000000e+00> : vector<64x128xf32>
    %148 = tpu.matmul %147, %140, %cst_138 {dimension_numbers = #tpu.dot_dimension_numbers<[1], [0], [0], [1], [0, 0, 1, 1], [], []>} : vector<64x384xf32>, vector<384x128xf32>, vector<64x128xf32> -> vector<64x128xf32>
    %149 = vector.broadcast %142 : vector<1x128xf32> to vector<64x128xf32>
    %150 = arith.addf %148, %149 : vector<64x128xf32>
    %151 = vector.extract_strided_slice %3 {offsets = [4, 0], sizes = [1, 128], strides = [1, 1]} : vector<6x128xf32> to vector<1x128xf32>
    %152 = vector.broadcast %151 : vector<1x128xf32> to vector<64x128xf32>
    %153 = arith.mulf %150, %152 : vector<64x128xf32>
    %154 = vector.extract_strided_slice %5 {offsets = [4, 0], sizes = [1, 128], strides = [1, 1]} : vector<6x128xf32> to vector<1x128xf32>
    %155 = vector.broadcast %154 : vector<1x128xf32> to vector<64x128xf32>
    %156 = arith.addf %153, %155 : vector<64x128xf32>
    %157 = math.tanh %156 : vector<64x128xf32>
    %cst_139 = arith.constant 5.000000e-01 : f32
    %158 = vector.broadcast %cst_139 : f32 to vector<64x128xf32>
    %159 = arith.mulf %158, %156 : vector<64x128xf32>
    %160 = math.tanh %159 : vector<64x128xf32>
    %cst_140 = arith.constant 5.000000e-01 : f32
    %161 = vector.broadcast %cst_140 : f32 to vector<64x128xf32>
    %162 = arith.mulf %161, %160 : vector<64x128xf32>
    %cst_141 = arith.constant 5.000000e-01 : f32
    %163 = vector.broadcast %cst_141 : f32 to vector<64x128xf32>
    %164 = arith.addf %162, %163 : vector<64x128xf32>
    %165 = arith.mulf %157, %164 : vector<64x128xf32>
    %166 = arith.addf %165, %138 : vector<64x128xf32>
    %c1_142 = arith.constant 1 : index
    %c0_143 = arith.constant 0 : index
    %c0_144 = arith.constant 0 : index
    %167 = vector.load %arg8[%c1_142, %c0_143, %c0_144] : memref<3x128x128xf32, #tpu.memory_space<vmem>>, vector<1x128x128xf32>
    %168 = vector.shape_cast %167 : vector<1x128x128xf32> to vector<128x128xf32>
    %cst_145 = arith.constant dense<0.000000e+00> : vector<64x128xf32>
    %169 = tpu.matmul %166, %168, %cst_145 {dimension_numbers = #tpu.dot_dimension_numbers<[1], [0], [0], [1], [0, 0, 1, 1], [], []>} : vector<64x128xf32>, vector<128x128xf32>, vector<64x128xf32> -> vector<64x128xf32>
    %c1_146 = arith.constant 1 : index
    %c0_147 = arith.constant 0 : index
    %c0_148 = arith.constant 0 : index
    %170 = vector.load %arg9[%c1_146, %c0_147, %c0_148] : memref<3x1x128xf32, #tpu.memory_space<vmem>>, vector<1x1x128xf32>
    %171 = vector.shape_cast %170 : vector<1x1x128xf32> to vector<1x128xf32>
    %172 = vector.broadcast %171 : vector<1x128xf32> to vector<64x128xf32>
    %173 = arith.addf %169, %172 : vector<64x128xf32>
    %174 = arith.addf %96, %173 : vector<64x128xf32>
    %c0_149 = arith.constant 0 : index
    %c2 = arith.constant 2 : index
    %c0_150 = arith.constant 0 : index
    %c0_151 = arith.constant 0 : index
    %175 = vector.load %arg6[%c0_149, %c2, %c0_150, %c0_151] : memref<2x3x128x128xf32, #tpu.memory_space<vmem>>, vector<1x1x128x128xf32>
    %176 = vector.shape_cast %175 : vector<1x1x128x128xf32> to vector<128x128xf32>
    %cst_152 = arith.constant dense<0.000000e+00> : vector<64x128xf32>
    %177 = tpu.matmul %17, %176, %cst_152 {dimension_numbers = #tpu.dot_dimension_numbers<[1], [0], [0], [1], [0, 0, 1, 1], [], []>} : vector<64x128xf32>, vector<128x128xf32>, vector<64x128xf32> -> vector<64x128xf32>
    %c0_153 = arith.constant 0 : index
    %c2_154 = arith.constant 2 : index
    %c0_155 = arith.constant 0 : index
    %c0_156 = arith.constant 0 : index
    %178 = vector.load %arg7[%c0_153, %c2_154, %c0_155, %c0_156] : memref<2x3x1x128xf32, #tpu.memory_space<vmem>>, vector<1x1x1x128xf32>
    %179 = vector.shape_cast %178 : vector<1x1x1x128xf32> to vector<1x128xf32>
    %180 = vector.broadcast %179 : vector<1x128xf32> to vector<64x128xf32>
    %181 = arith.addf %177, %180 : vector<64x128xf32>
    %c0_157 = arith.constant 0 : index
    %c2_158 = arith.constant 2 : index
    %c0_159 = arith.constant 0 : index
    %c0_160 = arith.constant 0 : index
    %182 = vector.load %arg4[%c0_157, %c2_158, %c0_159, %c0_160] : memref<2x3x384x128xf32, #tpu.memory_space<vmem>>, vector<1x1x384x128xf32>
    %183 = vector.shape_cast %182 : vector<1x1x384x128xf32> to vector<384x128xf32>
    %c0_161 = arith.constant 0 : index
    %c2_162 = arith.constant 2 : index
    %c0_163 = arith.constant 0 : index
    %c0_164 = arith.constant 0 : index
    %184 = vector.load %arg5[%c0_161, %c2_162, %c0_163, %c0_164] : memref<2x3x1x128xf32, #tpu.memory_space<vmem>>, vector<1x1x1x128xf32>
    %185 = vector.shape_cast %184 : vector<1x1x1x128xf32> to vector<1x128xf32>
    %c8_165 = arith.constant 8 : index
    %c0_166 = arith.constant 0 : index
    %186 = vector.load %arg15[%c8_165, %c0_166] : memref<72x128xf32, #tpu.memory_space<vmem>>, vector<64x128xf32>
    tpu.vector_store %arg15[%c8_165, %c0_166], %17 {strides = array<i32>} : memref<72x128xf32, #tpu.memory_space<vmem>>, vector<64x128xf32>,
    %c0_167 = arith.constant 0 : index
    %c0_168 = arith.constant 0 : index
    %187 = vector.load %arg15[%c0_167, %c0_168] : memref<72x128xf32, #tpu.memory_space<vmem>>, vector<64x128xf32>
    %c4_169 = arith.constant 4 : index
    %c0_170 = arith.constant 0 : index
    %188 = vector.load %arg15[%c4_169, %c0_170] : memref<72x128xf32, #tpu.memory_space<vmem>>, vector<64x128xf32>
    %c8_171 = arith.constant 8 : index
    %c0_172 = arith.constant 0 : index
    %189 = vector.load %arg15[%c8_171, %c0_172] : memref<72x128xf32, #tpu.memory_space<vmem>>, vector<64x128xf32>
    %190 = tpu.concatenate %187, %188, %189 in 1 : vector<64x128xf32>, vector<64x128xf32>, vector<64x128xf32> -> vector<64x384xf32>
    %cst_173 = arith.constant dense<0.000000e+00> : vector<64x128xf32>
    %191 = tpu.matmul %190, %183, %cst_173 {dimension_numbers = #tpu.dot_dimension_numbers<[1], [0], [0], [1], [0, 0, 1, 1], [], []>} : vector<64x384xf32>, vector<384x128xf32>, vector<64x128xf32> -> vector<64x128xf32>
    %192 = vector.broadcast %185 : vector<1x128xf32> to vector<64x128xf32>
    %193 = arith.addf %191, %192 : vector<64x128xf32>
    %194 = vector.extract_strided_slice %3 {offsets = [2, 0], sizes = [1, 128], strides = [1, 1]} : vector<6x128xf32> to vector<1x128xf32>
    %195 = vector.broadcast %194 : vector<1x128xf32> to vector<64x128xf32>
    %196 = arith.mulf %193, %195 : vector<64x128xf32>
    %197 = vector.extract_strided_slice %5 {offsets = [2, 0], sizes = [1, 128], strides = [1, 1]} : vector<6x128xf32> to vector<1x128xf32>
    %198 = vector.broadcast %197 : vector<1x128xf32> to vector<64x128xf32>
    %199 = arith.addf %196, %198 : vector<64x128xf32>
    %200 = math.tanh %199 : vector<64x128xf32>
    %cst_174 = arith.constant 5.000000e-01 : f32
    %201 = vector.broadcast %cst_174 : f32 to vector<64x128xf32>
    %202 = arith.mulf %201, %199 : vector<64x128xf32>
    %203 = math.tanh %202 : vector<64x128xf32>
    %cst_175 = arith.constant 5.000000e-01 : f32
    %204 = vector.broadcast %cst_175 : f32 to vector<64x128xf32>
    %205 = arith.mulf %204, %203 : vector<64x128xf32>
    %cst_176 = arith.constant 5.000000e-01 : f32
    %206 = vector.broadcast %cst_176 : f32 to vector<64x128xf32>
    %207 = arith.addf %205, %206 : vector<64x128xf32>
    %208 = arith.mulf %200, %207 : vector<64x128xf32>
    %209 = arith.addf %208, %181 : vector<64x128xf32>
    %c1_177 = arith.constant 1 : index
    %c2_178 = arith.constant 2 : index
    %c0_179 = arith.constant 0 : index
    %c0_180 = arith.constant 0 : index
    %210 = vector.load %arg6[%c1_177, %c2_178, %c0_179, %c0_180] : memref<2x3x128x128xf32, #tpu.memory_space<vmem>>, vector<1x1x128x128xf32>
    %211 = vector.shape_cast %210 : vector<1x1x128x128xf32> to vector<128x128xf32>
    %cst_181 = arith.constant dense<0.000000e+00> : vector<64x128xf32>
    %212 = tpu.matmul %209, %211, %cst_181 {dimension_numbers = #tpu.dot_dimension_numbers<[1], [0], [0], [1], [0, 0, 1, 1], [], []>} : vector<64x128xf32>, vector<128x128xf32>, vector<64x128xf32> -> vector<64x128xf32>
    %c1_182 = arith.constant 1 : index
    %c2_183 = arith.constant 2 : index
    %c0_184 = arith.constant 0 : index
    %c0_185 = arith.constant 0 : index
    %213 = vector.load %arg7[%c1_182, %c2_183, %c0_184, %c0_185] : memref<2x3x1x128xf32, #tpu.memory_space<vmem>>, vector<1x1x1x128xf32>
    %214 = vector.shape_cast %213 : vector<1x1x1x128xf32> to vector<1x128xf32>
    %215 = vector.broadcast %214 : vector<1x128xf32> to vector<64x128xf32>
    %216 = arith.addf %212, %215 : vector<64x128xf32>
    %c1_186 = arith.constant 1 : index
    %c2_187 = arith.constant 2 : index
    %c0_188 = arith.constant 0 : index
    %c0_189 = arith.constant 0 : index
    %217 = vector.load %arg4[%c1_186, %c2_187, %c0_188, %c0_189] : memref<2x3x384x128xf32, #tpu.memory_space<vmem>>, vector<1x1x384x128xf32>
    %218 = vector.shape_cast %217 : vector<1x1x384x128xf32> to vector<384x128xf32>
    %c1_190 = arith.constant 1 : index
    %c2_191 = arith.constant 2 : index
    %c0_192 = arith.constant 0 : index
    %c0_193 = arith.constant 0 : index
    %219 = vector.load %arg5[%c1_190, %c2_191, %c0_192, %c0_193] : memref<2x3x1x128xf32, #tpu.memory_space<vmem>>, vector<1x1x1x128xf32>
    %220 = vector.shape_cast %219 : vector<1x1x1x128xf32> to vector<1x128xf32>
    %c8_194 = arith.constant 8 : index
    %c0_195 = arith.constant 0 : index
    %221 = vector.load %arg15[%c8_194, %c0_195] : memref<72x128xf32, #tpu.memory_space<vmem>>, vector<64x128xf32>
    tpu.vector_store %arg15[%c8_194, %c0_195], %209 {strides = array<i32>} : memref<72x128xf32, #tpu.memory_space<vmem>>, vector<64x128xf32>,
    %c0_196 = arith.constant 0 : index
    %c0_197 = arith.constant 0 : index
    %222 = vector.load %arg15[%c0_196, %c0_197] : memref<72x128xf32, #tpu.memory_space<vmem>>, vector<64x128xf32>
    %c4_198 = arith.constant 4 : index
    %c0_199 = arith.constant 0 : index
    %223 = vector.load %arg15[%c4_198, %c0_199] : memref<72x128xf32, #tpu.memory_space<vmem>>, vector<64x128xf32>
    %c8_200 = arith.constant 8 : index
    %c0_201 = arith.constant 0 : index
    %224 = vector.load %arg15[%c8_200, %c0_201] : memref<72x128xf32, #tpu.memory_space<vmem>>, vector<64x128xf32>
    %225 = tpu.concatenate %222, %223, %224 in 1 : vector<64x128xf32>, vector<64x128xf32>, vector<64x128xf32> -> vector<64x384xf32>
    %cst_202 = arith.constant dense<0.000000e+00> : vector<64x128xf32>
    %226 = tpu.matmul %225, %218, %cst_202 {dimension_numbers = #tpu.dot_dimension_numbers<[1], [0], [0], [1], [0, 0, 1, 1], [], []>} : vector<64x384xf32>, vector<384x128xf32>, vector<64x128xf32> -> vector<64x128xf32>
    %227 = vector.broadcast %220 : vector<1x128xf32> to vector<64x128xf32>
    %228 = arith.addf %226, %227 : vector<64x128xf32>
    %229 = vector.extract_strided_slice %3 {offsets = [5, 0], sizes = [1, 128], strides = [1, 1]} : vector<6x128xf32> to vector<1x128xf32>
    %230 = vector.broadcast %229 : vector<1x128xf32> to vector<64x128xf32>
    %231 = arith.mulf %228, %230 : vector<64x128xf32>
    %232 = vector.extract_strided_slice %5 {offsets = [5, 0], sizes = [1, 128], strides = [1, 1]} : vector<6x128xf32> to vector<1x128xf32>
    %233 = vector.broadcast %232 : vector<1x128xf32> to vector<64x128xf32>
    %234 = arith.addf %231, %233 : vector<64x128xf32>
    %235 = math.tanh %234 : vector<64x128xf32>
    %cst_203 = arith.constant 5.000000e-01 : f32
    %236 = vector.broadcast %cst_203 : f32 to vector<64x128xf32>
    %237 = arith.mulf %236, %234 : vector<64x128xf32>
    %238 = math.tanh %237 : vector<64x128xf32>
    %cst_204 = arith.constant 5.000000e-01 : f32
    %239 = vector.broadcast %cst_204 : f32 to vector<64x128xf32>
    %240 = arith.mulf %239, %238 : vector<64x128xf32>
    %cst_205 = arith.constant 5.000000e-01 : f32
    %241 = vector.broadcast %cst_205 : f32 to vector<64x128xf32>
    %242 = arith.addf %240, %241 : vector<64x128xf32>
    %243 = arith.mulf %235, %242 : vector<64x128xf32>
    %244 = arith.addf %243, %216 : vector<64x128xf32>
    %c2_206 = arith.constant 2 : index
    %c0_207 = arith.constant 0 : index
    %c0_208 = arith.constant 0 : index
    %245 = vector.load %arg8[%c2_206, %c0_207, %c0_208] : memref<3x128x128xf32, #tpu.memory_space<vmem>>, vector<1x128x128xf32>
    %246 = vector.shape_cast %245 : vector<1x128x128xf32> to vector<128x128xf32>
    %cst_209 = arith.constant dense<0.000000e+00> : vector<64x128xf32>
    %247 = tpu.matmul %244, %246, %cst_209 {dimension_numbers = #tpu.dot_dimension_numbers<[1], [0], [0], [1], [0, 0, 1, 1], [], []>} : vector<64x128xf32>, vector<128x128xf32>, vector<64x128xf32> -> vector<64x128xf32>
    %c2_210 = arith.constant 2 : index
    %c0_211 = arith.constant 0 : index
    %c0_212 = arith.constant 0 : index
    %248 = vector.load %arg9[%c2_210, %c0_211, %c0_212] : memref<3x1x128xf32, #tpu.memory_space<vmem>>, vector<1x1x128xf32>
    %249 = vector.shape_cast %248 : vector<1x1x128xf32> to vector<1x128xf32>
    %250 = vector.broadcast %249 : vector<1x128xf32> to vector<64x128xf32>
    %251 = arith.addf %247, %250 : vector<64x128xf32>
    %252 = arith.addf %174, %251 : vector<64x128xf32>
    %c0_213 = arith.constant 0 : index
    %c0_214 = arith.constant 0 : index
    %253 = vector.load %arg12[%c0_213, %c0_214] : memref<128x128xf32, #tpu.memory_space<vmem>>, vector<128x128xf32>
    %cst_215 = arith.constant dense<0.000000e+00> : vector<64x128xf32>
    %254 = tpu.matmul %252, %253, %cst_215 {dimension_numbers = #tpu.dot_dimension_numbers<[1], [0], [0], [1], [0, 0, 1, 1], [], []>} : vector<64x128xf32>, vector<128x128xf32>, vector<64x128xf32> -> vector<64x128xf32>
    %c0_216 = arith.constant 0 : index
    %c0_217 = arith.constant 0 : index
    %255 = vector.load %arg13[%c0_216, %c0_217] : memref<1x128xf32, #tpu.memory_space<vmem>>, vector<1x128xf32>
    %256 = vector.broadcast %255 : vector<1x128xf32> to vector<64x128xf32>
    %257 = arith.addf %254, %256 : vector<64x128xf32>
    %c0_218 = arith.constant 0 : index
    %c0_219 = arith.constant 0 : index
    %c0_220 = arith.constant 0 : index
    %258 = vector.load %arg14[%c0_218, %c0_219, %c0_220] : memref<1x64x128xf32, #tpu.memory_space<vmem>>, vector<1x64x128xf32>
    %259 = vector.shape_cast %258 : vector<1x64x128xf32> to vector<64x128xf32>
    %260 = vector.shape_cast %257 : vector<64x128xf32> to vector<1x64x128xf32>
    tpu.vector_store %arg14[%c0_218, %c0_219, %c0_220], %260 {strides = array<i32>} : memref<1x64x128xf32, #tpu.memory_space<vmem>>, vector<1x64x128xf32>,
    return
  }
  func.func @transform_0(%arg0: i32) -> (i32, i32, i32) {
    %c0_i32 = arith.constant 0 : i32
    %c0_i32_0 = arith.constant 0 : i32
    %c0_i32_1 = arith.constant 0 : i32
    return %arg0, %c0_i32, %c0_i32_0 : i32, i32, i32
  }
  func.func @transform_1(%arg0: i32) -> (i32, i32) {
    %c0_i32 = arith.constant 0 : i32
    %c0_i32_0 = arith.constant 0 : i32
    %c0_i32_1 = arith.constant 0 : i32
    return %c0_i32, %c0_i32_0 : i32, i32
  }
  func.func @transform_2(%arg0: i32) -> (i32, i32) {
    %c0_i32 = arith.constant 0 : i32
    %c0_i32_0 = arith.constant 0 : i32
    %c0_i32_1 = arith.constant 0 : i32
    return %c0_i32, %c0_i32_0 : i32, i32
  }
  func.func @transform_3(%arg0: i32) -> (i32, i32, i32, i32) {
    %c0_i32 = arith.constant 0 : i32
    %c0_i32_0 = arith.constant 0 : i32
    %c0_i32_1 = arith.constant 0 : i32
    %c0_i32_2 = arith.constant 0 : i32
    %c0_i32_3 = arith.constant 0 : i32
    return %c0_i32, %c0_i32_0, %c0_i32_1, %c0_i32_2 : i32, i32, i32, i32
  }
  func.func @transform_4(%arg0: i32) -> (i32, i32, i32, i32) {
    %c0_i32 = arith.constant 0 : i32
    %c0_i32_0 = arith.constant 0 : i32
    %c0_i32_1 = arith.constant 0 : i32
    %c0_i32_2 = arith.constant 0 : i32
    %c0_i32_3 = arith.constant 0 : i32
    return %c0_i32, %c0_i32_0, %c0_i32_1, %c0_i32_2 : i32, i32, i32, i32
  }
  func.func @transform_5(%arg0: i32) -> (i32, i32, i32, i32) {
    %c0_i32 = arith.constant 0 : i32
    %c0_i32_0 = arith.constant 0 : i32
    %c0_i32_1 = arith.constant 0 : i32
    %c0_i32_2 = arith.constant 0 : i32
    %c0_i32_3 = arith.constant 0 : i32
    return %c0_i32, %c0_i32_0, %c0_i32_1, %c0_i32_2 : i32, i32, i32, i32
  }
  func.func @transform_6(%arg0: i32) -> (i32, i32, i32, i32) {
    %c0_i32 = arith.constant 0 : i32
    %c0_i32_0 = arith.constant 0 : i32
    %c0_i32_1 = arith.constant 0 : i32
    %c0_i32_2 = arith.constant 0 : i32
    %c0_i32_3 = arith.constant 0 : i32
    return %c0_i32, %c0_i32_0, %c0_i32_1, %c0_i32_2 : i32, i32, i32, i32
  }
  func.func @transform_7(%arg0: i32) -> (i32, i32, i32) {
    %c0_i32 = arith.constant 0 : i32
    %c0_i32_0 = arith.constant 0 : i32
    %c0_i32_1 = arith.constant 0 : i32
    %c0_i32_2 = arith.constant 0 : i32
    return %c0_i32, %c0_i32_0, %c0_i32_1 : i32, i32, i32
  }
  func.func @transform_8(%arg0: i32) -> (i32, i32, i32) {
    %c0_i32 = arith.constant 0 : i32
    %c0_i32_0 = arith.constant 0 : i32
    %c0_i32_1 = arith.constant 0 : i32
    %c0_i32_2 = arith.constant 0 : i32
    return %c0_i32, %c0_i32_0, %c0_i32_1 : i32, i32, i32
  }
  func.func @transform_9(%arg0: i32) -> (i32, i32, i32) {
    %c0_i32 = arith.constant 0 : i32
    %c0_i32_0 = arith.constant 0 : i32
    %c0_i32_1 = arith.constant 0 : i32
    return %arg0, %c0_i32, %c0_i32_0 : i32, i32, i32
  }
  func.func @transform_10(%arg0: i32) -> (i32, i32, i32) {
    %c0_i32 = arith.constant 0 : i32
    %c0_i32_0 = arith.constant 0 : i32
    %c0_i32_1 = arith.constant 0 : i32
    return %arg0, %c0_i32, %c0_i32_0 : i32, i32, i32
  }
  func.func @transform_11(%arg0: i32) -> (i32, i32) {
    %c0_i32 = arith.constant 0 : i32
    %c0_i32_0 = arith.constant 0 : i32
    %c0_i32_1 = arith.constant 0 : i32
    return %c0_i32, %c0_i32_0 : i32, i32
  }
  func.func @transform_12(%arg0: i32) -> (i32, i32) {
    %c0_i32 = arith.constant 0 : i32
    %c0_i32_0 = arith.constant 0 : i32
    %c0_i32_1 = arith.constant 0 : i32
    return %c0_i32, %c0_i32_0 : i32, i32
  }
  func.func @transform_13(%arg0: i32) -> (i32, i32, i32) {
    %c0_i32 = arith.constant 0 : i32
    %c0_i32_0 = arith.constant 0 : i32
    %c0_i32_1 = arith.constant 0 : i32
    return %arg0, %c0_i32, %c0_i32_0 : i32, i32, i32
  }
}

</mosaic_0001>

<llo_original>
// kernel: tpu_custom_call.1
$region0: #{tpu_custom_call.1}
  #allocation0 [shape = 'u32[]', space=smem, size = 0x4, offset = 0x4, fixed_abs, tag = 'smem constant byte address 0x4 - core index']
  #allocation1 [shape = 'u32[72,128]{1,0:T(1,128)}', space=vmem, size = 0x9000, scoped, tag = 'internal scratch']
  #allocation2 [shape = 'f32[72,128]{1,0:T(8,128)}', space=vmem, size = 0x9000, scoped, tag = 'scratch operand']
  %s0 = inlined_call_operand.hbm [shape: f32[2,64,128], index: 0, kind: input, shape index: {}]
  %s1 = inlined_call_operand.hbm [shape: f32[384,128], index: 1, kind: input, shape index: {}]
  %s2 = inlined_call_operand.hbm [shape: f32[1,128], index: 2, kind: input, shape index: {}]
  %s3 = inlined_call_operand.hbm [shape: f32[2,3,384,128], index: 3, kind: input, shape index: {}]
  %s4 = inlined_call_operand.hbm [shape: f32[2,3,1,128], index: 4, kind: input, shape index: {}]
  %s5 = inlined_call_operand.hbm [shape: f32[2,3,128,128], index: 5, kind: input, shape index: {}]
  %s6 = inlined_call_operand.hbm [shape: f32[2,3,1,128], index: 6, kind: input, shape index: {}]
  %s7 = inlined_call_operand.hbm [shape: f32[3,128,128], index: 7, kind: input, shape index: {}]
  %s8 = inlined_call_operand.hbm [shape: f32[3,1,128], index: 8, kind: input, shape index: {}]
  %s9 = inlined_call_operand.vmem [shape: f32[2,6,128], index: 9, kind: input, shape index: {}]
  %s10 = inlined_call_operand.vmem [shape: f32[2,6,128], index: 10, kind: input, shape index: {}]
  %s11 = inlined_call_operand.hbm [shape: f32[128,128], index: 11, kind: input, shape index: {}]
  %s12 = inlined_call_operand.hbm [shape: f32[1,128], index: 12, kind: input, shape index: {}]
  %s13 = inlined_call_operand.hbm [shape: f32[2,64,128], index: 13, kind: output, shape index: {}]
  %s14 = sld [smem:[#allocation0]]
  $region129: #{tpu_custom_call.1} parent=0
    _
  %s16 = ssub.s32 1, %s14
  %s17 = scalar_select 0, %s16, %s14
  $region1: #{tpu_custom_call.1} parent=0
    #allocation3 [shape = 'u8[65536]{0}', space=vmem, size = 0x10000, scoped, tag = 'input window, operand 0']
    #allocation4 [shape = 's32[2]{0}', space=sflag, size = 0x8, scoped, tag = 'scoped memory for tpu_custom_call.1']
    #allocation5 [shape = 's32[2]{0}', space=sflag, size = 0x8, scoped, tag = 'scoped memory for tpu_custom_call.1']
    #allocation6 [shape = 'u8[196608]{0}', space=vmem, size = 0x30000, scoped, tag = 'input window, operand 1, single buffered']
    #allocation7 [shape = 's32[1]{0}', space=sflag, size = 0x4, scoped, tag = 'scoped memory for tpu_custom_call.1']
    #allocation8 [shape = 'u8[512]{0}', space=vmem, size = 0x400, scoped, tag = 'input window, operand 2, single buffered']
    #allocation9 [shape = 'u8[1179648]{0}', space=vmem, size = 0x120000, scoped, tag = 'input window, operand 3, single buffered']
    #allocation10 [shape = 's32[1]{0}', space=sflag, size = 0x4, scoped, tag = 'scoped memory for tpu_custom_call.1']
    #allocation11 [shape = 'u8[3072]{0}', space=vmem, size = 0xc00, scoped, tag = 'input window, operand 4, single buffered']
    #allocation12 [shape = 'u8[393216]{0}', space=vmem, size = 0x60000, scoped, tag = 'input window, operand 5, single buffered']
    #allocation13 [shape = 's32[1]{0}', space=sflag, size = 0x4, scoped, tag = 'scoped memory for tpu_custom_call.1']
    #allocation14 [shape = 'u8[3072]{0}', space=vmem, size = 0xc00, scoped, tag = 'input window, operand 6, single buffered']
    #allocation15 [shape = 'u8[196608]{0}', space=vmem, size = 0x30000, scoped, tag = 'input window, operand 7, single buffered']
    #allocation16 [shape = 's32[1]{0}', space=sflag, size = 0x4, scoped, tag = 'scoped memory for tpu_custom_call.1']
    #allocation17 [shape = 'u8[1536]{0}', space=vmem, size = 0x800, scoped, tag = 'input window, operand 8, single buffered']
    #allocation18 [shape = 'u8[65536]{0}', space=vmem, size = 0x10000, scoped, tag = 'input window, operand 11, single buffered']
    #allocation19 [shape = 's32[1]{0}', space=sflag, size = 0x4, scoped, tag = 'scoped memory for tpu_custom_call.1']
    #allocation20 [shape = 'u8[512]{0}', space=vmem, size = 0x400, scoped, tag = 'input window, operand 12, single buffered']
    #allocation21 [shape = 'u8[65536]{0}', space=vmem, size = 0x10000, scoped, tag = 'output window, operand 0']
    %18 = vsyncpa [#allocation4], 0
    %s19 = scalar_lea.sflag [#allocation4], 1
    %20 = vsyncpa %s19, 0
    %21 = vsyncpa [#allocation7], 0
    %22 = vsyncpa [#allocation10], 0
    %23 = vsyncpa [#allocation13], 0
    %24 = vsyncpa [#allocation16], 0
    %25 = vsyncpa [#allocation19], 0
    %26 = vsyncpa [#allocation5], 0
    %s27 = scalar_lea.sflag [#allocation5], 1
    %28 = vsyncpa %s27, 0
    loop: start=0, step=1, limit=4
    $region2: #{tpu_custom_call.1} parent=1 // loop_pre_header
      _
    $region3: #{tpu_custom_call.1} parent=1 // loop_header
      %s30 = sphi 0, %s34
      %p31 = scmp.ge.s32.totalorder %s30, 4
      %s40 = sphi 0, %s42
      %s43 = sphi 0, %s40
      %s44 = sphi 0, %s43
      %s60 = sphi 0, %s44
      %s64 = sphi 0, %s64
      %s66 = sphi 0, %s64
      %s67 = sphi 0, %s66
      %s81 = sphi 0, %s67
      %s85 = sphi 0, %s85
      %s87 = sphi 0, %s85
      %s88 = sphi 0, %s87
      %s102 = sphi 0, %s88
      %s106 = sphi 0, %s106
      %s108 = sphi 0, %s106
      %s109 = sphi 0, %s108
      %s123 = sphi 0, %s109
      %s127 = sphi 0, %s127
      %s129 = sphi 0, %s127
      %s130 = sphi 0, %s129
      %s144 = sphi 0, %s130
      %s148 = sphi 0, %s148
      %s150 = sphi 0, %s148
      %s151 = sphi 0, %s150
      %s165 = sphi 0, %s151
      %s169 = sphi 0, %s169
      %s171 = sphi 0, %s169
      %s172 = sphi 0, %s171
      %s186 = sphi 0, %s172
      %s190 = sphi 0, %s190
      %s192 = sphi 0, %s190
      %s193 = sphi 0, %s192
      %s207 = sphi 0, %s193
      %s211 = sphi 0, %s211
      %s213 = sphi 0, %s211
      %s214 = sphi 0, %s213
      %s228 = sphi 0, %s214
      %s234 = sphi 0, %s236
      %s237 = sphi 0, %s234
      %s238 = sphi 0, %s237
      %s254 = sphi 0, %s238
      %s260 = sphi 0, %s262
      %s263 = sphi 0, %s260
      %s264 = sphi 0, %s263
      %s280 = sphi 0, %s264
      %s284 = sphi 0, %s284
      %s286 = sphi 0, %s284
      %s287 = sphi 0, %s286
      %s301 = sphi 0, %s287
      %s305 = sphi 0, %s305
      %s307 = sphi 0, %s305
      %s308 = sphi 0, %s307
      %s322 = sphi 0, %s308
      %s328 = sphi 0, %s330
      %s331 = sphi 0, %s328
      %s332 = sphi 0, %s331
      %s348 = sphi 0, %s332
    $region4: #{tpu_custom_call.1} parent=1 // loop_header_branch
      %33 = sbr.rel (%p31) target = $region8
    $region5: #{tpu_custom_call.1} parent=1 // loop_body
      %s35 = ssub.s32 %s30, 1
      %s36 = ssub.s32 %s30, 2
      %s37 = sadd.s32 %s30, 1
      %s38 = ssub.s32 %s30, %s37
      %p39 = scmp.eq.s32.totalorder %s38, 0
      %s41 = sadd.s32 %s40, 1
      %s42 = scalar_select %p39, %s40, %s41
      %p45 = pneg %p39
      %p46 = scmp.eq.s32.totalorder %s30, 1
      %p47 = por %p45, %p46
      %p48 = scmp.ne.s32.totalorder %s40, %s43
      %p49 = scmp.eq.s32.totalorder %s30, 0
      %p50 = por %p48, %p49
      %p51 = scmp.ne.s32.totalorder %s40, %s43
      %p52 = scmp.eq.s32.totalorder %s35, 1
      %p53 = por %p51, %p52
      %p54 = scmp.ne.s32.totalorder %s43, %s44
      %p55 = scmp.eq.s32.totalorder %s35, 0
      %p56 = por %p54, %p55
      %p57 = scmp.ne.s32.totalorder %s43, %s44
      %p58 = scmp.eq.s32.totalorder %s36, 1
      %p59 = por %p57, %p58
      %p61 = scmp.ne.s32.totalorder %s44, %s60
      %p62 = scmp.eq.s32.totalorder %s36, 0
      %p63 = por %p61, %p62
      %s65 = sadd.s32 %s64, 1
      %p68 = scmp.eq.s32.totalorder %s30, 1
      %p69 = scmp.ne.s32.totalorder %s64, %s66
      %p70 = scmp.eq.s32.totalorder %s30, 0
      %p71 = por %p69, %p70
      %p72 = scmp.ne.s32.totalorder %s64, %s66
      %p73 = scmp.eq.s32.totalorder %s35, 1
      %p74 = por %p72, %p73
      %p75 = scmp.ne.s32.totalorder %s66, %s67
      %p76 = scmp.eq.s32.totalorder %s35, 0
      %p77 = por %p75, %p76
      %p78 = scmp.ne.s32.totalorder %s66, %s67
      %p79 = scmp.eq.s32.totalorder %s36, 1
      %p80 = por %p78, %p79
      %p82 = scmp.ne.s32.totalorder %s67, %s81
      %p83 = scmp.eq.s32.totalorder %s36, 0
      %p84 = por %p82, %p83
      %s86 = sadd.s32 %s85, 1
      %p89 = scmp.eq.s32.totalorder %s30, 1
      %p90 = scmp.ne.s32.totalorder %s85, %s87
      %p91 = scmp.eq.s32.totalorder %s30, 0
      %p92 = por %p90, %p91
      %p93 = scmp.ne.s32.totalorder %s85, %s87
      %p94 = scmp.eq.s32.totalorder %s35, 1
      %p95 = por %p93, %p94
      %p96 = scmp.ne.s32.totalorder %s87, %s88
      %p97 = scmp.eq.s32.totalorder %s35, 0
      %p98 = por %p96, %p97
      %p99 = scmp.ne.s32.totalorder %s87, %s88
      %p100 = scmp.eq.s32.totalorder %s36, 1
      %p101 = por %p99, %p100
      %p103 = scmp.ne.s32.totalorder %s88, %s102
      %p104 = scmp.eq.s32.totalorder %s36, 0
      %p105 = por %p103, %p104
      %s107 = sadd.s32 %s106, 1
      %p110 = scmp.eq.s32.totalorder %s30, 1
      %p111 = scmp.ne.s32.totalorder %s106, %s108
      %p112 = scmp.eq.s32.totalorder %s30, 0
      %p113 = por %p111, %p112
      %p114 = scmp.ne.s32.totalorder %s106, %s108
      %p115 = scmp.eq.s32.totalorder %s35, 1
      %p116 = por %p114, %p115
      %p117 = scmp.ne.s32.totalorder %s108, %s109
      %p118 = scmp.eq.s32.totalorder %s35, 0
      %p119 = por %p117, %p118
      %p120 = scmp.ne.s32.totalorder %s108, %s109
      %p121 = scmp.eq.s32.totalorder %s36, 1
      %p122 = por %p120, %p121
      %p124 = scmp.ne.s32.totalorder %s109, %s123
      %p125 = scmp.eq.s32.totalorder %s36, 0
      %p126 = por %p124, %p125
      %s128 = sadd.s32 %s127, 1
      %p131 = scmp.eq.s32.totalorder %s30, 1
      %p132 = scmp.ne.s32.totalorder %s127, %s129
      %p133 = scmp.eq.s32.totalorder %s30, 0
      %p134 = por %p132, %p133
      %p135 = scmp.ne.s32.totalorder %s127, %s129
      %p136 = scmp.eq.s32.totalorder %s35, 1
      %p137 = por %p135, %p136
      %p138 = scmp.ne.s32.totalorder %s129, %s130
      %p139 = scmp.eq.s32.totalorder %s35, 0
      %p140 = por %p138, %p139
      %p141 = scmp.ne.s32.totalorder %s129, %s130
      %p142 = scmp.eq.s32.totalorder %s36, 1
      %p143 = por %p141, %p142
      %p145 = scmp.ne.s32.totalorder %s130, %s144
      %p146 = scmp.eq.s32.totalorder %s36, 0
      %p147 = por %p145, %p146
      %s149 = sadd.s32 %s148, 1
      %p152 = scmp.eq.s32.totalorder %s30, 1
      %p153 = scmp.ne.s32.totalorder %s148, %s150
      %p154 = scmp.eq.s32.totalorder %s30, 0
      %p155 = por %p153, %p154
      %p156 = scmp.ne.s32.totalorder %s148, %s150
      %p157 = scmp.eq.s32.totalorder %s35, 1
      %p158 = por %p156, %p157
      %p159 = scmp.ne.s32.totalorder %s150, %s151
      %p160 = scmp.eq.s32.totalorder %s35, 0
      %p161 = por %p159, %p160
      %p162 = scmp.ne.s32.totalorder %s150, %s151
      %p163 = scmp.eq.s32.totalorder %s36, 1
      %p164 = por %p162, %p163
      %p166 = scmp.ne.s32.totalorder %s151, %s165
      %p167 = scmp.eq.s32.totalorder %s36, 0
      %p168 = por %p166, %p167
      %s170 = sadd.s32 %s169, 1
      %p173 = scmp.eq.s32.totalorder %s30, 1
      %p174 = scmp.ne.s32.totalorder %s169, %s171
      %p175 = scmp.eq.s32.totalorder %s30, 0
      %p176 = por %p174, %p175
      %p177 = scmp.ne.s32.totalorder %s169, %s171
      %p178 = scmp.eq.s32.totalorder %s35, 1
      %p179 = por %p177, %p178
      %p180 = scmp.ne.s32.totalorder %s171, %s172
      %p181 = scmp.eq.s32.totalorder %s35, 0
      %p182 = por %p180, %p181
      %p183 = scmp.ne.s32.totalorder %s171, %s172
      %p184 = scmp.eq.s32.totalorder %s36, 1
      %p185 = por %p183, %p184
      %p187 = scmp.ne.s32.totalorder %s172, %s186
      %p188 = scmp.eq.s32.totalorder %s36, 0
      %p189 = por %p187, %p188
      %s191 = sadd.s32 %s190, 1
      %p194 = scmp.eq.s32.totalorder %s30, 1
      %p195 = scmp.ne.s32.totalorder %s190, %s192
      %p196 = scmp.eq.s32.totalorder %s30, 0
      %p197 = por %p195, %p196
      %p198 = scmp.ne.s32.totalorder %s190, %s192
      %p199 = scmp.eq.s32.totalorder %s35, 1
      %p200 = por %p198, %p199
      %p201 = scmp.ne.s32.totalorder %s192, %s193
      %p202 = scmp.eq.s32.totalorder %s35, 0
      %p203 = por %p201, %p202
      %p204 = scmp.ne.s32.totalorder %s192, %s193
      %p205 = scmp.eq.s32.totalorder %s36, 1
      %p206 = por %p204, %p205
      %p208 = scmp.ne.s32.totalorder %s193, %s207
      %p209 = scmp.eq.s32.totalorder %s36, 0
      %p210 = por %p208, %p209
      %s212 = sadd.s32 %s211, 1
      %p215 = scmp.eq.s32.totalorder %s30, 1
      %p216 = scmp.ne.s32.totalorder %s211, %s213
      %p217 = scmp.eq.s32.totalorder %s30, 0
      %p218 = por %p216, %p217
      %p219 = scmp.ne.s32.totalorder %s211, %s213
      %p220 = scmp.eq.s32.totalorder %s35, 1
      %p221 = por %p219, %p220
      %p222 = scmp.ne.s32.totalorder %s213, %s214
      %p223 = scmp.eq.s32.totalorder %s35, 0
      %p224 = por %p222, %p223
      %p225 = scmp.ne.s32.totalorder %s213, %s214
      %p226 = scmp.eq.s32.totalorder %s36, 1
      %p227 = por %p225, %p226
      %p229 = scmp.ne.s32.totalorder %s214, %s228
      %p230 = scmp.eq.s32.totalorder %s36, 0
      %p231 = por %p229, %p230
      %s232 = ssub.s32 %s30, %s37
      %p233 = scmp.eq.s32.totalorder %s232, 0
      %s235 = sadd.s32 %s234, 1
      %s236 = scalar_select %p233, %s234, %s235
      %p239 = pneg %p233
      %p240 = scmp.eq.s32.totalorder %s30, 1
      %p241 = por %p239, %p240
      %p242 = scmp.ne.s32.totalorder %s234, %s237
      %p243 = scmp.eq.s32.totalorder %s30, 0
      %p244 = por %p242, %p243
      %p245 = scmp.ne.s32.totalorder %s234, %s237
      %p246 = scmp.eq.s32.totalorder %s35, 1
      %p247 = por %p245, %p246
      %p248 = scmp.ne.s32.totalorder %s237, %s238
      %p249 = scmp.eq.s32.totalorder %s35, 0
      %p250 = por %p248, %p249
      %p251 = scmp.ne.s32.totalorder %s237, %s238
      %p252 = scmp.eq.s32.totalorder %s36, 1
      %p253 = por %p251, %p252
      %p255 = scmp.ne.s32.totalorder %s238, %s254
      %p256 = scmp.eq.s32.totalorder %s36, 0
      %p257 = por %p255, %p256
      %s258 = ssub.s32 %s30, %s37
      %p259 = scmp.eq.s32.totalorder %s258, 0
      %s261 = sadd.s32 %s260, 1
      %s262 = scalar_select %p259, %s260, %s261
      %p265 = pneg %p259
      %p266 = scmp.eq.s32.totalorder %s30, 1
      %p267 = por %p265, %p266
      %p268 = scmp.ne.s32.totalorder %s260, %s263
      %p269 = scmp.eq.s32.totalorder %s30, 0
      %p270 = por %p268, %p269
      %p271 = scmp.ne.s32.totalorder %s260, %s263
      %p272 = scmp.eq.s32.totalorder %s35, 1
      %p273 = por %p271, %p272
      %p274 = scmp.ne.s32.totalorder %s263, %s264
      %p275 = scmp.eq.s32.totalorder %s35, 0
      %p276 = por %p274, %p275
      %p277 = scmp.ne.s32.totalorder %s263, %s264
      %p278 = scmp.eq.s32.totalorder %s36, 1
      %p279 = por %p277, %p278
      %p281 = scmp.ne.s32.totalorder %s264, %s280
      %p282 = scmp.eq.s32.totalorder %s36, 0
      %p283 = por %p281, %p282
      %s285 = sadd.s32 %s284, 1
      %p288 = scmp.eq.s32.totalorder %s30, 1
      %p289 = scmp.ne.s32.totalorder %s284, %s286
      %p290 = scmp.eq.s32.totalorder %s30, 0
      %p291 = por %p289, %p290
      %p292 = scmp.ne.s32.totalorder %s284, %s286
      %p293 = scmp.eq.s32.totalorder %s35, 1
      %p294 = por %p292, %p293
      %p295 = scmp.ne.s32.totalorder %s286, %s287
      %p296 = scmp.eq.s32.totalorder %s35, 0
      %p297 = por %p295, %p296
      %p298 = scmp.ne.s32.totalorder %s286, %s287
      %p299 = scmp.eq.s32.totalorder %s36, 1
      %p300 = por %p298, %p299
      %p302 = scmp.ne.s32.totalorder %s287, %s301
      %p303 = scmp.eq.s32.totalorder %s36, 0
      %p304 = por %p302, %p303
      %s306 = sadd.s32 %s305, 1
      %p309 = scmp.eq.s32.totalorder %s30, 1
      %p310 = scmp.ne.s32.totalorder %s305, %s307
      %p311 = scmp.eq.s32.totalorder %s30, 0
      %p312 = por %p310, %p311
      %p313 = scmp.ne.s32.totalorder %s305, %s307
      %p314 = scmp.eq.s32.totalorder %s35, 1
      %p315 = por %p313, %p314
      %p316 = scmp.ne.s32.totalorder %s307, %s308
      %p317 = scmp.eq.s32.totalorder %s35, 0
      %p318 = por %p316, %p317
      %p319 = scmp.ne.s32.totalorder %s307, %s308
      %p320 = scmp.eq.s32.totalorder %s36, 1
      %p321 = por %p319, %p320
      %p323 = scmp.ne.s32.totalorder %s308, %s322
      %p324 = scmp.eq.s32.totalorder %s36, 0
      %p325 = por %p323, %p324
      %s326 = ssub.s32 %s30, %s37
      %p327 = scmp.eq.s32.totalorder %s326, 0
      %s329 = sadd.s32 %s328, 1
      %s330 = scalar_select %p327, %s328, %s329
      %p333 = pneg %p327
      %p334 = scmp.eq.s32.totalorder %s30, 1
      %p335 = por %p333, %p334
      %p336 = scmp.ne.s32.totalorder %s328, %s331
      %p337 = scmp.eq.s32.totalorder %s30, 0
      %p338 = por %p336, %p337
      %p339 = scmp.ne.s32.totalorder %s328, %s331
      %p340 = scmp.eq.s32.totalorder %s35, 1
      %p341 = por %p339, %p340
      %p342 = scmp.ne.s32.totalorder %s331, %s332
      %p343 = scmp.eq.s32.totalorder %s35, 0
      %p344 = por %p342, %p343
      %p345 = scmp.ne.s32.totalorder %s331, %s332
      %p346 = scmp.eq.s32.totalorder %s36, 1
      %p347 = por %p345, %p346
      %p349 = scmp.ne.s32.totalorder %s332, %s348
      %p350 = scmp.eq.s32.totalorder %s36, 0
      %p351 = por %p349, %p350
      %p352 = scmp.le.s32.totalorder 1, %s30
      %p353 = scmp.lt.s32.totalorder %s30, 3
      %p354 = pnand %p352, %p353
      %p355 = pneg %p354
      // Predicated region
      $region9: #{tpu_custom_call.1} parent=5 // pred_check
        _
      $region10: #{tpu_custom_call.1} parent=5 // pred_check_branch
        %357 = sbr.rel (%p354) target = $region12
      $region11: #{tpu_custom_call.1} parent=5 // pred_region
        %s358 = ssub.s32 %s30, 1
        // Predicated region
        $region13: #{tpu_custom_call.1} parent=11 // pred_check
          %p359 = pneg %p77
        $region14: #{tpu_custom_call.1} parent=11 // pred_check_branch
          %361 = sbr.rel (%p359) target = $region16
        $region15: #{tpu_custom_call.1} parent=11 // pred_region
          %363 = vsyncadd [#allocation7], 0
          %s364 = sshll.u32 %s1, 4
          %s365 = int_to_ptr.hbm [resolvable:$true] %s364
          %s366 = sshll.u32 [#allocation6], 4
          %s367 = int_to_ptr.vmem [resolvable:$true] %s366
          %372 = dma.hbm_to_vmem [thread:$0]  %s365, 6144, %s367, [#allocation7], 128, 128, 8
        $region16: #{tpu_custom_call.1} parent=11 // pred_fallthru
          _
        // Predicated region
        $region17: #{tpu_custom_call.1} parent=11 // pred_check
          %p373 = pneg %p98
        $region18: #{tpu_custom_call.1} parent=11 // pred_check_branch
          %375 = sbr.rel (%p373) target = $region20
        $region19: #{tpu_custom_call.1} parent=11 // pred_region
          %377 = vsyncadd [#allocation7], 0
          %s379 = sshll.u32 %s2, 4
          %s380 = int_to_ptr.hbm [resolvable:$true] %s379
          %s381 = sshll.u32 [#allocation8], 4
          %s382 = int_to_ptr.vmem [resolvable:$true] %s381
          %384 = dma.hbm_to_vmem [thread:$0]  %s380, 16, %s382, [#allocation7]
        $region20: #{tpu_custom_call.1} parent=11 // pred_fallthru
          _
        // Predicated region
        $region21: #{tpu_custom_call.1} parent=11 // pred_check
          %p385 = pneg %p119
        $region22: #{tpu_custom_call.1} parent=11 // pred_check_branch
          %387 = sbr.rel (%p385) target = $region24
        $region23: #{tpu_custom_call.1} parent=11 // pred_region
          %389 = vsyncadd [#allocation10], 0
          %s390 = sshll.u32 %s3, 4
          %s391 = int_to_ptr.hbm [resolvable:$true] %s390
          %s392 = sshll.u32 [#allocation9], 4
          %s393 = int_to_ptr.vmem [resolvable:$true] %s392
          %398 = dma.hbm_to_vmem [thread:$0]  %s391, 36864, %s393, [#allocation10], 128, 128, 8
        $region24: #{tpu_custom_call.1} parent=11 // pred_fallthru
          _
        // Predicated region
        $region25: #{tpu_custom_call.1} parent=11 // pred_check
          %p399 = pneg %p140
        $region26: #{tpu_custom_call.1} parent=11 // pred_check_branch
          %401 = sbr.rel (%p399) target = $region28
        $region27: #{tpu_custom_call.1} parent=11 // pred_region
          %403 = vsyncadd [#allocation10], 0
          %s404 = sshll.u32 %s4, 4
          %s405 = int_to_ptr.hbm [resolvable:$true] %s404
          %s406 = sshll.u32 [#allocation11], 4
          %s407 = int_to_ptr.vmem [resolvable:$true] %s406
          %412 = dma.hbm_to_vmem [thread:$0]  %s405, 96, %s407, [#allocation10], 16, 16, 1
        $region28: #{tpu_custom_call.1} parent=11 // pred_fallthru
          _
        // Predicated region
        $region29: #{tpu_custom_call.1} parent=11 // pred_check
          %p413 = pneg %p161
        $region30: #{tpu_custom_call.1} parent=11 // pred_check_branch
          %415 = sbr.rel (%p413) target = $region32
        $region31: #{tpu_custom_call.1} parent=11 // pred_region
          %417 = vsyncadd [#allocation13], 0
          %s418 = sshll.u32 %s5, 4
          %s419 = int_to_ptr.hbm [resolvable:$true] %s418
          %s420 = sshll.u32 [#allocation12], 4
          %s421 = int_to_ptr.vmem [resolvable:$true] %s420
          %426 = dma.hbm_to_vmem [thread:$0]  %s419, 12288, %s421, [#allocation13], 128, 128, 8
        $region32: #{tpu_custom_call.1} parent=11 // pred_fallthru
          _
        // Predicated region
        $region33: #{tpu_custom_call.1} parent=11 // pred_check
          %p427 = pneg %p182
        $region34: #{tpu_custom_call.1} parent=11 // pred_check_branch
          %429 = sbr.rel (%p427) target = $region36
        $region35: #{tpu_custom_call.1} parent=11 // pred_region
          %431 = vsyncadd [#allocation13], 0
          %s432 = sshll.u32 %s6, 4
          %s433 = int_to_ptr.hbm [resolvable:$true] %s432
          %s434 = sshll.u32 [#allocation14], 4
          %s435 = int_to_ptr.vmem [resolvable:$true] %s434
          %440 = dma.hbm_to_vmem [thread:$0]  %s433, 96, %s435, [#allocation13], 16, 16, 1
        $region36: #{tpu_custom_call.1} parent=11 // pred_fallthru
          _
        // Predicated region
        $region37: #{tpu_custom_call.1} parent=11 // pred_check
          %p441 = pneg %p203
        $region38: #{tpu_custom_call.1} parent=11 // pred_check_branch
          %443 = sbr.rel (%p441) target = $region40
        $region39: #{tpu_custom_call.1} parent=11 // pred_region
          %445 = vsyncadd [#allocation16], 0
          %s446 = sshll.u32 %s7, 4
          %s447 = int_to_ptr.hbm [resolvable:$true] %s446
          %s448 = sshll.u32 [#allocation15], 4
          %s449 = int_to_ptr.vmem [resolvable:$true] %s448
          %454 = dma.hbm_to_vmem [thread:$0]  %s447, 6144, %s449, [#allocation16], 128, 128, 8
        $region40: #{tpu_custom_call.1} parent=11 // pred_fallthru
          _
        // Predicated region
        $region41: #{tpu_custom_call.1} parent=11 // pred_check
          %p455 = pneg %p224
        $region42: #{tpu_custom_call.1} parent=11 // pred_check_branch
          %457 = sbr.rel (%p455) target = $region44
        $region43: #{tpu_custom_call.1} parent=11 // pred_region
          %459 = vsyncadd [#allocation16], 0
          %s460 = sshll.u32 %s8, 4
          %s461 = int_to_ptr.hbm [resolvable:$true] %s460
          %s462 = sshll.u32 [#allocation17], 4
          %s463 = int_to_ptr.vmem [resolvable:$true] %s462
          %468 = dma.hbm_to_vmem [thread:$0]  %s461, 48, %s463, [#allocation16], 16, 16, 1
        $region44: #{tpu_custom_call.1} parent=11 // pred_fallthru
          _
        // Predicated region
        $region45: #{tpu_custom_call.1} parent=11 // pred_check
          %p469 = pneg %p297
        $region46: #{tpu_custom_call.1} parent=11 // pred_check_branch
          %471 = sbr.rel (%p469) target = $region48
        $region47: #{tpu_custom_call.1} parent=11 // pred_region
          %473 = vsyncadd [#allocation19], 0
          %s474 = sshll.u32 %s11, 4
          %s475 = int_to_ptr.hbm [resolvable:$true] %s474
          %s476 = sshll.u32 [#allocation18], 4
          %s477 = int_to_ptr.vmem [resolvable:$true] %s476
          %482 = dma.hbm_to_vmem [thread:$0]  %s475, 2048, %s477, [#allocation19], 128, 128, 8
        $region48: #{tpu_custom_call.1} parent=11 // pred_fallthru
          _
        // Predicated region
        $region49: #{tpu_custom_call.1} parent=11 // pred_check
          %p483 = pneg %p318
        $region50: #{tpu_custom_call.1} parent=11 // pred_check_branch
          %485 = sbr.rel (%p483) target = $region52
        $region51: #{tpu_custom_call.1} parent=11 // pred_region
          %487 = vsyncadd [#allocation19], 0
          %s489 = sshll.u32 %s12, 4
          %s490 = int_to_ptr.hbm [resolvable:$true] %s489
          %s491 = sshll.u32 [#allocation20], 4
          %s492 = int_to_ptr.vmem [resolvable:$true] %s491
          %494 = dma.hbm_to_vmem [thread:$0]  %s490, 16, %s492, [#allocation19]
        $region52: #{tpu_custom_call.1} parent=11 // pred_fallthru
          _
      $region12: #{tpu_custom_call.1} parent=5 // pred_fallthru
        _
      %p495 = scmp.lt.s32.totalorder %s30, 2
      // Predicated region
      $region53: #{tpu_custom_call.1} parent=5 // pred_check
        %p496 = pneg %p495
      $region54: #{tpu_custom_call.1} parent=5 // pred_check_branch
        %498 = sbr.rel (%p496) target = $region56
      $region55: #{tpu_custom_call.1} parent=5 // pred_region
        // Predicated region
        $region57: #{tpu_custom_call.1} parent=55 // pred_check
          %p499 = pneg %p50
        $region58: #{tpu_custom_call.1} parent=55 // pred_check_branch
          %501 = sbr.rel (%p499) target = $region60
        $region59: #{tpu_custom_call.1} parent=55 // pred_region
          %s502 = sand.u32 %s40, 1
          %s503 = scalar_lea.sflag [#allocation4], %s502
          %s504 = sand.u32 %s40, 1
          %s505 = smul.addr %s504, 64
          %s506 = scalar_lea.vmem [#allocation3], %s505
          %508 = vsyncadd %s503, 0
          %s509 = smul.addr %s30, 8
          %s510 = smul.addr %s509, 8
          %s511 = scalar_lea.hbm %s0, %s510
          %s512 = sshll.u32 %s511, 4
          %s513 = int_to_ptr.hbm [resolvable:$true] %s512
          %s514 = sshll.u32 %s506, 4
          %s515 = int_to_ptr.vmem [resolvable:$true] %s514
          %520 = dma.hbm_to_vmem [thread:$0]  %s513, 1024, %s515, %s503, 128, 128, 8
        $region60: #{tpu_custom_call.1} parent=55 // pred_fallthru
          _
        // Predicated region
        $region61: #{tpu_custom_call.1} parent=55 // pred_check
          %p521 = pneg %p244
        $region62: #{tpu_custom_call.1} parent=55 // pred_check_branch
          %523 = sbr.rel (%p521) target = $region64
        $region63: #{tpu_custom_call.1} parent=55 // pred_region
          %p524 = scmp.lt.s32.totalorder %s30, 1
          %s525 = scalar_select %p524, %s30, 1
          %s526 = smul.addr %s525, 8
          %s527 = scalar_lea.vmem %s9, %s526
        $region64: #{tpu_custom_call.1} parent=55 // pred_fallthru
          _
        // Predicated region
        $region65: #{tpu_custom_call.1} parent=55 // pred_check
          %p528 = pneg %p270
        $region66: #{tpu_custom_call.1} parent=55 // pred_check_branch
          %530 = sbr.rel (%p528) target = $region68
        $region67: #{tpu_custom_call.1} parent=55 // pred_region
          %p531 = scmp.lt.s32.totalorder %s30, 1
          %s532 = scalar_select %p531, %s30, 1
          %s533 = smul.addr %s532, 8
          %s534 = scalar_lea.vmem %s10, %s533
        $region68: #{tpu_custom_call.1} parent=55 // pred_fallthru
          _
      $region56: #{tpu_custom_call.1} parent=5 // pred_fallthru
        _
      %p535 = scmp.le.s32.totalorder 1, %s30
      %p536 = scmp.lt.s32.totalorder %s30, 3
      %p537 = pnand %p535, %p536
      %p538 = pneg %p537
      // Predicated region
      $region69: #{tpu_custom_call.1} parent=5 // pred_check
        _
      $region70: #{tpu_custom_call.1} parent=5 // pred_check_branch
        %540 = sbr.rel (%p537) target = $region72
      $region71: #{tpu_custom_call.1} parent=5 // pred_region
        %s541 = ssub.s32 %s30, 1
        %s542 = sand.u32 %s43, 1
        %s543 = scalar_lea.sflag [#allocation4], %s542
        %s544 = sand.u32 %s43, 1
        %s545 = smul.addr %s544, 64
        %s546 = scalar_lea.vmem [#allocation3], %s545
        // Predicated region
        $region73: #{tpu_custom_call.1} parent=71 // pred_check
          %p547 = pneg %p56
        $region74: #{tpu_custom_call.1} parent=71 // pred_check_branch
          %549 = sbr.rel (%p547) target = $region76
        $region75: #{tpu_custom_call.1} parent=71 // pred_region
          %551 = dma.done %s543, 1024
        $region76: #{tpu_custom_call.1} parent=71 // pred_fallthru
          _
        // Predicated region
        $region77: #{tpu_custom_call.1} parent=71 // pred_check
          %p552 = pneg %p77
        $region78: #{tpu_custom_call.1} parent=71 // pred_check_branch
          %554 = sbr.rel (%p552) target = $region80
        $region79: #{tpu_custom_call.1} parent=71 // pred_region
          %556 = dma.done [#allocation7], 6144
        $region80: #{tpu_custom_call.1} parent=71 // pred_fallthru
          _
        // Predicated region
        $region81: #{tpu_custom_call.1} parent=71 // pred_check
          %p557 = pneg %p98
        $region82: #{tpu_custom_call.1} parent=71 // pred_check_branch
          %559 = sbr.rel (%p557) target = $region84
        $region83: #{tpu_custom_call.1} parent=71 // pred_region
          %561 = dma.done [#allocation7], 16
        $region84: #{tpu_custom_call.1} parent=71 // pred_fallthru
          _
        // Predicated region
        $region85: #{tpu_custom_call.1} parent=71 // pred_check
          %p562 = pneg %p119
        $region86: #{tpu_custom_call.1} parent=71 // pred_check_branch
          %564 = sbr.rel (%p562) target = $region88
        $region87: #{tpu_custom_call.1} parent=71 // pred_region
          %566 = dma.done [#allocation10], 36864
        $region88: #{tpu_custom_call.1} parent=71 // pred_fallthru
          _
        // Predicated region
        $region89: #{tpu_custom_call.1} parent=71 // pred_check
          %p567 = pneg %p140
        $region90: #{tpu_custom_call.1} parent=71 // pred_check_branch
          %569 = sbr.rel (%p567) target = $region92
        $region91: #{tpu_custom_call.1} parent=71 // pred_region
          %571 = dma.done [#allocation10], 96
        $region92: #{tpu_custom_call.1} parent=71 // pred_fallthru
          _
        // Predicated region
        $region93: #{tpu_custom_call.1} parent=71 // pred_check
          %p572 = pneg %p161
        $region94: #{tpu_custom_call.1} parent=71 // pred_check_branch
          %574 = sbr.rel (%p572) target = $region96
        $region95: #{tpu_custom_call.1} parent=71 // pred_region
          %576 = dma.done [#allocation13], 12288
        $region96: #{tpu_custom_call.1} parent=71 // pred_fallthru
          _
        // Predicated region
        $region97: #{tpu_custom_call.1} parent=71 // pred_check
          %p577 = pneg %p182
        $region98: #{tpu_custom_call.1} parent=71 // pred_check_branch
          %579 = sbr.rel (%p577) target = $region100
        $region99: #{tpu_custom_call.1} parent=71 // pred_region
          %581 = dma.done [#allocation13], 96
        $region100: #{tpu_custom_call.1} parent=71 // pred_fallthru
          _
        // Predicated region
        $region101: #{tpu_custom_call.1} parent=71 // pred_check
          %p582 = pneg %p203
        $region102: #{tpu_custom_call.1} parent=71 // pred_check_branch
          %584 = sbr.rel (%p582) target = $region104
        $region103: #{tpu_custom_call.1} parent=71 // pred_region
          %586 = dma.done [#allocation16], 6144
        $region104: #{tpu_custom_call.1} parent=71 // pred_fallthru
          _
        // Predicated region
        $region105: #{tpu_custom_call.1} parent=71 // pred_check
          %p587 = pneg %p224
        $region106: #{tpu_custom_call.1} parent=71 // pred_check_branch
          %589 = sbr.rel (%p587) target = $region108
        $region107: #{tpu_custom_call.1} parent=71 // pred_region
          %591 = dma.done [#allocation16], 48
        $region108: #{tpu_custom_call.1} parent=71 // pred_fallthru
          _
        // Predicated region
        $region109: #{tpu_custom_call.1} parent=71 // pred_check
          %p592 = pneg %p297
        $region110: #{tpu_custom_call.1} parent=71 // pred_check_branch
          %594 = sbr.rel (%p592) target = $region112
        $region111: #{tpu_custom_call.1} parent=71 // pred_region
          %596 = dma.done [#allocation19], 2048
        $region112: #{tpu_custom_call.1} parent=71 // pred_fallthru
          _
        // Predicated region
        $region113: #{tpu_custom_call.1} parent=71 // pred_check
          %p597 = pneg %p318
        $region114: #{tpu_custom_call.1} parent=71 // pred_check_branch
          %599 = sbr.rel (%p597) target = $region116
        $region115: #{tpu_custom_call.1} parent=71 // pred_region
          %601 = dma.done [#allocation19], 16
        $region116: #{tpu_custom_call.1} parent=71 // pred_fallthru
          _
        %s602 = sand.u32 %s43, 1
        %s603 = scalar_lea.sflag [#allocation4], %s602
        %s604 = sand.u32 %s43, 1
        %s605 = smul.addr %s604, 64
        %s606 = scalar_lea.vmem [#allocation3], %s605
        %p607 = pneg %p56
        %p608 = pneg %p53
        %p609 = pneg %p77
        %p610 = pneg %p74
        %p611 = pneg %p98
        %p612 = pneg %p95
        %p613 = pneg %p119
        %p614 = pneg %p116
        %p615 = pneg %p140
        %p616 = pneg %p137
        %p617 = pneg %p161
        %p618 = pneg %p158
        %p619 = pneg %p182
        %p620 = pneg %p179
        %p621 = pneg %p203
        %p622 = pneg %p200
        %p623 = pneg %p224
        %p624 = pneg %p221
        %p625 = scmp.lt.s32.totalorder %s35, 1
        %s626 = scalar_select %p625, %s35, 1
        %s627 = smul.addr %s626, 8
        %s628 = scalar_lea.vmem %s9, %s627
        %p629 = pneg %p250
        %p630 = pneg %p247
        %p631 = scmp.lt.s32.totalorder %s35, 1
        %s632 = scalar_select %p631, %s35, 1
        %s633 = smul.addr %s632, 8
        %s634 = scalar_lea.vmem %s10, %s633
        %p635 = pneg %p276
        %p636 = pneg %p273
        %p637 = pneg %p297
        %p638 = pneg %p294
        %p639 = pneg %p318
        %p640 = pneg %p315
        %p641 = pneg %p344
        %p642 = pneg %p341
        %s643 = sand.u32 %s331, 1
        %s644 = scalar_lea.sflag [#allocation5], %s643
        %s645 = sand.u32 %s331, 1
        %s646 = smul.addr %s645, 64
        %s647 = scalar_lea.vmem [#allocation21], %s646
        %p648 = scmp.lt.s32.totalorder %s35, 1
        %s649 = scalar_select %p648, %s35, 1
        %s650 = smul.addr %s649, 8
        %s651 = scalar_lea.vmem %s9, %s650
        %p652 = scmp.lt.s32.totalorder %s35, 1
        %s653 = scalar_select %p652, %s35, 1
        %s654 = smul.addr %s653, 8
        %s655 = scalar_lea.vmem %s10, %s654
        %656 = vst [vmem:[#allocation2] sm:$0xff] 0.0
        %v657 = vld [vmem:[%s651] sm:$0x3f]
        %v658 = vld [vmem:[%s655] sm:$0x3f]
        %v659 = vld [vmem:[%s546] sm:$0xff]
        %v660 = vld [vmem:[%s546 + $0x8] sm:$0xff]
        %v661 = vld [vmem:[%s546 + $0x10] sm:$0xff]
        %v662 = vld [vmem:[%s546 + $0x18] sm:$0xff]
        %v663 = vld [vmem:[%s546 + $0x20] sm:$0xff]
        %v664 = vld [vmem:[%s546 + $0x28] sm:$0xff]
        %v665 = vld [vmem:[%s546 + $0x30] sm:$0xff]
        %v666 = vld [vmem:[%s546 + $0x38] sm:$0xff]
        %v667 = vld [vmem:[#allocation6] sm:$0xff]
        %v668 = vld [vmem:[#allocation6 + $0x8] sm:$0xff]
        %v669 = vld [vmem:[#allocation6 + $0x10] sm:$0xff]
        %v670 = vld [vmem:[#allocation6 + $0x18] sm:$0xff]
        %v671 = vld [vmem:[#allocation6 + $0x20] sm:$0xff]
        %v672 = vld [vmem:[#allocation6 + $0x28] sm:$0xff]
        %v673 = vld [vmem:[#allocation6 + $0x30] sm:$0xff]
        %v674 = vld [vmem:[#allocation6 + $0x38] sm:$0xff]
        %v675 = vld [vmem:[#allocation6 + $0x40] sm:$0xff]
        %v676 = vld [vmem:[#allocation6 + $0x48] sm:$0xff]
        %v677 = vld [vmem:[#allocation6 + $0x50] sm:$0xff]
        %v678 = vld [vmem:[#allocation6 + $0x58] sm:$0xff]
        %v679 = vld [vmem:[#allocation6 + $0x60] sm:$0xff]
        %v680 = vld [vmem:[#allocation6 + $0x68] sm:$0xff]
        %v681 = vld [vmem:[#allocation6 + $0x70] sm:$0xff]
        %v682 = vld [vmem:[#allocation6 + $0x78] sm:$0xff]
        %v683 = vld [vmem:[#allocation6 + $0x80] sm:$0xff]
        %v684 = vld [vmem:[#allocation6 + $0x88] sm:$0xff]
        %v685 = vld [vmem:[#allocation6 + $0x90] sm:$0xff]
        %v686 = vld [vmem:[#allocation6 + $0x98] sm:$0xff]
        %v687 = vld [vmem:[#allocation6 + $0xa0] sm:$0xff]
        %v688 = vld [vmem:[#allocation6 + $0xa8] sm:$0xff]
        %v689 = vld [vmem:[#allocation6 + $0xb0] sm:$0xff]
        %v690 = vld [vmem:[#allocation6 + $0xb8] sm:$0xff]
        %v691 = vld [vmem:[#allocation6 + $0xc0] sm:$0xff]
        %v692 = vld [vmem:[#allocation6 + $0xc8] sm:$0xff]
        %v693 = vld [vmem:[#allocation6 + $0xd0] sm:$0xff]
        %v694 = vld [vmem:[#allocation6 + $0xd8] sm:$0xff]
        %v695 = vld [vmem:[#allocation6 + $0xe0] sm:$0xff]
        %v696 = vld [vmem:[#allocation6 + $0xe8] sm:$0xff]
        %v697 = vld [vmem:[#allocation6 + $0xf0] sm:$0xff]
        %v698 = vld [vmem:[#allocation6 + $0xf8] sm:$0xff]
        %v699 = vld [vmem:[#allocation6 + $0x100] sm:$0xff]
        %v700 = vld [vmem:[#allocation6 + $0x108] sm:$0xff]
        %v701 = vld [vmem:[#allocation6 + $0x110] sm:$0xff]
        %v702 = vld [vmem:[#allocation6 + $0x118] sm:$0xff]
        %v703 = vld [vmem:[#allocation6 + $0x120] sm:$0xff]
        %v704 = vld [vmem:[#allocation6 + $0x128] sm:$0xff]
        %v705 = vld [vmem:[#allocation6 + $0x130] sm:$0xff]
        %v706 = vld [vmem:[#allocation6 + $0x138] sm:$0xff]
        %v707 = vld [vmem:[#allocation6 + $0x140] sm:$0xff]
        %v708 = vld [vmem:[#allocation6 + $0x148] sm:$0xff]
        %v709 = vld [vmem:[#allocation6 + $0x150] sm:$0xff]
        %v710 = vld [vmem:[#allocation6 + $0x158] sm:$0xff]
        %v711 = vld [vmem:[#allocation6 + $0x160] sm:$0xff]
        %v712 = vld [vmem:[#allocation6 + $0x168] sm:$0xff]
        %v713 = vld [vmem:[#allocation6 + $0x170] sm:$0xff]
        %v714 = vld [vmem:[#allocation6 + $0x178] sm:$0xff]
        %v715 = vld [vmem:[#allocation8] sm:$0x1]
        %716 = vst [vmem:[#allocation2 + $0x8] sm:$0xff] %v659
        %717 = vst [vmem:[#allocation2 + $0x10] sm:$0xff] %v660
        %718 = vst [vmem:[#allocation2 + $0x18] sm:$0xff] %v661
        %719 = vst [vmem:[#allocation2 + $0x20] sm:$0xff] %v662
        %720 = vst [vmem:[#allocation2 + $0x28] sm:$0xff] %v663
        %721 = vst [vmem:[#allocation2 + $0x30] sm:$0xff] %v664
        %722 = vst [vmem:[#allocation2 + $0x38] sm:$0xff] %v665
        %723 = vst [vmem:[#allocation2 + $0x40] sm:$0xff] %v666
        %v724 = vld [vmem:[#allocation2 + $0x6] sm:$0xff]
        %v725 = vld [vmem:[#allocation2 + $0xe] sm:$0xff]
        %v726 = vld [vmem:[#allocation2 + $0x16] sm:$0xff]
        %v727 = vld [vmem:[#allocation2 + $0x1e] sm:$0xff]
        %v728 = vld [vmem:[#allocation2 + $0x26] sm:$0xff]
        %v729 = vld [vmem:[#allocation2 + $0x2e] sm:$0xff]
        %v730 = vld [vmem:[#allocation2 + $0x36] sm:$0xff]
        %v731 = vld [vmem:[#allocation2 + $0x3e] sm:$0xff]
        %v732 = vld [vmem:[#allocation2 + $0x7] sm:$0xff]
        %v733 = vld [vmem:[#allocation2 + $0xf] sm:$0xff]
        %v734 = vld [vmem:[#allocation2 + $0x17] sm:$0xff]
        %v735 = vld [vmem:[#allocation2 + $0x1f] sm:$0xff]
        %v736 = vld [vmem:[#allocation2 + $0x27] sm:$0xff]
        %v737 = vld [vmem:[#allocation2 + $0x2f] sm:$0xff]
        %v738 = vld [vmem:[#allocation2 + $0x37] sm:$0xff]
        %v739 = vld [vmem:[#allocation2 + $0x3f] sm:$0xff]
        %v740 = vld [vmem:[#allocation2 + $0x8] sm:$0xff]
        %v741 = vld [vmem:[#allocation2 + $0x10] sm:$0xff]
        %v742 = vld [vmem:[#allocation2 + $0x18] sm:$0xff]
        %v743 = vld [vmem:[#allocation2 + $0x20] sm:$0xff]
        %v744 = vld [vmem:[#allocation2 + $0x28] sm:$0xff]
        %v745 = vld [vmem:[#allocation2 + $0x30] sm:$0xff]
        %v746 = vld [vmem:[#allocation2 + $0x38] sm:$0xff]
        %v747 = vld [vmem:[#allocation2 + $0x40] sm:$0xff]
        %v749 = vperm.slane %v715, 0
        %751 = vmatpush.msra.mxu0 %v682
        %752 = vmatpush.msra.mxu0 %v681
        %753 = vmatpush.msra.mxu0 %v680
        %754 = vmatpush.msra.mxu0 %v679
        %755 = vmatpush.msra.mxu0 %v678
        %756 = vmatpush.msra.mxu0 %v677
        %757 = vmatpush.msra.mxu0 %v676
        %758 = vmatpush.msra.mxu0 %v675
        %759 = vmatpush.msra.mxu0 %v674
        %760 = vmatpush.msra.mxu0 %v673
        %761 = vmatpush.msra.mxu0 %v672
        %762 = vmatpush.msra.mxu0 %v671
        %763 = vmatpush.msra.mxu0 %v670
        %764 = vmatpush.msra.mxu0 %v669
        %765 = vmatpush.msra.mxu0 %v668
        %766 = vmatpush.msra.mxu0 %v667
        %767 = vmatmul.f32.gmra.mxu0 %v724
        %v768 = vpop.f32.mrf.mxu0
        %v769 = vadd.f32 %v749, %v768
        %770 = vmatmul.f32.gmra.mxu0 %v725
        %v771 = vpop.f32.mrf.mxu0
        %v772 = vadd.f32 %v749, %v771
        %773 = vmatmul.f32.gmra.mxu0 %v726
        %v774 = vpop.f32.mrf.mxu0
        %v775 = vadd.f32 %v749, %v774
        %776 = vmatmul.f32.gmra.mxu0 %v727
        %v777 = vpop.f32.mrf.mxu0
        %v778 = vadd.f32 %v749, %v777
        %779 = vmatmul.f32.gmra.mxu0 %v728
        %v780 = vpop.f32.mrf.mxu0
        %v781 = vadd.f32 %v749, %v780
        %782 = vmatmul.f32.gmra.mxu0 %v729
        %v783 = vpop.f32.mrf.mxu0
        %v784 = vadd.f32 %v749, %v783
        %785 = vmatmul.f32.gmra.mxu0 %v730
        %v786 = vpop.f32.mrf.mxu0
        %v787 = vadd.f32 %v749, %v786
        %788 = vmatmul.f32.gmra.mxu0 %v731
        %v789 = vpop.f32.mrf.mxu0
        %v790 = vadd.f32 %v749, %v789
        %791 = vdwg.mxu0
        %792 = vmatpush.msra.mxu0 %v698
        %793 = vmatpush.msra.mxu0 %v697
        %794 = vmatpush.msra.mxu0 %v696
        %795 = vmatpush.msra.mxu0 %v695
        %796 = vmatpush.msra.mxu0 %v694
        %797 = vmatpush.msra.mxu0 %v693
        %798 = vmatpush.msra.mxu0 %v692
        %799 = vmatpush.msra.mxu0 %v691
        %800 = vmatpush.msra.mxu0 %v690
        %801 = vmatpush.msra.mxu0 %v689
        %802 = vmatpush.msra.mxu0 %v688
        %803 = vmatpush.msra.mxu0 %v687
        %804 = vmatpush.msra.mxu0 %v686
        %805 = vmatpush.msra.mxu0 %v685
        %806 = vmatpush.msra.mxu0 %v684
        %807 = vmatpush.msra.mxu0 %v683
        %808 = vmatmul.f32.gmra.mxu0 %v732
        %v809 = vpop.f32.mrf.mxu0
        %v810 = vadd.f32 %v769, %v809
        %811 = vmatmul.f32.gmra.mxu0 %v733
        %v812 = vpop.f32.mrf.mxu0
        %v813 = vadd.f32 %v772, %v812
        %814 = vmatmul.f32.gmra.mxu0 %v734
        %v815 = vpop.f32.mrf.mxu0
        %v816 = vadd.f32 %v775, %v815
        %817 = vmatmul.f32.gmra.mxu0 %v735
        %v818 = vpop.f32.mrf.mxu0
        %v819 = vadd.f32 %v778, %v818
        %820 = vmatmul.f32.gmra.mxu0 %v736
        %v821 = vpop.f32.mrf.mxu0
        %v822 = vadd.f32 %v781, %v821
        %823 = vmatmul.f32.gmra.mxu0 %v737
        %v824 = vpop.f32.mrf.mxu0
        %v825 = vadd.f32 %v784, %v824
        %826 = vmatmul.f32.gmra.mxu0 %v738
        %v827 = vpop.f32.mrf.mxu0
        %v828 = vadd.f32 %v787, %v827
        %829 = vmatmul.f32.gmra.mxu0 %v739
        %v830 = vpop.f32.mrf.mxu0
        %v831 = vadd.f32 %v790, %v830
        %832 = vdwg.mxu0
        %833 = vmatpush.msra.mxu0 %v714
        %834 = vmatpush.msra.mxu0 %v713
        %835 = vmatpush.msra.mxu0 %v712
        %836 = vmatpush.msra.mxu0 %v711
        %837 = vmatpush.msra.mxu0 %v710
        %838 = vmatpush.msra.mxu0 %v709
        %839 = vmatpush.msra.mxu0 %v708
        %840 = vmatpush.msra.mxu0 %v707
        %841 = vmatpush.msra.mxu0 %v706
        %842 = vmatpush.msra.mxu0 %v705
        %843 = vmatpush.msra.mxu0 %v704
        %844 = vmatpush.msra.mxu0 %v703
        %845 = vmatpush.msra.mxu0 %v702
        %846 = vmatpush.msra.mxu0 %v701
        %847 = vmatpush.msra.mxu0 %v700
        %848 = vmatpush.msra.mxu0 %v699
        %849 = vmatmul.f32.gmra.mxu0 %v740
        %v850 = vpop.f32.mrf.mxu0
        %v851 = vadd.f32 %v810, %v850
        %852 = vmatmul.f32.gmra.mxu0 %v741
        %v853 = vpop.f32.mrf.mxu0
        %v854 = vadd.f32 %v813, %v853
        %855 = vmatmul.f32.gmra.mxu0 %v742
        %v856 = vpop.f32.mrf.mxu0
        %v857 = vadd.f32 %v816, %v856
        %858 = vmatmul.f32.gmra.mxu0 %v743
        %v859 = vpop.f32.mrf.mxu0
        %v860 = vadd.f32 %v819, %v859
        %861 = vmatmul.f32.gmra.mxu0 %v744
        %v862 = vpop.f32.mrf.mxu0
        %v863 = vadd.f32 %v822, %v862
        %864 = vmatmul.f32.gmra.mxu0 %v745
        %v865 = vpop.f32.mrf.mxu0
        %v866 = vadd.f32 %v825, %v865
        %867 = vmatmul.f32.gmra.mxu0 %v746
        %v868 = vpop.f32.mrf.mxu0
        %v869 = vadd.f32 %v828, %v868
        %870 = vmatmul.f32.gmra.mxu0 %v747
        %v871 = vpop.f32.mrf.mxu0
        %v872 = vadd.f32 %v831, %v871
        %873 = vdwg.mxu0
        %v874 = vld [vmem:[#allocation12] sm:$0xff]
        %v875 = vld [vmem:[#allocation12 + $0x8] sm:$0xff]
        %v876 = vld [vmem:[#allocation12 + $0x10] sm:$0xff]
        %v877 = vld [vmem:[#allocation12 + $0x18] sm:$0xff]
        %v878 = vld [vmem:[#allocation12 + $0x20] sm:$0xff]
        %v879 = vld [vmem:[#allocation12 + $0x28] sm:$0xff]
        %v880 = vld [vmem:[#allocation12 + $0x30] sm:$0xff]
        %v881 = vld [vmem:[#allocation12 + $0x38] sm:$0xff]
        %v882 = vld [vmem:[#allocation12 + $0x40] sm:$0xff]
        %v883 = vld [vmem:[#allocation12 + $0x48] sm:$0xff]
        %v884 = vld [vmem:[#allocation12 + $0x50] sm:$0xff]
        %v885 = vld [vmem:[#allocation12 + $0x58] sm:$0xff]
        %v886 = vld [vmem:[#allocation12 + $0x60] sm:$0xff]
        %v887 = vld [vmem:[#allocation12 + $0x68] sm:$0xff]
        %v888 = vld [vmem:[#allocation12 + $0x70] sm:$0xff]
        %v889 = vld [vmem:[#allocation12 + $0x78] sm:$0xff]
        %v890 = vld [vmem:[#allocation14] sm:$0x1]
        %v892 = vperm.slane %v890, 0
        %894 = vmatpush.msra.mxu0 %v889
        %895 = vmatpush.msra.mxu0 %v888
        %896 = vmatpush.msra.mxu0 %v887
        %897 = vmatpush.msra.mxu0 %v886
        %898 = vmatpush.msra.mxu0 %v885
        %899 = vmatpush.msra.mxu0 %v884
        %900 = vmatpush.msra.mxu0 %v883
        %901 = vmatpush.msra.mxu0 %v882
        %902 = vmatpush.msra.mxu0 %v881
        %903 = vmatpush.msra.mxu0 %v880
        %904 = vmatpush.msra.mxu0 %v879
        %905 = vmatpush.msra.mxu0 %v878
        %906 = vmatpush.msra.mxu0 %v877
        %907 = vmatpush.msra.mxu0 %v876
        %908 = vmatpush.msra.mxu0 %v875
        %909 = vmatpush.msra.mxu0 %v874
        %910 = vmatmul.f32.gmra.mxu0 %v851
        %v911 = vpop.f32.mrf.mxu0
        %v912 = vadd.f32 %v892, %v911
        %913 = vmatmul.f32.gmra.mxu0 %v854
        %v914 = vpop.f32.mrf.mxu0
        %v915 = vadd.f32 %v892, %v914
        %916 = vmatmul.f32.gmra.mxu0 %v857
        %v917 = vpop.f32.mrf.mxu0
        %v918 = vadd.f32 %v892, %v917
        %919 = vmatmul.f32.gmra.mxu0 %v860
        %v920 = vpop.f32.mrf.mxu0
        %v921 = vadd.f32 %v892, %v920
        %922 = vmatmul.f32.gmra.mxu0 %v863
        %v923 = vpop.f32.mrf.mxu0
        %v924 = vadd.f32 %v892, %v923
        %925 = vmatmul.f32.gmra.mxu0 %v866
        %v926 = vpop.f32.mrf.mxu0
        %v927 = vadd.f32 %v892, %v926
        %928 = vmatmul.f32.gmra.mxu0 %v869
        %v929 = vpop.f32.mrf.mxu0
        %v930 = vadd.f32 %v892, %v929
        %931 = vmatmul.f32.gmra.mxu0 %v872
        %v932 = vpop.f32.mrf.mxu0
        %v933 = vadd.f32 %v892, %v932
        %934 = vdwg.mxu0
        %v935 = vld [vmem:[#allocation9] sm:$0xff]
        %v936 = vld [vmem:[#allocation9 + $0x8] sm:$0xff]
        %v937 = vld [vmem:[#allocation9 + $0x10] sm:$0xff]
        %v938 = vld [vmem:[#allocation9 + $0x18] sm:$0xff]
        %v939 = vld [vmem:[#allocation9 + $0x20] sm:$0xff]
        %v940 = vld [vmem:[#allocation9 + $0x28] sm:$0xff]
        %v941 = vld [vmem:[#allocation9 + $0x30] sm:$0xff]
        %v942 = vld [vmem:[#allocation9 + $0x38] sm:$0xff]
        %v943 = vld [vmem:[#allocation9 + $0x40] sm:$0xff]
        %v944 = vld [vmem:[#allocation9 + $0x48] sm:$0xff]
        %v945 = vld [vmem:[#allocation9 + $0x50] sm:$0xff]
        %v946 = vld [vmem:[#allocation9 + $0x58] sm:$0xff]
        %v947 = vld [vmem:[#allocation9 + $0x60] sm:$0xff]
        %v948 = vld [vmem:[#allocation9 + $0x68] sm:$0xff]
        %v949 = vld [vmem:[#allocation9 + $0x70] sm:$0xff]
        %v950 = vld [vmem:[#allocation9 + $0x78] sm:$0xff]
        %v951 = vld [vmem:[#allocation9 + $0x80] sm:$0xff]
        %v952 = vld [vmem:[#allocation9 + $0x88] sm:$0xff]
        %v953 = vld [vmem:[#allocation9 + $0x90] sm:$0xff]
        %v954 = vld [vmem:[#allocation9 + $0x98] sm:$0xff]
        %v955 = vld [vmem:[#allocation9 + $0xa0] sm:$0xff]
        %v956 = vld [vmem:[#allocation9 + $0xa8] sm:$0xff]
        %v957 = vld [vmem:[#allocation9 + $0xb0] sm:$0xff]
        %v958 = vld [vmem:[#allocation9 + $0xb8] sm:$0xff]
        %v959 = vld [vmem:[#allocation9 + $0xc0] sm:$0xff]
        %v960 = vld [vmem:[#allocation9 + $0xc8] sm:$0xff]
        %v961 = vld [vmem:[#allocation9 + $0xd0] sm:$0xff]
        %v962 = vld [vmem:[#allocation9 + $0xd8] sm:$0xff]
        %v963 = vld [vmem:[#allocation9 + $0xe0] sm:$0xff]
        %v964 = vld [vmem:[#allocation9 + $0xe8] sm:$0xff]
        %v965 = vld [vmem:[#allocation9 + $0xf0] sm:$0xff]
        %v966 = vld [vmem:[#allocation9 + $0xf8] sm:$0xff]
        %v967 = vld [vmem:[#allocation9 + $0x100] sm:$0xff]
        %v968 = vld [vmem:[#allocation9 + $0x108] sm:$0xff]
        %v969 = vld [vmem:[#allocation9 + $0x110] sm:$0xff]
        %v970 = vld [vmem:[#allocation9 + $0x118] sm:$0xff]
        %v971 = vld [vmem:[#allocation9 + $0x120] sm:$0xff]
        %v972 = vld [vmem:[#allocation9 + $0x128] sm:$0xff]
        %v973 = vld [vmem:[#allocation9 + $0x130] sm:$0xff]
        %v974 = vld [vmem:[#allocation9 + $0x138] sm:$0xff]
        %v975 = vld [vmem:[#allocation9 + $0x140] sm:$0xff]
        %v976 = vld [vmem:[#allocation9 + $0x148] sm:$0xff]
        %v977 = vld [vmem:[#allocation9 + $0x150] sm:$0xff]
        %v978 = vld [vmem:[#allocation9 + $0x158] sm:$0xff]
        %v979 = vld [vmem:[#allocation9 + $0x160] sm:$0xff]
        %v980 = vld [vmem:[#allocation9 + $0x168] sm:$0xff]
        %v981 = vld [vmem:[#allocation9 + $0x170] sm:$0xff]
        %v982 = vld [vmem:[#allocation9 + $0x178] sm:$0xff]
        %v983 = vld [vmem:[#allocation11] sm:$0x1]
        %984 = vst [vmem:[#allocation2 + $0x8] sm:$0xff] %v851
        %985 = vst [vmem:[#allocation2 + $0x10] sm:$0xff] %v854
        %986 = vst [vmem:[#allocation2 + $0x18] sm:$0xff] %v857
        %987 = vst [vmem:[#allocation2 + $0x20] sm:$0xff] %v860
        %988 = vst [vmem:[#allocation2 + $0x28] sm:$0xff] %v863
        %989 = vst [vmem:[#allocation2 + $0x30] sm:$0xff] %v866
        %990 = vst [vmem:[#allocation2 + $0x38] sm:$0xff] %v869
        %991 = vst [vmem:[#allocation2 + $0x40] sm:$0xff] %v872
        %v992 = vld [vmem:[#allocation2 + $0x6] sm:$0xff]
        %v993 = vld [vmem:[#allocation2 + $0xe] sm:$0xff]
        %v994 = vld [vmem:[#allocation2 + $0x16] sm:$0xff]
        %v995 = vld [vmem:[#allocation2 + $0x1e] sm:$0xff]
        %v996 = vld [vmem:[#allocation2 + $0x26] sm:$0xff]
        %v997 = vld [vmem:[#allocation2 + $0x2e] sm:$0xff]
        %v998 = vld [vmem:[#allocation2 + $0x36] sm:$0xff]
        %v999 = vld [vmem:[#allocation2 + $0x3e] sm:$0xff]
        %v1000 = vld [vmem:[#allocation2 + $0x7] sm:$0xff]
        %v1001 = vld [vmem:[#allocation2 + $0xf] sm:$0xff]
        %v1002 = vld [vmem:[#allocation2 + $0x17] sm:$0xff]
        %v1003 = vld [vmem:[#allocation2 + $0x1f] sm:$0xff]
        %v1004 = vld [vmem:[#allocation2 + $0x27] sm:$0xff]
        %v1005 = vld [vmem:[#allocation2 + $0x2f] sm:$0xff]
        %v1006 = vld [vmem:[#allocation2 + $0x37] sm:$0xff]
        %v1007 = vld [vmem:[#allocation2 + $0x3f] sm:$0xff]
        %v1008 = vld [vmem:[#allocation2 + $0x8] sm:$0xff]
        %v1009 = vld [vmem:[#allocation2 + $0x10] sm:$0xff]
        %v1010 = vld [vmem:[#allocation2 + $0x18] sm:$0xff]
        %v1011 = vld [vmem:[#allocation2 + $0x20] sm:$0xff]
        %v1012 = vld [vmem:[#allocation2 + $0x28] sm:$0xff]
        %v1013 = vld [vmem:[#allocation2 + $0x30] sm:$0xff]
        %v1014 = vld [vmem:[#allocation2 + $0x38] sm:$0xff]
        %v1015 = vld [vmem:[#allocation2 + $0x40] sm:$0xff]
        %v1017 = vperm.slane %v983, 0
        %1019 = vmatpush.msra.mxu0 %v950
        %1020 = vmatpush.msra.mxu0 %v949
        %1021 = vmatpush.msra.mxu0 %v948
        %1022 = vmatpush.msra.mxu0 %v947
        %1023 = vmatpush.msra.mxu0 %v946
        %1024 = vmatpush.msra.mxu0 %v945
        %1025 = vmatpush.msra.mxu0 %v944
        %1026 = vmatpush.msra.mxu0 %v943
        %1027 = vmatpush.msra.mxu0 %v942
        %1028 = vmatpush.msra.mxu0 %v941
        %1029 = vmatpush.msra.mxu0 %v940
        %1030 = vmatpush.msra.mxu0 %v939
        %1031 = vmatpush.msra.mxu0 %v938
        %1032 = vmatpush.msra.mxu0 %v937
        %1033 = vmatpush.msra.mxu0 %v936
        %1034 = vmatpush.msra.mxu0 %v935
        %1035 = vmatmul.f32.gmra.mxu0 %v992
        %v1036 = vpop.f32.mrf.mxu0
        %v1037 = vadd.f32 %v1017, %v1036
        %1038 = vmatmul.f32.gmra.mxu0 %v993
        %v1039 = vpop.f32.mrf.mxu0
        %v1040 = vadd.f32 %v1017, %v1039
        %1041 = vmatmul.f32.gmra.mxu0 %v994
        %v1042 = vpop.f32.mrf.mxu0
        %v1043 = vadd.f32 %v1017, %v1042
        %1044 = vmatmul.f32.gmra.mxu0 %v995
        %v1045 = vpop.f32.mrf.mxu0
        %v1046 = vadd.f32 %v1017, %v1045
        %1047 = vmatmul.f32.gmra.mxu0 %v996
        %v1048 = vpop.f32.mrf.mxu0
        %v1049 = vadd.f32 %v1017, %v1048
        %1050 = vmatmul.f32.gmra.mxu0 %v997
        %v1051 = vpop.f32.mrf.mxu0
        %v1052 = vadd.f32 %v1017, %v1051
        %1053 = vmatmul.f32.gmra.mxu0 %v998
        %v1054 = vpop.f32.mrf.mxu0
        %v1055 = vadd.f32 %v1017, %v1054
        %1056 = vmatmul.f32.gmra.mxu0 %v999
        %v1057 = vpop.f32.mrf.mxu0
        %v1058 = vadd.f32 %v1017, %v1057
        %1059 = vdwg.mxu0
        %1060 = vmatpush.msra.mxu0 %v966
        %1061 = vmatpush.msra.mxu0 %v965
        %1062 = vmatpush.msra.mxu0 %v964
        %1063 = vmatpush.msra.mxu0 %v963
        %1064 = vmatpush.msra.mxu0 %v962
        %1065 = vmatpush.msra.mxu0 %v961
        %1066 = vmatpush.msra.mxu0 %v960
        %1067 = vmatpush.msra.mxu0 %v959
        %1068 = vmatpush.msra.mxu0 %v958
        %1069 = vmatpush.msra.mxu0 %v957
        %1070 = vmatpush.msra.mxu0 %v956
        %1071 = vmatpush.msra.mxu0 %v955
        %1072 = vmatpush.msra.mxu0 %v954
        %1073 = vmatpush.msra.mxu0 %v953
        %1074 = vmatpush.msra.mxu0 %v952
        %1075 = vmatpush.msra.mxu0 %v951
        %1076 = vmatmul.f32.gmra.mxu0 %v1000
        %v1077 = vpop.f32.mrf.mxu0
        %v1078 = vadd.f32 %v1037, %v1077
        %1079 = vmatmul.f32.gmra.mxu0 %v1001
        %v1080 = vpop.f32.mrf.mxu0
        %v1081 = vadd.f32 %v1040, %v1080
        %1082 = vmatmul.f32.gmra.mxu0 %v1002
        %v1083 = vpop.f32.mrf.mxu0
        %v1084 = vadd.f32 %v1043, %v1083
        %1085 = vmatmul.f32.gmra.mxu0 %v1003
        %v1086 = vpop.f32.mrf.mxu0
        %v1087 = vadd.f32 %v1046, %v1086
        %1088 = vmatmul.f32.gmra.mxu0 %v1004
        %v1089 = vpop.f32.mrf.mxu0
        %v1090 = vadd.f32 %v1049, %v1089
        %1091 = vmatmul.f32.gmra.mxu0 %v1005
        %v1092 = vpop.f32.mrf.mxu0
        %v1093 = vadd.f32 %v1052, %v1092
        %1094 = vmatmul.f32.gmra.mxu0 %v1006
        %v1095 = vpop.f32.mrf.mxu0
        %v1096 = vadd.f32 %v1055, %v1095
        %1097 = vmatmul.f32.gmra.mxu0 %v1007
        %v1098 = vpop.f32.mrf.mxu0
        %v1099 = vadd.f32 %v1058, %v1098
        %1100 = vdwg.mxu0
        %1101 = vmatpush.msra.mxu0 %v982
        %1102 = vmatpush.msra.mxu0 %v981
        %1103 = vmatpush.msra.mxu0 %v980
        %1104 = vmatpush.msra.mxu0 %v979
        %1105 = vmatpush.msra.mxu0 %v978
        %1106 = vmatpush.msra.mxu0 %v977
        %1107 = vmatpush.msra.mxu0 %v976
        %1108 = vmatpush.msra.mxu0 %v975
        %1109 = vmatpush.msra.mxu0 %v974
        %1110 = vmatpush.msra.mxu0 %v973
        %1111 = vmatpush.msra.mxu0 %v972
        %1112 = vmatpush.msra.mxu0 %v971
        %1113 = vmatpush.msra.mxu0 %v970
        %1114 = vmatpush.msra.mxu0 %v969
        %1115 = vmatpush.msra.mxu0 %v968
        %1116 = vmatpush.msra.mxu0 %v967
        %1117 = vmatmul.f32.gmra.mxu0 %v1008
        %v1118 = vpop.f32.mrf.mxu0
        %v1119 = vadd.f32 %v1078, %v1118
        %1120 = vmatmul.f32.gmra.mxu0 %v1009
        %v1121 = vpop.f32.mrf.mxu0
        %v1122 = vadd.f32 %v1081, %v1121
        %1123 = vmatmul.f32.gmra.mxu0 %v1010
        %v1124 = vpop.f32.mrf.mxu0
        %v1125 = vadd.f32 %v1084, %v1124
        %1126 = vmatmul.f32.gmra.mxu0 %v1011
        %v1127 = vpop.f32.mrf.mxu0
        %v1128 = vadd.f32 %v1087, %v1127
        %1129 = vmatmul.f32.gmra.mxu0 %v1012
        %v1130 = vpop.f32.mrf.mxu0
        %v1131 = vadd.f32 %v1090, %v1130
        %1132 = vmatmul.f32.gmra.mxu0 %v1013
        %v1133 = vpop.f32.mrf.mxu0
        %v1134 = vadd.f32 %v1093, %v1133
        %1135 = vmatmul.f32.gmra.mxu0 %v1014
        %v1136 = vpop.f32.mrf.mxu0
        %v1137 = vadd.f32 %v1096, %v1136
        %1138 = vmatmul.f32.gmra.mxu0 %v1015
        %v1139 = vpop.f32.mrf.mxu0
        %v1140 = vadd.f32 %v1099, %v1139
        %1141 = vdwg.mxu0
        %v1142 = vperm.slane %v657, 0
        %v1143 = vmul.f32 %v1119, %v1142
        %v1144 = vmul.f32 %v1122, %v1142
        %v1145 = vmul.f32 %v1125, %v1142
        %v1146 = vmul.f32 %v1128, %v1142
        %v1147 = vmul.f32 %v1131, %v1142
        %v1148 = vmul.f32 %v1134, %v1142
        %v1149 = vmul.f32 %v1137, %v1142
        %v1150 = vmul.f32 %v1140, %v1142
        %v1151 = vperm.slane %v658, 0
        %v1152 = vadd.f32 %v1143, %v1151
        %v1153 = vadd.f32 %v1144, %v1151
        %v1154 = vadd.f32 %v1145, %v1151
        %v1155 = vadd.f32 %v1146, %v1151
        %v1156 = vadd.f32 %v1147, %v1151
        %v1157 = vadd.f32 %v1148, %v1151
        %v1158 = vadd.f32 %v1149, %v1151
        %v1159 = vadd.f32 %v1150, %v1151
        %v1160 = vtanh.pop %v1152
        %v1161 = vtanh.pop %v1153
        %v1162 = vtanh.pop %v1154
        %v1163 = vtanh.pop %v1155
        %v1164 = vtanh.pop %v1156
        %v1165 = vtanh.pop %v1157
        %v1166 = vtanh.pop %v1158
        %v1167 = vtanh.pop %v1159
        %v1168 = vmul.f32 %v1152, 0.5
        %v1169 = vmul.f32 %v1153, 0.5
        %v1170 = vmul.f32 %v1154, 0.5
        %v1171 = vmul.f32 %v1155, 0.5
        %v1172 = vmul.f32 %v1156, 0.5
        %v1173 = vmul.f32 %v1157, 0.5
        %v1174 = vmul.f32 %v1158, 0.5
        %v1175 = vmul.f32 %v1159, 0.5
        %v1176 = vtanh.pop %v1168
        %v1177 = vtanh.pop %v1169
        %v1178 = vtanh.pop %v1170
        %v1179 = vtanh.pop %v1171
        %v1180 = vtanh.pop %v1172
        %v1181 = vtanh.pop %v1173
        %v1182 = vtanh.pop %v1174
        %v1183 = vtanh.pop %v1175
        %v1184 = vmul.f32 %v1176, 0.5
        %v1185 = vmul.f32 %v1177, 0.5
        %v1186 = vmul.f32 %v1178, 0.5
        %v1187 = vmul.f32 %v1179, 0.5
        %v1188 = vmul.f32 %v1180, 0.5
        %v1189 = vmul.f32 %v1181, 0.5
        %v1190 = vmul.f32 %v1182, 0.5
        %v1191 = vmul.f32 %v1183, 0.5
        %v1192 = vadd.f32 %v1184, 0.5
        %v1193 = vadd.f32 %v1185, 0.5
        %v1194 = vadd.f32 %v1186, 0.5
        %v1195 = vadd.f32 %v1187, 0.5
        %v1196 = vadd.f32 %v1188, 0.5
        %v1197 = vadd.f32 %v1189, 0.5
        %v1198 = vadd.f32 %v1190, 0.5
        %v1199 = vadd.f32 %v1191, 0.5
        %v1200 = vmul.f32 %v1160, %v1192
        %v1201 = vmul.f32 %v1161, %v1193
        %v1202 = vmul.f32 %v1162, %v1194
        %v1203 = vmul.f32 %v1163, %v1195
        %v1204 = vmul.f32 %v1164, %v1196
        %v1205 = vmul.f32 %v1165, %v1197
        %v1206 = vmul.f32 %v1166, %v1198
        %v1207 = vmul.f32 %v1167, %v1199
        %v1208 = vadd.f32 %v1200, %v912
        %v1209 = vadd.f32 %v1201, %v915
        %v1210 = vadd.f32 %v1202, %v918
        %v1211 = vadd.f32 %v1203, %v921
        %v1212 = vadd.f32 %v1204, %v924
        %v1213 = vadd.f32 %v1205, %v927
        %v1214 = vadd.f32 %v1206, %v930
        %v1215 = vadd.f32 %v1207, %v933
        %s1216 = scalar_lea.vmem [#allocation12], 384
        %v1217 = vld [vmem:[%s1216] sm:$0xff]
        %v1218 = vld [vmem:[%s1216 + $0x8] sm:$0xff]
        %v1219 = vld [vmem:[%s1216 + $0x10] sm:$0xff]
        %v1220 = vld [vmem:[%s1216 + $0x18] sm:$0xff]
        %v1221 = vld [vmem:[%s1216 + $0x20] sm:$0xff]
        %v1222 = vld [vmem:[%s1216 + $0x28] sm:$0xff]
        %v1223 = vld [vmem:[%s1216 + $0x30] sm:$0xff]
        %v1224 = vld [vmem:[%s1216 + $0x38] sm:$0xff]
        %v1225 = vld [vmem:[%s1216 + $0x40] sm:$0xff]
        %v1226 = vld [vmem:[%s1216 + $0x48] sm:$0xff]
        %v1227 = vld [vmem:[%s1216 + $0x50] sm:$0xff]
        %v1228 = vld [vmem:[%s1216 + $0x58] sm:$0xff]
        %v1229 = vld [vmem:[%s1216 + $0x60] sm:$0xff]
        %v1230 = vld [vmem:[%s1216 + $0x68] sm:$0xff]
        %v1231 = vld [vmem:[%s1216 + $0x70] sm:$0xff]
        %v1232 = vld [vmem:[%s1216 + $0x78] sm:$0xff]
        %s1233 = scalar_lea.vmem [#allocation14], 3
        %v1234 = vld [vmem:[%s1233] sm:$0x1]
        %v1236 = vperm.slane %v1234, 0
        %1238 = vmatpush.msra.mxu0 %v1232
        %1239 = vmatpush.msra.mxu0 %v1231
        %1240 = vmatpush.msra.mxu0 %v1230
        %1241 = vmatpush.msra.mxu0 %v1229
        %1242 = vmatpush.msra.mxu0 %v1228
        %1243 = vmatpush.msra.mxu0 %v1227
        %1244 = vmatpush.msra.mxu0 %v1226
        %1245 = vmatpush.msra.mxu0 %v1225
        %1246 = vmatpush.msra.mxu0 %v1224
        %1247 = vmatpush.msra.mxu0 %v1223
        %1248 = vmatpush.msra.mxu0 %v1222
        %1249 = vmatpush.msra.mxu0 %v1221
        %1250 = vmatpush.msra.mxu0 %v1220
        %1251 = vmatpush.msra.mxu0 %v1219
        %1252 = vmatpush.msra.mxu0 %v1218
        %1253 = vmatpush.msra.mxu0 %v1217
        %1254 = vmatmul.f32.gmra.mxu0 %v1208
        %v1255 = vpop.f32.mrf.mxu0
        %v1256 = vadd.f32 %v1236, %v1255
        %1257 = vmatmul.f32.gmra.mxu0 %v1209
        %v1258 = vpop.f32.mrf.mxu0
        %v1259 = vadd.f32 %v1236, %v1258
        %1260 = vmatmul.f32.gmra.mxu0 %v1210
        %v1261 = vpop.f32.mrf.mxu0
        %v1262 = vadd.f32 %v1236, %v1261
        %1263 = vmatmul.f32.gmra.mxu0 %v1211
        %v1264 = vpop.f32.mrf.mxu0
        %v1265 = vadd.f32 %v1236, %v1264
        %1266 = vmatmul.f32.gmra.mxu0 %v1212
        %v1267 = vpop.f32.mrf.mxu0
        %v1268 = vadd.f32 %v1236, %v1267
        %1269 = vmatmul.f32.gmra.mxu0 %v1213
        %v1270 = vpop.f32.mrf.mxu0
        %v1271 = vadd.f32 %v1236, %v1270
        %1272 = vmatmul.f32.gmra.mxu0 %v1214
        %v1273 = vpop.f32.mrf.mxu0
        %v1274 = vadd.f32 %v1236, %v1273
        %1275 = vmatmul.f32.gmra.mxu0 %v1215
        %v1276 = vpop.f32.mrf.mxu0
        %v1277 = vadd.f32 %v1236, %v1276
        %1278 = vdwg.mxu0
        %s1279 = scalar_lea.vmem [#allocation9], 1152
        %v1280 = vld [vmem:[%s1279] sm:$0xff]
        %v1281 = vld [vmem:[%s1279 + $0x8] sm:$0xff]
        %v1282 = vld [vmem:[%s1279 + $0x10] sm:$0xff]
        %v1283 = vld [vmem:[%s1279 + $0x18] sm:$0xff]
        %v1284 = vld [vmem:[%s1279 + $0x20] sm:$0xff]
        %v1285 = vld [vmem:[%s1279 + $0x28] sm:$0xff]
        %v1286 = vld [vmem:[%s1279 + $0x30] sm:$0xff]
        %v1287 = vld [vmem:[%s1279 + $0x38] sm:$0xff]
        %v1288 = vld [vmem:[%s1279 + $0x40] sm:$0xff]
        %v1289 = vld [vmem:[%s1279 + $0x48] sm:$0xff]
        %v1290 = vld [vmem:[%s1279 + $0x50] sm:$0xff]
        %v1291 = vld [vmem:[%s1279 + $0x58] sm:$0xff]
        %v1292 = vld [vmem:[%s1279 + $0x60] sm:$0xff]
        %v1293 = vld [vmem:[%s1279 + $0x68] sm:$0xff]
        %v1294 = vld [vmem:[%s1279 + $0x70] sm:$0xff]
        %v1295 = vld [vmem:[%s1279 + $0x78] sm:$0xff]
        %v1296 = vld [vmem:[%s1279 + $0x80] sm:$0xff]
        %v1297 = vld [vmem:[%s1279 + $0x88] sm:$0xff]
        %v1298 = vld [vmem:[%s1279 + $0x90] sm:$0xff]
        %v1299 = vld [vmem:[%s1279 + $0x98] sm:$0xff]
        %v1300 = vld [vmem:[%s1279 + $0xa0] sm:$0xff]
        %v1301 = vld [vmem:[%s1279 + $0xa8] sm:$0xff]
        %v1302 = vld [vmem:[%s1279 + $0xb0] sm:$0xff]
        %v1303 = vld [vmem:[%s1279 + $0xb8] sm:$0xff]
        %v1304 = vld [vmem:[%s1279 + $0xc0] sm:$0xff]
        %v1305 = vld [vmem:[%s1279 + $0xc8] sm:$0xff]
        %v1306 = vld [vmem:[%s1279 + $0xd0] sm:$0xff]
        %v1307 = vld [vmem:[%s1279 + $0xd8] sm:$0xff]
        %v1308 = vld [vmem:[%s1279 + $0xe0] sm:$0xff]
        %v1309 = vld [vmem:[%s1279 + $0xe8] sm:$0xff]
        %v1310 = vld [vmem:[%s1279 + $0xf0] sm:$0xff]
        %v1311 = vld [vmem:[%s1279 + $0xf8] sm:$0xff]
        %v1312 = vld [vmem:[%s1279 + $0x100] sm:$0xff]
        %v1313 = vld [vmem:[%s1279 + $0x108] sm:$0xff]
        %v1314 = vld [vmem:[%s1279 + $0x110] sm:$0xff]
        %v1315 = vld [vmem:[%s1279 + $0x118] sm:$0xff]
        %v1316 = vld [vmem:[%s1279 + $0x120] sm:$0xff]
        %v1317 = vld [vmem:[%s1279 + $0x128] sm:$0xff]
        %v1318 = vld [vmem:[%s1279 + $0x130] sm:$0xff]
        %v1319 = vld [vmem:[%s1279 + $0x138] sm:$0xff]
        %v1320 = vld [vmem:[%s1279 + $0x140] sm:$0xff]
        %v1321 = vld [vmem:[%s1279 + $0x148] sm:$0xff]
        %v1322 = vld [vmem:[%s1279 + $0x150] sm:$0xff]
        %v1323 = vld [vmem:[%s1279 + $0x158] sm:$0xff]
        %v1324 = vld [vmem:[%s1279 + $0x160] sm:$0xff]
        %v1325 = vld [vmem:[%s1279 + $0x168] sm:$0xff]
        %v1326 = vld [vmem:[%s1279 + $0x170] sm:$0xff]
        %v1327 = vld [vmem:[%s1279 + $0x178] sm:$0xff]
        %s1328 = scalar_lea.vmem [#allocation11], 3
        %v1329 = vld [vmem:[%s1328] sm:$0x1]
        %1330 = vst [vmem:[#allocation2 + $0x8] sm:$0xff] %v1208
        %1331 = vst [vmem:[#allocation2 + $0x10] sm:$0xff] %v1209
        %1332 = vst [vmem:[#allocation2 + $0x18] sm:$0xff] %v1210
        %1333 = vst [vmem:[#allocation2 + $0x20] sm:$0xff] %v1211
        %1334 = vst [vmem:[#allocation2 + $0x28] sm:$0xff] %v1212
        %1335 = vst [vmem:[#allocation2 + $0x30] sm:$0xff] %v1213
        %1336 = vst [vmem:[#allocation2 + $0x38] sm:$0xff] %v1214
        %1337 = vst [vmem:[#allocation2 + $0x40] sm:$0xff] %v1215
        %v1338 = vld [vmem:[#allocation2 + $0x6] sm:$0xff]
        %v1339 = vld [vmem:[#allocation2 + $0xe] sm:$0xff]
        %v1340 = vld [vmem:[#allocation2 + $0x16] sm:$0xff]
        %v1341 = vld [vmem:[#allocation2 + $0x1e] sm:$0xff]
        %v1342 = vld [vmem:[#allocation2 + $0x26] sm:$0xff]
        %v1343 = vld [vmem:[#allocation2 + $0x2e] sm:$0xff]
        %v1344 = vld [vmem:[#allocation2 + $0x36] sm:$0xff]
        %v1345 = vld [vmem:[#allocation2 + $0x3e] sm:$0xff]
        %v1346 = vld [vmem:[#allocation2 + $0x7] sm:$0xff]
        %v1347 = vld [vmem:[#allocation2 + $0xf] sm:$0xff]
        %v1348 = vld [vmem:[#allocation2 + $0x17] sm:$0xff]
        %v1349 = vld [vmem:[#allocation2 + $0x1f] sm:$0xff]
        %v1350 = vld [vmem:[#allocation2 + $0x27] sm:$0xff]
        %v1351 = vld [vmem:[#allocation2 + $0x2f] sm:$0xff]
        %v1352 = vld [vmem:[#allocation2 + $0x37] sm:$0xff]
        %v1353 = vld [vmem:[#allocation2 + $0x3f] sm:$0xff]
        %v1354 = vld [vmem:[#allocation2 + $0x8] sm:$0xff]
        %v1355 = vld [vmem:[#allocation2 + $0x10] sm:$0xff]
        %v1356 = vld [vmem:[#allocation2 + $0x18] sm:$0xff]
        %v1357 = vld [vmem:[#allocation2 + $0x20] sm:$0xff]
        %v1358 = vld [vmem:[#allocation2 + $0x28] sm:$0xff]
        %v1359 = vld [vmem:[#allocation2 + $0x30] sm:$0xff]
        %v1360 = vld [vmem:[#allocation2 + $0x38] sm:$0xff]
        %v1361 = vld [vmem:[#allocation2 + $0x40] sm:$0xff]
        %v1363 = vperm.slane %v1329, 0
        %1365 = vmatpush.msra.mxu0 %v1295
        %1366 = vmatpush.msra.mxu0 %v1294
        %1367 = vmatpush.msra.mxu0 %v1293
        %1368 = vmatpush.msra.mxu0 %v1292
        %1369 = vmatpush.msra.mxu0 %v1291
        %1370 = vmatpush.msra.mxu0 %v1290
        %1371 = vmatpush.msra.mxu0 %v1289
        %1372 = vmatpush.msra.mxu0 %v1288
        %1373 = vmatpush.msra.mxu0 %v1287
        %1374 = vmatpush.msra.mxu0 %v1286
        %1375 = vmatpush.msra.mxu0 %v1285
        %1376 = vmatpush.msra.mxu0 %v1284
        %1377 = vmatpush.msra.mxu0 %v1283
        %1378 = vmatpush.msra.mxu0 %v1282
        %1379 = vmatpush.msra.mxu0 %v1281
        %1380 = vmatpush.msra.mxu0 %v1280
        %1381 = vmatmul.f32.gmra.mxu0 %v1338
        %v1382 = vpop.f32.mrf.mxu0
        %v1383 = vadd.f32 %v1363, %v1382
        %1384 = vmatmul.f32.gmra.mxu0 %v1339
        %v1385 = vpop.f32.mrf.mxu0
        %v1386 = vadd.f32 %v1363, %v1385
        %1387 = vmatmul.f32.gmra.mxu0 %v1340
        %v1388 = vpop.f32.mrf.mxu0
        %v1389 = vadd.f32 %v1363, %v1388
        %1390 = vmatmul.f32.gmra.mxu0 %v1341
        %v1391 = vpop.f32.mrf.mxu0
        %v1392 = vadd.f32 %v1363, %v1391
        %1393 = vmatmul.f32.gmra.mxu0 %v1342
        %v1394 = vpop.f32.mrf.mxu0
        %v1395 = vadd.f32 %v1363, %v1394
        %1396 = vmatmul.f32.gmra.mxu0 %v1343
        %v1397 = vpop.f32.mrf.mxu0
        %v1398 = vadd.f32 %v1363, %v1397
        %1399 = vmatmul.f32.gmra.mxu0 %v1344
        %v1400 = vpop.f32.mrf.mxu0
        %v1401 = vadd.f32 %v1363, %v1400
        %1402 = vmatmul.f32.gmra.mxu0 %v1345
        %v1403 = vpop.f32.mrf.mxu0
        %v1404 = vadd.f32 %v1363, %v1403
        %1405 = vdwg.mxu0
        %1406 = vmatpush.msra.mxu0 %v1311
        %1407 = vmatpush.msra.mxu0 %v1310
        %1408 = vmatpush.msra.mxu0 %v1309
        %1409 = vmatpush.msra.mxu0 %v1308
        %1410 = vmatpush.msra.mxu0 %v1307
        %1411 = vmatpush.msra.mxu0 %v1306
        %1412 = vmatpush.msra.mxu0 %v1305
        %1413 = vmatpush.msra.mxu0 %v1304
        %1414 = vmatpush.msra.mxu0 %v1303
        %1415 = vmatpush.msra.mxu0 %v1302
        %1416 = vmatpush.msra.mxu0 %v1301
        %1417 = vmatpush.msra.mxu0 %v1300
        %1418 = vmatpush.msra.mxu0 %v1299
        %1419 = vmatpush.msra.mxu0 %v1298
        %1420 = vmatpush.msra.mxu0 %v1297
        %1421 = vmatpush.msra.mxu0 %v1296
        %1422 = vmatmul.f32.gmra.mxu0 %v1346
        %v1423 = vpop.f32.mrf.mxu0
        %v1424 = vadd.f32 %v1383, %v1423
        %1425 = vmatmul.f32.gmra.mxu0 %v1347
        %v1426 = vpop.f32.mrf.mxu0
        %v1427 = vadd.f32 %v1386, %v1426
        %1428 = vmatmul.f32.gmra.mxu0 %v1348
        %v1429 = vpop.f32.mrf.mxu0
        %v1430 = vadd.f32 %v1389, %v1429
        %1431 = vmatmul.f32.gmra.mxu0 %v1349
        %v1432 = vpop.f32.mrf.mxu0
        %v1433 = vadd.f32 %v1392, %v1432
        %1434 = vmatmul.f32.gmra.mxu0 %v1350
        %v1435 = vpop.f32.mrf.mxu0
        %v1436 = vadd.f32 %v1395, %v1435
        %1437 = vmatmul.f32.gmra.mxu0 %v1351
        %v1438 = vpop.f32.mrf.mxu0
        %v1439 = vadd.f32 %v1398, %v1438
        %1440 = vmatmul.f32.gmra.mxu0 %v1352
        %v1441 = vpop.f32.mrf.mxu0
        %v1442 = vadd.f32 %v1401, %v1441
        %1443 = vmatmul.f32.gmra.mxu0 %v1353
        %v1444 = vpop.f32.mrf.mxu0
        %v1445 = vadd.f32 %v1404, %v1444
        %1446 = vdwg.mxu0
        %1447 = vmatpush.msra.mxu0 %v1327
        %1448 = vmatpush.msra.mxu0 %v1326
        %1449 = vmatpush.msra.mxu0 %v1325
        %1450 = vmatpush.msra.mxu0 %v1324
        %1451 = vmatpush.msra.mxu0 %v1323
        %1452 = vmatpush.msra.mxu0 %v1322
        %1453 = vmatpush.msra.mxu0 %v1321
        %1454 = vmatpush.msra.mxu0 %v1320
        %1455 = vmatpush.msra.mxu0 %v1319
        %1456 = vmatpush.msra.mxu0 %v1318
        %1457 = vmatpush.msra.mxu0 %v1317
        %1458 = vmatpush.msra.mxu0 %v1316
        %1459 = vmatpush.msra.mxu0 %v1315
        %1460 = vmatpush.msra.mxu0 %v1314
        %1461 = vmatpush.msra.mxu0 %v1313
        %1462 = vmatpush.msra.mxu0 %v1312
        %1463 = vmatmul.f32.gmra.mxu0 %v1354
        %v1464 = vpop.f32.mrf.mxu0
        %v1465 = vadd.f32 %v1424, %v1464
        %1466 = vmatmul.f32.gmra.mxu0 %v1355
        %v1467 = vpop.f32.mrf.mxu0
        %v1468 = vadd.f32 %v1427, %v1467
        %1469 = vmatmul.f32.gmra.mxu0 %v1356
        %v1470 = vpop.f32.mrf.mxu0
        %v1471 = vadd.f32 %v1430, %v1470
        %1472 = vmatmul.f32.gmra.mxu0 %v1357
        %v1473 = vpop.f32.mrf.mxu0
        %v1474 = vadd.f32 %v1433, %v1473
        %1475 = vmatmul.f32.gmra.mxu0 %v1358
        %v1476 = vpop.f32.mrf.mxu0
        %v1477 = vadd.f32 %v1436, %v1476
        %1478 = vmatmul.f32.gmra.mxu0 %v1359
        %v1479 = vpop.f32.mrf.mxu0
        %v1480 = vadd.f32 %v1439, %v1479
        %1481 = vmatmul.f32.gmra.mxu0 %v1360
        %v1482 = vpop.f32.mrf.mxu0
        %v1483 = vadd.f32 %v1442, %v1482
        %1484 = vmatmul.f32.gmra.mxu0 %v1361
        %v1485 = vpop.f32.mrf.mxu0
        %v1486 = vadd.f32 %v1445, %v1485
        %1487 = vdwg.mxu0
        %v1488 = vperm.slane %v657, 3
        %v1489 = vmul.f32 %v1465, %v1488
        %v1490 = vmul.f32 %v1468, %v1488
        %v1491 = vmul.f32 %v1471, %v1488
        %v1492 = vmul.f32 %v1474, %v1488
        %v1493 = vmul.f32 %v1477, %v1488
        %v1494 = vmul.f32 %v1480, %v1488
        %v1495 = vmul.f32 %v1483, %v1488
        %v1496 = vmul.f32 %v1486, %v1488
        %v1497 = vperm.slane %v658, 3
        %v1498 = vadd.f32 %v1489, %v1497
        %v1499 = vadd.f32 %v1490, %v1497
        %v1500 = vadd.f32 %v1491, %v1497
        %v1501 = vadd.f32 %v1492, %v1497
        %v1502 = vadd.f32 %v1493, %v1497
        %v1503 = vadd.f32 %v1494, %v1497
        %v1504 = vadd.f32 %v1495, %v1497
        %v1505 = vadd.f32 %v1496, %v1497
        %v1506 = vtanh.pop %v1498
        %v1507 = vtanh.pop %v1499
        %v1508 = vtanh.pop %v1500
        %v1509 = vtanh.pop %v1501
        %v1510 = vtanh.pop %v1502
        %v1511 = vtanh.pop %v1503
        %v1512 = vtanh.pop %v1504
        %v1513 = vtanh.pop %v1505
        %v1514 = vmul.f32 %v1498, 0.5
        %v1515 = vmul.f32 %v1499, 0.5
        %v1516 = vmul.f32 %v1500, 0.5
        %v1517 = vmul.f32 %v1501, 0.5
        %v1518 = vmul.f32 %v1502, 0.5
        %v1519 = vmul.f32 %v1503, 0.5
        %v1520 = vmul.f32 %v1504, 0.5
        %v1521 = vmul.f32 %v1505, 0.5
        %v1522 = vtanh.pop %v1514
        %v1523 = vtanh.pop %v1515
        %v1524 = vtanh.pop %v1516
        %v1525 = vtanh.pop %v1517
        %v1526 = vtanh.pop %v1518
        %v1527 = vtanh.pop %v1519
        %v1528 = vtanh.pop %v1520
        %v1529 = vtanh.pop %v1521
        %v1530 = vmul.f32 %v1522, 0.5
        %v1531 = vmul.f32 %v1523, 0.5
        %v1532 = vmul.f32 %v1524, 0.5
        %v1533 = vmul.f32 %v1525, 0.5
        %v1534 = vmul.f32 %v1526, 0.5
        %v1535 = vmul.f32 %v1527, 0.5
        %v1536 = vmul.f32 %v1528, 0.5
        %v1537 = vmul.f32 %v1529, 0.5
        %v1538 = vadd.f32 %v1530, 0.5
        %v1539 = vadd.f32 %v1531, 0.5
        %v1540 = vadd.f32 %v1532, 0.5
        %v1541 = vadd.f32 %v1533, 0.5
        %v1542 = vadd.f32 %v1534, 0.5
        %v1543 = vadd.f32 %v1535, 0.5
        %v1544 = vadd.f32 %v1536, 0.5
        %v1545 = vadd.f32 %v1537, 0.5
        %v1546 = vmul.f32 %v1506, %v1538
        %v1547 = vmul.f32 %v1507, %v1539
        %v1548 = vmul.f32 %v1508, %v1540
        %v1549 = vmul.f32 %v1509, %v1541
        %v1550 = vmul.f32 %v1510, %v1542
        %v1551 = vmul.f32 %v1511, %v1543
        %v1552 = vmul.f32 %v1512, %v1544
        %v1553 = vmul.f32 %v1513, %v1545
        %v1554 = vadd.f32 %v1546, %v1256
        %v1555 = vadd.f32 %v1547, %v1259
        %v1556 = vadd.f32 %v1548, %v1262
        %v1557 = vadd.f32 %v1549, %v1265
        %v1558 = vadd.f32 %v1550, %v1268
        %v1559 = vadd.f32 %v1551, %v1271
        %v1560 = vadd.f32 %v1552, %v1274
        %v1561 = vadd.f32 %v1553, %v1277
        %v1562 = vld [vmem:[#allocation15] sm:$0xff]
        %v1563 = vld [vmem:[#allocation15 + $0x8] sm:$0xff]
        %v1564 = vld [vmem:[#allocation15 + $0x10] sm:$0xff]
        %v1565 = vld [vmem:[#allocation15 + $0x18] sm:$0xff]
        %v1566 = vld [vmem:[#allocation15 + $0x20] sm:$0xff]
        %v1567 = vld [vmem:[#allocation15 + $0x28] sm:$0xff]
        %v1568 = vld [vmem:[#allocation15 + $0x30] sm:$0xff]
        %v1569 = vld [vmem:[#allocation15 + $0x38] sm:$0xff]
        %v1570 = vld [vmem:[#allocation15 + $0x40] sm:$0xff]
        %v1571 = vld [vmem:[#allocation15 + $0x48] sm:$0xff]
        %v1572 = vld [vmem:[#allocation15 + $0x50] sm:$0xff]
        %v1573 = vld [vmem:[#allocation15 + $0x58] sm:$0xff]
        %v1574 = vld [vmem:[#allocation15 + $0x60] sm:$0xff]
        %v1575 = vld [vmem:[#allocation15 + $0x68] sm:$0xff]
        %v1576 = vld [vmem:[#allocation15 + $0x70] sm:$0xff]
        %v1577 = vld [vmem:[#allocation15 + $0x78] sm:$0xff]
        %v1578 = vld [vmem:[#allocation17] sm:$0x1]
        %v1580 = vperm.slane %v1578, 0
        %1582 = vmatpush.msra.mxu0 %v1577
        %1583 = vmatpush.msra.mxu0 %v1576
        %1584 = vmatpush.msra.mxu0 %v1575
        %1585 = vmatpush.msra.mxu0 %v1574
        %1586 = vmatpush.msra.mxu0 %v1573
        %1587 = vmatpush.msra.mxu0 %v1572
        %1588 = vmatpush.msra.mxu0 %v1571
        %1589 = vmatpush.msra.mxu0 %v1570
        %1590 = vmatpush.msra.mxu0 %v1569
        %1591 = vmatpush.msra.mxu0 %v1568
        %1592 = vmatpush.msra.mxu0 %v1567
        %1593 = vmatpush.msra.mxu0 %v1566
        %1594 = vmatpush.msra.mxu0 %v1565
        %1595 = vmatpush.msra.mxu0 %v1564
        %1596 = vmatpush.msra.mxu0 %v1563
        %1597 = vmatpush.msra.mxu0 %v1562
        %1598 = vmatmul.f32.gmra.mxu0 %v1554
        %v1599 = vpop.f32.mrf.mxu0
        %v1600 = vadd.f32 %v1580, %v1599
        %1601 = vmatmul.f32.gmra.mxu0 %v1555
        %v1602 = vpop.f32.mrf.mxu0
        %v1603 = vadd.f32 %v1580, %v1602
        %1604 = vmatmul.f32.gmra.mxu0 %v1556
        %v1605 = vpop.f32.mrf.mxu0
        %v1606 = vadd.f32 %v1580, %v1605
        %1607 = vmatmul.f32.gmra.mxu0 %v1557
        %v1608 = vpop.f32.mrf.mxu0
        %v1609 = vadd.f32 %v1580, %v1608
        %1610 = vmatmul.f32.gmra.mxu0 %v1558
        %v1611 = vpop.f32.mrf.mxu0
        %v1612 = vadd.f32 %v1580, %v1611
        %1613 = vmatmul.f32.gmra.mxu0 %v1559
        %v1614 = vpop.f32.mrf.mxu0
        %v1615 = vadd.f32 %v1580, %v1614
        %1616 = vmatmul.f32.gmra.mxu0 %v1560
        %v1617 = vpop.f32.mrf.mxu0
        %v1618 = vadd.f32 %v1580, %v1617
        %1619 = vmatmul.f32.gmra.mxu0 %v1561
        %v1620 = vpop.f32.mrf.mxu0
        %v1621 = vadd.f32 %v1580, %v1620
        %1622 = vdwg.mxu0
        %v1623 = vadd.f32 %v1600, 0.0
        %v1624 = vadd.f32 %v1603, 0.0
        %v1625 = vadd.f32 %v1606, 0.0
        %v1626 = vadd.f32 %v1609, 0.0
        %v1627 = vadd.f32 %v1612, 0.0
        %v1628 = vadd.f32 %v1615, 0.0
        %v1629 = vadd.f32 %v1618, 0.0
        %v1630 = vadd.f32 %v1621, 0.0
        %s1631 = scalar_lea.vmem [#allocation12], 128
        %v1632 = vld [vmem:[%s1631] sm:$0xff]
        %v1633 = vld [vmem:[%s1631 + $0x8] sm:$0xff]
        %v1634 = vld [vmem:[%s1631 + $0x10] sm:$0xff]
        %v1635 = vld [vmem:[%s1631 + $0x18] sm:$0xff]
        %v1636 = vld [vmem:[%s1631 + $0x20] sm:$0xff]
        %v1637 = vld [vmem:[%s1631 + $0x28] sm:$0xff]
        %v1638 = vld [vmem:[%s1631 + $0x30] sm:$0xff]
        %v1639 = vld [vmem:[%s1631 + $0x38] sm:$0xff]
        %v1640 = vld [vmem:[%s1631 + $0x40] sm:$0xff]
        %v1641 = vld [vmem:[%s1631 + $0x48] sm:$0xff]
        %v1642 = vld [vmem:[%s1631 + $0x50] sm:$0xff]
        %v1643 = vld [vmem:[%s1631 + $0x58] sm:$0xff]
        %v1644 = vld [vmem:[%s1631 + $0x60] sm:$0xff]
        %v1645 = vld [vmem:[%s1631 + $0x68] sm:$0xff]
        %v1646 = vld [vmem:[%s1631 + $0x70] sm:$0xff]
        %v1647 = vld [vmem:[%s1631 + $0x78] sm:$0xff]
        %s1648 = scalar_lea.vmem [#allocation14], 1
        %v1649 = vld [vmem:[%s1648] sm:$0x1]
        %v1651 = vperm.slane %v1649, 0
        %1653 = vmatpush.msra.mxu0 %v1647
        %1654 = vmatpush.msra.mxu0 %v1646
        %1655 = vmatpush.msra.mxu0 %v1645
        %1656 = vmatpush.msra.mxu0 %v1644
        %1657 = vmatpush.msra.mxu0 %v1643
        %1658 = vmatpush.msra.mxu0 %v1642
        %1659 = vmatpush.msra.mxu0 %v1641
        %1660 = vmatpush.msra.mxu0 %v1640
        %1661 = vmatpush.msra.mxu0 %v1639
        %1662 = vmatpush.msra.mxu0 %v1638
        %1663 = vmatpush.msra.mxu0 %v1637
        %1664 = vmatpush.msra.mxu0 %v1636
        %1665 = vmatpush.msra.mxu0 %v1635
        %1666 = vmatpush.msra.mxu0 %v1634
        %1667 = vmatpush.msra.mxu0 %v1633
        %1668 = vmatpush.msra.mxu0 %v1632
        %1669 = vmatmul.f32.gmra.mxu0 %v851
        %v1670 = vpop.f32.mrf.mxu0
        %v1671 = vadd.f32 %v1651, %v1670
        %1672 = vmatmul.f32.gmra.mxu0 %v854
        %v1673 = vpop.f32.mrf.mxu0
        %v1674 = vadd.f32 %v1651, %v1673
        %1675 = vmatmul.f32.gmra.mxu0 %v857
        %v1676 = vpop.f32.mrf.mxu0
        %v1677 = vadd.f32 %v1651, %v1676
        %1678 = vmatmul.f32.gmra.mxu0 %v860
        %v1679 = vpop.f32.mrf.mxu0
        %v1680 = vadd.f32 %v1651, %v1679
        %1681 = vmatmul.f32.gmra.mxu0 %v863
        %v1682 = vpop.f32.mrf.mxu0
        %v1683 = vadd.f32 %v1651, %v1682
        %1684 = vmatmul.f32.gmra.mxu0 %v866
        %v1685 = vpop.f32.mrf.mxu0
        %v1686 = vadd.f32 %v1651, %v1685
        %1687 = vmatmul.f32.gmra.mxu0 %v869
        %v1688 = vpop.f32.mrf.mxu0
        %v1689 = vadd.f32 %v1651, %v1688
        %1690 = vmatmul.f32.gmra.mxu0 %v872
        %v1691 = vpop.f32.mrf.mxu0
        %v1692 = vadd.f32 %v1651, %v1691
        %1693 = vdwg.mxu0
        %s1694 = scalar_lea.vmem [#allocation9], 384
        %v1695 = vld [vmem:[%s1694] sm:$0xff]
        %v1696 = vld [vmem:[%s1694 + $0x8] sm:$0xff]
        %v1697 = vld [vmem:[%s1694 + $0x10] sm:$0xff]
        %v1698 = vld [vmem:[%s1694 + $0x18] sm:$0xff]
        %v1699 = vld [vmem:[%s1694 + $0x20] sm:$0xff]
        %v1700 = vld [vmem:[%s1694 + $0x28] sm:$0xff]
        %v1701 = vld [vmem:[%s1694 + $0x30] sm:$0xff]
        %v1702 = vld [vmem:[%s1694 + $0x38] sm:$0xff]
        %v1703 = vld [vmem:[%s1694 + $0x40] sm:$0xff]
        %v1704 = vld [vmem:[%s1694 + $0x48] sm:$0xff]
        %v1705 = vld [vmem:[%s1694 + $0x50] sm:$0xff]
        %v1706 = vld [vmem:[%s1694 + $0x58] sm:$0xff]
        %v1707 = vld [vmem:[%s1694 + $0x60] sm:$0xff]
        %v1708 = vld [vmem:[%s1694 + $0x68] sm:$0xff]
        %v1709 = vld [vmem:[%s1694 + $0x70] sm:$0xff]
        %v1710 = vld [vmem:[%s1694 + $0x78] sm:$0xff]
        %v1711 = vld [vmem:[%s1694 + $0x80] sm:$0xff]
        %v1712 = vld [vmem:[%s1694 + $0x88] sm:$0xff]
        %v1713 = vld [vmem:[%s1694 + $0x90] sm:$0xff]
        %v1714 = vld [vmem:[%s1694 + $0x98] sm:$0xff]
        %v1715 = vld [vmem:[%s1694 + $0xa0] sm:$0xff]
        %v1716 = vld [vmem:[%s1694 + $0xa8] sm:$0xff]
        %v1717 = vld [vmem:[%s1694 + $0xb0] sm:$0xff]
        %v1718 = vld [vmem:[%s1694 + $0xb8] sm:$0xff]
        %v1719 = vld [vmem:[%s1694 + $0xc0] sm:$0xff]
        %v1720 = vld [vmem:[%s1694 + $0xc8] sm:$0xff]
        %v1721 = vld [vmem:[%s1694 + $0xd0] sm:$0xff]
        %v1722 = vld [vmem:[%s1694 + $0xd8] sm:$0xff]
        %v1723 = vld [vmem:[%s1694 + $0xe0] sm:$0xff]
        %v1724 = vld [vmem:[%s1694 + $0xe8] sm:$0xff]
        %v1725 = vld [vmem:[%s1694 + $0xf0] sm:$0xff]
        %v1726 = vld [vmem:[%s1694 + $0xf8] sm:$0xff]
        %v1727 = vld [vmem:[%s1694 + $0x100] sm:$0xff]
        %v1728 = vld [vmem:[%s1694 + $0x108] sm:$0xff]
        %v1729 = vld [vmem:[%s1694 + $0x110] sm:$0xff]
        %v1730 = vld [vmem:[%s1694 + $0x118] sm:$0xff]
        %v1731 = vld [vmem:[%s1694 + $0x120] sm:$0xff]
        %v1732 = vld [vmem:[%s1694 + $0x128] sm:$0xff]
        %v1733 = vld [vmem:[%s1694 + $0x130] sm:$0xff]
        %v1734 = vld [vmem:[%s1694 + $0x138] sm:$0xff]
        %v1735 = vld [vmem:[%s1694 + $0x140] sm:$0xff]
        %v1736 = vld [vmem:[%s1694 + $0x148] sm:$0xff]
        %v1737 = vld [vmem:[%s1694 + $0x150] sm:$0xff]
        %v1738 = vld [vmem:[%s1694 + $0x158] sm:$0xff]
        %v1739 = vld [vmem:[%s1694 + $0x160] sm:$0xff]
        %v1740 = vld [vmem:[%s1694 + $0x168] sm:$0xff]
        %v1741 = vld [vmem:[%s1694 + $0x170] sm:$0xff]
        %v1742 = vld [vmem:[%s1694 + $0x178] sm:$0xff]
        %s1743 = scalar_lea.vmem [#allocation11], 1
        %v1744 = vld [vmem:[%s1743] sm:$0x1]
        %1745 = vst [vmem:[#allocation2 + $0x8] sm:$0xff] %v851
        %1746 = vst [vmem:[#allocation2 + $0x10] sm:$0xff] %v854
        %1747 = vst [vmem:[#allocation2 + $0x18] sm:$0xff] %v857
        %1748 = vst [vmem:[#allocation2 + $0x20] sm:$0xff] %v860
        %1749 = vst [vmem:[#allocation2 + $0x28] sm:$0xff] %v863
        %1750 = vst [vmem:[#allocation2 + $0x30] sm:$0xff] %v866
        %1751 = vst [vmem:[#allocation2 + $0x38] sm:$0xff] %v869
        %1752 = vst [vmem:[#allocation2 + $0x40] sm:$0xff] %v872
        %v1753 = vld [vmem:[#allocation2 + $0x4] sm:$0xff]
        %v1754 = vld [vmem:[#allocation2 + $0xc] sm:$0xff]
        %v1755 = vld [vmem:[#allocation2 + $0x14] sm:$0xff]
        %v1756 = vld [vmem:[#allocation2 + $0x1c] sm:$0xff]
        %v1757 = vld [vmem:[#allocation2 + $0x24] sm:$0xff]
        %v1758 = vld [vmem:[#allocation2 + $0x2c] sm:$0xff]
        %v1759 = vld [vmem:[#allocation2 + $0x34] sm:$0xff]
        %v1760 = vld [vmem:[#allocation2 + $0x3c] sm:$0xff]
        %v1761 = vld [vmem:[#allocation2 + $0x6] sm:$0xff]
        %v1762 = vld [vmem:[#allocation2 + $0xe] sm:$0xff]
        %v1763 = vld [vmem:[#allocation2 + $0x16] sm:$0xff]
        %v1764 = vld [vmem:[#allocation2 + $0x1e] sm:$0xff]
        %v1765 = vld [vmem:[#allocation2 + $0x26] sm:$0xff]
        %v1766 = vld [vmem:[#allocation2 + $0x2e] sm:$0xff]
        %v1767 = vld [vmem:[#allocation2 + $0x36] sm:$0xff]
        %v1768 = vld [vmem:[#allocation2 + $0x3e] sm:$0xff]
        %v1769 = vld [vmem:[#allocation2 + $0x8] sm:$0xff]
        %v1770 = vld [vmem:[#allocation2 + $0x10] sm:$0xff]
        %v1771 = vld [vmem:[#allocation2 + $0x18] sm:$0xff]
        %v1772 = vld [vmem:[#allocation2 + $0x20] sm:$0xff]
        %v1773 = vld [vmem:[#allocation2 + $0x28] sm:$0xff]
        %v1774 = vld [vmem:[#allocation2 + $0x30] sm:$0xff]
        %v1775 = vld [vmem:[#allocation2 + $0x38] sm:$0xff]
        %v1776 = vld [vmem:[#allocation2 + $0x40] sm:$0xff]
        %v1778 = vperm.slane %v1744, 0
        %1780 = vmatpush.msra.mxu0 %v1710
        %1781 = vmatpush.msra.mxu0 %v1709
        %1782 = vmatpush.msra.mxu0 %v1708
        %1783 = vmatpush.msra.mxu0 %v1707
        %1784 = vmatpush.msra.mxu0 %v1706
        %1785 = vmatpush.msra.mxu0 %v1705
        %1786 = vmatpush.msra.mxu0 %v1704
        %1787 = vmatpush.msra.mxu0 %v1703
        %1788 = vmatpush.msra.mxu0 %v1702
        %1789 = vmatpush.msra.mxu0 %v1701
        %1790 = vmatpush.msra.mxu0 %v1700
        %1791 = vmatpush.msra.mxu0 %v1699
        %1792 = vmatpush.msra.mxu0 %v1698
        %1793 = vmatpush.msra.mxu0 %v1697
        %1794 = vmatpush.msra.mxu0 %v1696
        %1795 = vmatpush.msra.mxu0 %v1695
        %1796 = vmatmul.f32.gmra.mxu0 %v1753
        %v1797 = vpop.f32.mrf.mxu0
        %v1798 = vadd.f32 %v1778, %v1797
        %1799 = vmatmul.f32.gmra.mxu0 %v1754
        %v1800 = vpop.f32.mrf.mxu0
        %v1801 = vadd.f32 %v1778, %v1800
        %1802 = vmatmul.f32.gmra.mxu0 %v1755
        %v1803 = vpop.f32.mrf.mxu0
        %v1804 = vadd.f32 %v1778, %v1803
        %1805 = vmatmul.f32.gmra.mxu0 %v1756
        %v1806 = vpop.f32.mrf.mxu0
        %v1807 = vadd.f32 %v1778, %v1806
        %1808 = vmatmul.f32.gmra.mxu0 %v1757
        %v1809 = vpop.f32.mrf.mxu0
        %v1810 = vadd.f32 %v1778, %v1809
        %1811 = vmatmul.f32.gmra.mxu0 %v1758
        %v1812 = vpop.f32.mrf.mxu0
        %v1813 = vadd.f32 %v1778, %v1812
        %1814 = vmatmul.f32.gmra.mxu0 %v1759
        %v1815 = vpop.f32.mrf.mxu0
        %v1816 = vadd.f32 %v1778, %v1815
        %1817 = vmatmul.f32.gmra.mxu0 %v1760
        %v1818 = vpop.f32.mrf.mxu0
        %v1819 = vadd.f32 %v1778, %v1818
        %1820 = vdwg.mxu0
        %1821 = vmatpush.msra.mxu0 %v1726
        %1822 = vmatpush.msra.mxu0 %v1725
        %1823 = vmatpush.msra.mxu0 %v1724
        %1824 = vmatpush.msra.mxu0 %v1723
        %1825 = vmatpush.msra.mxu0 %v1722
        %1826 = vmatpush.msra.mxu0 %v1721
        %1827 = vmatpush.msra.mxu0 %v1720
        %1828 = vmatpush.msra.mxu0 %v1719
        %1829 = vmatpush.msra.mxu0 %v1718
        %1830 = vmatpush.msra.mxu0 %v1717
        %1831 = vmatpush.msra.mxu0 %v1716
        %1832 = vmatpush.msra.mxu0 %v1715
        %1833 = vmatpush.msra.mxu0 %v1714
        %1834 = vmatpush.msra.mxu0 %v1713
        %1835 = vmatpush.msra.mxu0 %v1712
        %1836 = vmatpush.msra.mxu0 %v1711
        %1837 = vmatmul.f32.gmra.mxu0 %v1761
        %v1838 = vpop.f32.mrf.mxu0
        %v1839 = vadd.f32 %v1798, %v1838
        %1840 = vmatmul.f32.gmra.mxu0 %v1762
        %v1841 = vpop.f32.mrf.mxu0
        %v1842 = vadd.f32 %v1801, %v1841
        %1843 = vmatmul.f32.gmra.mxu0 %v1763
        %v1844 = vpop.f32.mrf.mxu0
        %v1845 = vadd.f32 %v1804, %v1844
        %1846 = vmatmul.f32.gmra.mxu0 %v1764
        %v1847 = vpop.f32.mrf.mxu0
        %v1848 = vadd.f32 %v1807, %v1847
        %1849 = vmatmul.f32.gmra.mxu0 %v1765
        %v1850 = vpop.f32.mrf.mxu0
        %v1851 = vadd.f32 %v1810, %v1850
        %1852 = vmatmul.f32.gmra.mxu0 %v1766
        %v1853 = vpop.f32.mrf.mxu0
        %v1854 = vadd.f32 %v1813, %v1853
        %1855 = vmatmul.f32.gmra.mxu0 %v1767
        %v1856 = vpop.f32.mrf.mxu0
        %v1857 = vadd.f32 %v1816, %v1856
        %1858 = vmatmul.f32.gmra.mxu0 %v1768
        %v1859 = vpop.f32.mrf.mxu0
        %v1860 = vadd.f32 %v1819, %v1859
        %1861 = vdwg.mxu0
        %1862 = vmatpush.msra.mxu0 %v1742
        %1863 = vmatpush.msra.mxu0 %v1741
        %1864 = vmatpush.msra.mxu0 %v1740
        %1865 = vmatpush.msra.mxu0 %v1739
        %1866 = vmatpush.msra.mxu0 %v1738
        %1867 = vmatpush.msra.mxu0 %v1737
        %1868 = vmatpush.msra.mxu0 %v1736
        %1869 = vmatpush.msra.mxu0 %v1735
        %1870 = vmatpush.msra.mxu0 %v1734
        %1871 = vmatpush.msra.mxu0 %v1733
        %1872 = vmatpush.msra.mxu0 %v1732
        %1873 = vmatpush.msra.mxu0 %v1731
        %1874 = vmatpush.msra.mxu0 %v1730
        %1875 = vmatpush.msra.mxu0 %v1729
        %1876 = vmatpush.msra.mxu0 %v1728
        %1877 = vmatpush.msra.mxu0 %v1727
        %1878 = vmatmul.f32.gmra.mxu0 %v1769
        %v1879 = vpop.f32.mrf.mxu0
        %v1880 = vadd.f32 %v1839, %v1879
        %1881 = vmatmul.f32.gmra.mxu0 %v1770
        %v1882 = vpop.f32.mrf.mxu0
        %v1883 = vadd.f32 %v1842, %v1882
        %1884 = vmatmul.f32.gmra.mxu0 %v1771
        %v1885 = vpop.f32.mrf.mxu0
        %v1886 = vadd.f32 %v1845, %v1885
        %1887 = vmatmul.f32.gmra.mxu0 %v1772
        %v1888 = vpop.f32.mrf.mxu0
        %v1889 = vadd.f32 %v1848, %v1888
        %1890 = vmatmul.f32.gmra.mxu0 %v1773
        %v1891 = vpop.f32.mrf.mxu0
        %v1892 = vadd.f32 %v1851, %v1891
        %1893 = vmatmul.f32.gmra.mxu0 %v1774
        %v1894 = vpop.f32.mrf.mxu0
        %v1895 = vadd.f32 %v1854, %v1894
        %1896 = vmatmul.f32.gmra.mxu0 %v1775
        %v1897 = vpop.f32.mrf.mxu0
        %v1898 = vadd.f32 %v1857, %v1897
        %1899 = vmatmul.f32.gmra.mxu0 %v1776
        %v1900 = vpop.f32.mrf.mxu0
        %v1901 = vadd.f32 %v1860, %v1900
        %1902 = vdwg.mxu0
        %v1903 = vperm.slane %v657, 1
        %v1904 = vmul.f32 %v1880, %v1903
        %v1905 = vmul.f32 %v1883, %v1903
        %v1906 = vmul.f32 %v1886, %v1903
        %v1907 = vmul.f32 %v1889, %v1903
        %v1908 = vmul.f32 %v1892, %v1903
        %v1909 = vmul.f32 %v1895, %v1903
        %v1910 = vmul.f32 %v1898, %v1903
        %v1911 = vmul.f32 %v1901, %v1903
        %v1912 = vperm.slane %v658, 1
        %v1913 = vadd.f32 %v1904, %v1912
        %v1914 = vadd.f32 %v1905, %v1912
        %v1915 = vadd.f32 %v1906, %v1912
        %v1916 = vadd.f32 %v1907, %v1912
        %v1917 = vadd.f32 %v1908, %v1912
        %v1918 = vadd.f32 %v1909, %v1912
        %v1919 = vadd.f32 %v1910, %v1912
        %v1920 = vadd.f32 %v1911, %v1912
        %v1921 = vtanh.pop %v1913
        %v1922 = vtanh.pop %v1914
        %v1923 = vtanh.pop %v1915
        %v1924 = vtanh.pop %v1916
        %v1925 = vtanh.pop %v1917
        %v1926 = vtanh.pop %v1918
        %v1927 = vtanh.pop %v1919
        %v1928 = vtanh.pop %v1920
        %v1929 = vmul.f32 %v1913, 0.5
        %v1930 = vmul.f32 %v1914, 0.5
        %v1931 = vmul.f32 %v1915, 0.5
        %v1932 = vmul.f32 %v1916, 0.5
        %v1933 = vmul.f32 %v1917, 0.5
        %v1934 = vmul.f32 %v1918, 0.5
        %v1935 = vmul.f32 %v1919, 0.5
        %v1936 = vmul.f32 %v1920, 0.5
        %v1937 = vtanh.pop %v1929
        %v1938 = vtanh.pop %v1930
        %v1939 = vtanh.pop %v1931
        %v1940 = vtanh.pop %v1932
        %v1941 = vtanh.pop %v1933
        %v1942 = vtanh.pop %v1934
        %v1943 = vtanh.pop %v1935
        %v1944 = vtanh.pop %v1936
        %v1945 = vmul.f32 %v1937, 0.5
        %v1946 = vmul.f32 %v1938, 0.5
        %v1947 = vmul.f32 %v1939, 0.5
        %v1948 = vmul.f32 %v1940, 0.5
        %v1949 = vmul.f32 %v1941, 0.5
        %v1950 = vmul.f32 %v1942, 0.5
        %v1951 = vmul.f32 %v1943, 0.5
        %v1952 = vmul.f32 %v1944, 0.5
        %v1953 = vadd.f32 %v1945, 0.5
        %v1954 = vadd.f32 %v1946, 0.5
        %v1955 = vadd.f32 %v1947, 0.5
        %v1956 = vadd.f32 %v1948, 0.5
        %v1957 = vadd.f32 %v1949, 0.5
        %v1958 = vadd.f32 %v1950, 0.5
        %v1959 = vadd.f32 %v1951, 0.5
        %v1960 = vadd.f32 %v1952, 0.5
        %v1961 = vmul.f32 %v1921, %v1953
        %v1962 = vmul.f32 %v1922, %v1954
        %v1963 = vmul.f32 %v1923, %v1955
        %v1964 = vmul.f32 %v1924, %v1956
        %v1965 = vmul.f32 %v1925, %v1957
        %v1966 = vmul.f32 %v1926, %v1958
        %v1967 = vmul.f32 %v1927, %v1959
        %v1968 = vmul.f32 %v1928, %v1960
        %v1969 = vadd.f32 %v1961, %v1671
        %v1970 = vadd.f32 %v1962, %v1674
        %v1971 = vadd.f32 %v1963, %v1677
        %v1972 = vadd.f32 %v1964, %v1680
        %v1973 = vadd.f32 %v1965, %v1683
        %v1974 = vadd.f32 %v1966, %v1686
        %v1975 = vadd.f32 %v1967, %v1689
        %v1976 = vadd.f32 %v1968, %v1692
        %s1977 = scalar_lea.vmem [#allocation12], 512
        %v1978 = vld [vmem:[%s1977] sm:$0xff]
        %v1979 = vld [vmem:[%s1977 + $0x8] sm:$0xff]
        %v1980 = vld [vmem:[%s1977 + $0x10] sm:$0xff]
        %v1981 = vld [vmem:[%s1977 + $0x18] sm:$0xff]
        %v1982 = vld [vmem:[%s1977 + $0x20] sm:$0xff]
        %v1983 = vld [vmem:[%s1977 + $0x28] sm:$0xff]
        %v1984 = vld [vmem:[%s1977 + $0x30] sm:$0xff]
        %v1985 = vld [vmem:[%s1977 + $0x38] sm:$0xff]
        %v1986 = vld [vmem:[%s1977 + $0x40] sm:$0xff]
        %v1987 = vld [vmem:[%s1977 + $0x48] sm:$0xff]
        %v1988 = vld [vmem:[%s1977 + $0x50] sm:$0xff]
        %v1989 = vld [vmem:[%s1977 + $0x58] sm:$0xff]
        %v1990 = vld [vmem:[%s1977 + $0x60] sm:$0xff]
        %v1991 = vld [vmem:[%s1977 + $0x68] sm:$0xff]
        %v1992 = vld [vmem:[%s1977 + $0x70] sm:$0xff]
        %v1993 = vld [vmem:[%s1977 + $0x78] sm:$0xff]
        %s1994 = scalar_lea.vmem [#allocation14], 4
        %v1995 = vld [vmem:[%s1994] sm:$0x1]
        %v1997 = vperm.slane %v1995, 0
        %1999 = vmatpush.msra.mxu0 %v1993
        %2000 = vmatpush.msra.mxu0 %v1992
        %2001 = vmatpush.msra.mxu0 %v1991
        %2002 = vmatpush.msra.mxu0 %v1990
        %2003 = vmatpush.msra.mxu0 %v1989
        %2004 = vmatpush.msra.mxu0 %v1988
        %2005 = vmatpush.msra.mxu0 %v1987
        %2006 = vmatpush.msra.mxu0 %v1986
        %2007 = vmatpush.msra.mxu0 %v1985
        %2008 = vmatpush.msra.mxu0 %v1984
        %2009 = vmatpush.msra.mxu0 %v1983
        %2010 = vmatpush.msra.mxu0 %v1982
        %2011 = vmatpush.msra.mxu0 %v1981
        %2012 = vmatpush.msra.mxu0 %v1980
        %2013 = vmatpush.msra.mxu0 %v1979
        %2014 = vmatpush.msra.mxu0 %v1978
        %2015 = vmatmul.f32.gmra.mxu0 %v1969
        %v2016 = vpop.f32.mrf.mxu0
        %v2017 = vadd.f32 %v1997, %v2016
        %2018 = vmatmul.f32.gmra.mxu0 %v1970
        %v2019 = vpop.f32.mrf.mxu0
        %v2020 = vadd.f32 %v1997, %v2019
        %2021 = vmatmul.f32.gmra.mxu0 %v1971
        %v2022 = vpop.f32.mrf.mxu0
        %v2023 = vadd.f32 %v1997, %v2022
        %2024 = vmatmul.f32.gmra.mxu0 %v1972
        %v2025 = vpop.f32.mrf.mxu0
        %v2026 = vadd.f32 %v1997, %v2025
        %2027 = vmatmul.f32.gmra.mxu0 %v1973
        %v2028 = vpop.f32.mrf.mxu0
        %v2029 = vadd.f32 %v1997, %v2028
        %2030 = vmatmul.f32.gmra.mxu0 %v1974
        %v2031 = vpop.f32.mrf.mxu0
        %v2032 = vadd.f32 %v1997, %v2031
        %2033 = vmatmul.f32.gmra.mxu0 %v1975
        %v2034 = vpop.f32.mrf.mxu0
        %v2035 = vadd.f32 %v1997, %v2034
        %2036 = vmatmul.f32.gmra.mxu0 %v1976
        %v2037 = vpop.f32.mrf.mxu0
        %v2038 = vadd.f32 %v1997, %v2037
        %2039 = vdwg.mxu0
        %s2040 = scalar_lea.vmem [#allocation9], 1536
        %v2041 = vld [vmem:[%s2040] sm:$0xff]
        %v2042 = vld [vmem:[%s2040 + $0x8] sm:$0xff]
        %v2043 = vld [vmem:[%s2040 + $0x10] sm:$0xff]
        %v2044 = vld [vmem:[%s2040 + $0x18] sm:$0xff]
        %v2045 = vld [vmem:[%s2040 + $0x20] sm:$0xff]
        %v2046 = vld [vmem:[%s2040 + $0x28] sm:$0xff]
        %v2047 = vld [vmem:[%s2040 + $0x30] sm:$0xff]
        %v2048 = vld [vmem:[%s2040 + $0x38] sm:$0xff]
        %v2049 = vld [vmem:[%s2040 + $0x40] sm:$0xff]
        %v2050 = vld [vmem:[%s2040 + $0x48] sm:$0xff]
        %v2051 = vld [vmem:[%s2040 + $0x50] sm:$0xff]
        %v2052 = vld [vmem:[%s2040 + $0x58] sm:$0xff]
        %v2053 = vld [vmem:[%s2040 + $0x60] sm:$0xff]
        %v2054 = vld [vmem:[%s2040 + $0x68] sm:$0xff]
        %v2055 = vld [vmem:[%s2040 + $0x70] sm:$0xff]
        %v2056 = vld [vmem:[%s2040 + $0x78] sm:$0xff]
        %v2057 = vld [vmem:[%s2040 + $0x80] sm:$0xff]
        %v2058 = vld [vmem:[%s2040 + $0x88] sm:$0xff]
        %v2059 = vld [vmem:[%s2040 + $0x90] sm:$0xff]
        %v2060 = vld [vmem:[%s2040 + $0x98] sm:$0xff]
        %v2061 = vld [vmem:[%s2040 + $0xa0] sm:$0xff]
        %v2062 = vld [vmem:[%s2040 + $0xa8] sm:$0xff]
        %v2063 = vld [vmem:[%s2040 + $0xb0] sm:$0xff]
        %v2064 = vld [vmem:[%s2040 + $0xb8] sm:$0xff]
        %v2065 = vld [vmem:[%s2040 + $0xc0] sm:$0xff]
        %v2066 = vld [vmem:[%s2040 + $0xc8] sm:$0xff]
        %v2067 = vld [vmem:[%s2040 + $0xd0] sm:$0xff]
        %v2068 = vld [vmem:[%s2040 + $0xd8] sm:$0xff]
        %v2069 = vld [vmem:[%s2040 + $0xe0] sm:$0xff]
        %v2070 = vld [vmem:[%s2040 + $0xe8] sm:$0xff]
        %v2071 = vld [vmem:[%s2040 + $0xf0] sm:$0xff]
        %v2072 = vld [vmem:[%s2040 + $0xf8] sm:$0xff]
        %v2073 = vld [vmem:[%s2040 + $0x100] sm:$0xff]
        %v2074 = vld [vmem:[%s2040 + $0x108] sm:$0xff]
        %v2075 = vld [vmem:[%s2040 + $0x110] sm:$0xff]
        %v2076 = vld [vmem:[%s2040 + $0x118] sm:$0xff]
        %v2077 = vld [vmem:[%s2040 + $0x120] sm:$0xff]
        %v2078 = vld [vmem:[%s2040 + $0x128] sm:$0xff]
        %v2079 = vld [vmem:[%s2040 + $0x130] sm:$0xff]
        %v2080 = vld [vmem:[%s2040 + $0x138] sm:$0xff]
        %v2081 = vld [vmem:[%s2040 + $0x140] sm:$0xff]
        %v2082 = vld [vmem:[%s2040 + $0x148] sm:$0xff]
        %v2083 = vld [vmem:[%s2040 + $0x150] sm:$0xff]
        %v2084 = vld [vmem:[%s2040 + $0x158] sm:$0xff]
        %v2085 = vld [vmem:[%s2040 + $0x160] sm:$0xff]
        %v2086 = vld [vmem:[%s2040 + $0x168] sm:$0xff]
        %v2087 = vld [vmem:[%s2040 + $0x170] sm:$0xff]
        %v2088 = vld [vmem:[%s2040 + $0x178] sm:$0xff]
        %s2089 = scalar_lea.vmem [#allocation11], 4
        %v2090 = vld [vmem:[%s2089] sm:$0x1]
        %2091 = vst [vmem:[#allocation2 + $0x8] sm:$0xff] %v1969
        %2092 = vst [vmem:[#allocation2 + $0x10] sm:$0xff] %v1970
        %2093 = vst [vmem:[#allocation2 + $0x18] sm:$0xff] %v1971
        %2094 = vst [vmem:[#allocation2 + $0x20] sm:$0xff] %v1972
        %2095 = vst [vmem:[#allocation2 + $0x28] sm:$0xff] %v1973
        %2096 = vst [vmem:[#allocation2 + $0x30] sm:$0xff] %v1974
        %2097 = vst [vmem:[#allocation2 + $0x38] sm:$0xff] %v1975
        %2098 = vst [vmem:[#allocation2 + $0x40] sm:$0xff] %v1976
        %v2099 = vld [vmem:[#allocation2 + $0x4] sm:$0xff]
        %v2100 = vld [vmem:[#allocation2 + $0xc] sm:$0xff]
        %v2101 = vld [vmem:[#allocation2 + $0x14] sm:$0xff]
        %v2102 = vld [vmem:[#allocation2 + $0x1c] sm:$0xff]
        %v2103 = vld [vmem:[#allocation2 + $0x24] sm:$0xff]
        %v2104 = vld [vmem:[#allocation2 + $0x2c] sm:$0xff]
        %v2105 = vld [vmem:[#allocation2 + $0x34] sm:$0xff]
        %v2106 = vld [vmem:[#allocation2 + $0x3c] sm:$0xff]
        %v2107 = vld [vmem:[#allocation2 + $0x6] sm:$0xff]
        %v2108 = vld [vmem:[#allocation2 + $0xe] sm:$0xff]
        %v2109 = vld [vmem:[#allocation2 + $0x16] sm:$0xff]
        %v2110 = vld [vmem:[#allocation2 + $0x1e] sm:$0xff]
        %v2111 = vld [vmem:[#allocation2 + $0x26] sm:$0xff]
        %v2112 = vld [vmem:[#allocation2 + $0x2e] sm:$0xff]
        %v2113 = vld [vmem:[#allocation2 + $0x36] sm:$0xff]
        %v2114 = vld [vmem:[#allocation2 + $0x3e] sm:$0xff]
        %v2115 = vld [vmem:[#allocation2 + $0x8] sm:$0xff]
        %v2116 = vld [vmem:[#allocation2 + $0x10] sm:$0xff]
        %v2117 = vld [vmem:[#allocation2 + $0x18] sm:$0xff]
        %v2118 = vld [vmem:[#allocation2 + $0x20] sm:$0xff]
        %v2119 = vld [vmem:[#allocation2 + $0x28] sm:$0xff]
        %v2120 = vld [vmem:[#allocation2 + $0x30] sm:$0xff]
        %v2121 = vld [vmem:[#allocation2 + $0x38] sm:$0xff]
        %v2122 = vld [vmem:[#allocation2 + $0x40] sm:$0xff]
        %v2124 = vperm.slane %v2090, 0
        %2126 = vmatpush.msra.mxu0 %v2056
        %2127 = vmatpush.msra.mxu0 %v2055
        %2128 = vmatpush.msra.mxu0 %v2054
        %2129 = vmatpush.msra.mxu0 %v2053
        %2130 = vmatpush.msra.mxu0 %v2052
        %2131 = vmatpush.msra.mxu0 %v2051
        %2132 = vmatpush.msra.mxu0 %v2050
        %2133 = vmatpush.msra.mxu0 %v2049
        %2134 = vmatpush.msra.mxu0 %v2048
        %2135 = vmatpush.msra.mxu0 %v2047
        %2136 = vmatpush.msra.mxu0 %v2046
        %2137 = vmatpush.msra.mxu0 %v2045
        %2138 = vmatpush.msra.mxu0 %v2044
        %2139 = vmatpush.msra.mxu0 %v2043
        %2140 = vmatpush.msra.mxu0 %v2042
        %2141 = vmatpush.msra.mxu0 %v2041
        %2142 = vmatmul.f32.gmra.mxu0 %v2099
        %v2143 = vpop.f32.mrf.mxu0
        %v2144 = vadd.f32 %v2124, %v2143
        %2145 = vmatmul.f32.gmra.mxu0 %v2100
        %v2146 = vpop.f32.mrf.mxu0
        %v2147 = vadd.f32 %v2124, %v2146
        %2148 = vmatmul.f32.gmra.mxu0 %v2101
        %v2149 = vpop.f32.mrf.mxu0
        %v2150 = vadd.f32 %v2124, %v2149
        %2151 = vmatmul.f32.gmra.mxu0 %v2102
        %v2152 = vpop.f32.mrf.mxu0
        %v2153 = vadd.f32 %v2124, %v2152
        %2154 = vmatmul.f32.gmra.mxu0 %v2103
        %v2155 = vpop.f32.mrf.mxu0
        %v2156 = vadd.f32 %v2124, %v2155
        %2157 = vmatmul.f32.gmra.mxu0 %v2104
        %v2158 = vpop.f32.mrf.mxu0
        %v2159 = vadd.f32 %v2124, %v2158
        %2160 = vmatmul.f32.gmra.mxu0 %v2105
        %v2161 = vpop.f32.mrf.mxu0
        %v2162 = vadd.f32 %v2124, %v2161
        %2163 = vmatmul.f32.gmra.mxu0 %v2106
        %v2164 = vpop.f32.mrf.mxu0
        %v2165 = vadd.f32 %v2124, %v2164
        %2166 = vdwg.mxu0
        %2167 = vmatpush.msra.mxu0 %v2072
        %2168 = vmatpush.msra.mxu0 %v2071
        %2169 = vmatpush.msra.mxu0 %v2070
        %2170 = vmatpush.msra.mxu0 %v2069
        %2171 = vmatpush.msra.mxu0 %v2068
        %2172 = vmatpush.msra.mxu0 %v2067
        %2173 = vmatpush.msra.mxu0 %v2066
        %2174 = vmatpush.msra.mxu0 %v2065
        %2175 = vmatpush.msra.mxu0 %v2064
        %2176 = vmatpush.msra.mxu0 %v2063
        %2177 = vmatpush.msra.mxu0 %v2062
        %2178 = vmatpush.msra.mxu0 %v2061
        %2179 = vmatpush.msra.mxu0 %v2060
        %2180 = vmatpush.msra.mxu0 %v2059
        %2181 = vmatpush.msra.mxu0 %v2058
        %2182 = vmatpush.msra.mxu0 %v2057
        %2183 = vmatmul.f32.gmra.mxu0 %v2107
        %v2184 = vpop.f32.mrf.mxu0
        %v2185 = vadd.f32 %v2144, %v2184
        %2186 = vmatmul.f32.gmra.mxu0 %v2108
        %v2187 = vpop.f32.mrf.mxu0
        %v2188 = vadd.f32 %v2147, %v2187
        %2189 = vmatmul.f32.gmra.mxu0 %v2109
        %v2190 = vpop.f32.mrf.mxu0
        %v2191 = vadd.f32 %v2150, %v2190
        %2192 = vmatmul.f32.gmra.mxu0 %v2110
        %v2193 = vpop.f32.mrf.mxu0
        %v2194 = vadd.f32 %v2153, %v2193
        %2195 = vmatmul.f32.gmra.mxu0 %v2111
        %v2196 = vpop.f32.mrf.mxu0
        %v2197 = vadd.f32 %v2156, %v2196
        %2198 = vmatmul.f32.gmra.mxu0 %v2112
        %v2199 = vpop.f32.mrf.mxu0
        %v2200 = vadd.f32 %v2159, %v2199
        %2201 = vmatmul.f32.gmra.mxu0 %v2113
        %v2202 = vpop.f32.mrf.mxu0
        %v2203 = vadd.f32 %v2162, %v2202
        %2204 = vmatmul.f32.gmra.mxu0 %v2114
        %v2205 = vpop.f32.mrf.mxu0
        %v2206 = vadd.f32 %v2165, %v2205
        %2207 = vdwg.mxu0
        %2208 = vmatpush.msra.mxu0 %v2088
        %2209 = vmatpush.msra.mxu0 %v2087
        %2210 = vmatpush.msra.mxu0 %v2086
        %2211 = vmatpush.msra.mxu0 %v2085
        %2212 = vmatpush.msra.mxu0 %v2084
        %2213 = vmatpush.msra.mxu0 %v2083
        %2214 = vmatpush.msra.mxu0 %v2082
        %2215 = vmatpush.msra.mxu0 %v2081
        %2216 = vmatpush.msra.mxu0 %v2080
        %2217 = vmatpush.msra.mxu0 %v2079
        %2218 = vmatpush.msra.mxu0 %v2078
        %2219 = vmatpush.msra.mxu0 %v2077
        %2220 = vmatpush.msra.mxu0 %v2076
        %2221 = vmatpush.msra.mxu0 %v2075
        %2222 = vmatpush.msra.mxu0 %v2074
        %2223 = vmatpush.msra.mxu0 %v2073
        %2224 = vmatmul.f32.gmra.mxu0 %v2115
        %v2225 = vpop.f32.mrf.mxu0
        %v2226 = vadd.f32 %v2185, %v2225
        %2227 = vmatmul.f32.gmra.mxu0 %v2116
        %v2228 = vpop.f32.mrf.mxu0
        %v2229 = vadd.f32 %v2188, %v2228
        %2230 = vmatmul.f32.gmra.mxu0 %v2117
        %v2231 = vpop.f32.mrf.mxu0
        %v2232 = vadd.f32 %v2191, %v2231
        %2233 = vmatmul.f32.gmra.mxu0 %v2118
        %v2234 = vpop.f32.mrf.mxu0
        %v2235 = vadd.f32 %v2194, %v2234
        %2236 = vmatmul.f32.gmra.mxu0 %v2119
        %v2237 = vpop.f32.mrf.mxu0
        %v2238 = vadd.f32 %v2197, %v2237
        %2239 = vmatmul.f32.gmra.mxu0 %v2120
        %v2240 = vpop.f32.mrf.mxu0
        %v2241 = vadd.f32 %v2200, %v2240
        %2242 = vmatmul.f32.gmra.mxu0 %v2121
        %v2243 = vpop.f32.mrf.mxu0
        %v2244 = vadd.f32 %v2203, %v2243
        %2245 = vmatmul.f32.gmra.mxu0 %v2122
        %v2246 = vpop.f32.mrf.mxu0
        %v2247 = vadd.f32 %v2206, %v2246
        %2248 = vdwg.mxu0
        %v2249 = vperm.slane %v657, 4
        %v2250 = vmul.f32 %v2226, %v2249
        %v2251 = vmul.f32 %v2229, %v2249
        %v2252 = vmul.f32 %v2232, %v2249
        %v2253 = vmul.f32 %v2235, %v2249
        %v2254 = vmul.f32 %v2238, %v2249
        %v2255 = vmul.f32 %v2241, %v2249
        %v2256 = vmul.f32 %v2244, %v2249
        %v2257 = vmul.f32 %v2247, %v2249
        %v2258 = vperm.slane %v658, 4
        %v2259 = vadd.f32 %v2250, %v2258
        %v2260 = vadd.f32 %v2251, %v2258
        %v2261 = vadd.f32 %v2252, %v2258
        %v2262 = vadd.f32 %v2253, %v2258
        %v2263 = vadd.f32 %v2254, %v2258
        %v2264 = vadd.f32 %v2255, %v2258
        %v2265 = vadd.f32 %v2256, %v2258
        %v2266 = vadd.f32 %v2257, %v2258
        %v2267 = vtanh.pop %v2259
        %v2268 = vtanh.pop %v2260
        %v2269 = vtanh.pop %v2261
        %v2270 = vtanh.pop %v2262
        %v2271 = vtanh.pop %v2263
        %v2272 = vtanh.pop %v2264
        %v2273 = vtanh.pop %v2265
        %v2274 = vtanh.pop %v2266
        %v2275 = vmul.f32 %v2259, 0.5
        %v2276 = vmul.f32 %v2260, 0.5
        %v2277 = vmul.f32 %v2261, 0.5
        %v2278 = vmul.f32 %v2262, 0.5
        %v2279 = vmul.f32 %v2263, 0.5
        %v2280 = vmul.f32 %v2264, 0.5
        %v2281 = vmul.f32 %v2265, 0.5
        %v2282 = vmul.f32 %v2266, 0.5
        %v2283 = vtanh.pop %v2275
        %v2284 = vtanh.pop %v2276
        %v2285 = vtanh.pop %v2277
        %v2286 = vtanh.pop %v2278
        %v2287 = vtanh.pop %v2279
        %v2288 = vtanh.pop %v2280
        %v2289 = vtanh.pop %v2281
        %v2290 = vtanh.pop %v2282
        %v2291 = vmul.f32 %v2283, 0.5
        %v2292 = vmul.f32 %v2284, 0.5
        %v2293 = vmul.f32 %v2285, 0.5
        %v2294 = vmul.f32 %v2286, 0.5
        %v2295 = vmul.f32 %v2287, 0.5
        %v2296 = vmul.f32 %v2288, 0.5
        %v2297 = vmul.f32 %v2289, 0.5
        %v2298 = vmul.f32 %v2290, 0.5
        %v2299 = vadd.f32 %v2291, 0.5
        %v2300 = vadd.f32 %v2292, 0.5
        %v2301 = vadd.f32 %v2293, 0.5
        %v2302 = vadd.f32 %v2294, 0.5
        %v2303 = vadd.f32 %v2295, 0.5
        %v2304 = vadd.f32 %v2296, 0.5
        %v2305 = vadd.f32 %v2297, 0.5
        %v2306 = vadd.f32 %v2298, 0.5
        %v2307 = vmul.f32 %v2267, %v2299
        %v2308 = vmul.f32 %v2268, %v2300
        %v2309 = vmul.f32 %v2269, %v2301
        %v2310 = vmul.f32 %v2270, %v2302
        %v2311 = vmul.f32 %v2271, %v2303
        %v2312 = vmul.f32 %v2272, %v2304
        %v2313 = vmul.f32 %v2273, %v2305
        %v2314 = vmul.f32 %v2274, %v2306
        %v2315 = vadd.f32 %v2307, %v2017
        %v2316 = vadd.f32 %v2308, %v2020
        %v2317 = vadd.f32 %v2309, %v2023
        %v2318 = vadd.f32 %v2310, %v2026
        %v2319 = vadd.f32 %v2311, %v2029
        %v2320 = vadd.f32 %v2312, %v2032
        %v2321 = vadd.f32 %v2313, %v2035
        %v2322 = vadd.f32 %v2314, %v2038
        %s2323 = scalar_lea.vmem [#allocation15], 128
        %v2324 = vld [vmem:[%s2323] sm:$0xff]
        %v2325 = vld [vmem:[%s2323 + $0x8] sm:$0xff]
        %v2326 = vld [vmem:[%s2323 + $0x10] sm:$0xff]
        %v2327 = vld [vmem:[%s2323 + $0x18] sm:$0xff]
        %v2328 = vld [vmem:[%s2323 + $0x20] sm:$0xff]
        %v2329 = vld [vmem:[%s2323 + $0x28] sm:$0xff]
        %v2330 = vld [vmem:[%s2323 + $0x30] sm:$0xff]
        %v2331 = vld [vmem:[%s2323 + $0x38] sm:$0xff]
        %v2332 = vld [vmem:[%s2323 + $0x40] sm:$0xff]
        %v2333 = vld [vmem:[%s2323 + $0x48] sm:$0xff]
        %v2334 = vld [vmem:[%s2323 + $0x50] sm:$0xff]
        %v2335 = vld [vmem:[%s2323 + $0x58] sm:$0xff]
        %v2336 = vld [vmem:[%s2323 + $0x60] sm:$0xff]
        %v2337 = vld [vmem:[%s2323 + $0x68] sm:$0xff]
        %v2338 = vld [vmem:[%s2323 + $0x70] sm:$0xff]
        %v2339 = vld [vmem:[%s2323 + $0x78] sm:$0xff]
        %s2340 = scalar_lea.vmem [#allocation17], 1
        %v2341 = vld [vmem:[%s2340] sm:$0x1]
        %v2343 = vperm.slane %v2341, 0
        %2345 = vmatpush.msra.mxu0 %v2339
        %2346 = vmatpush.msra.mxu0 %v2338
        %2347 = vmatpush.msra.mxu0 %v2337
        %2348 = vmatpush.msra.mxu0 %v2336
        %2349 = vmatpush.msra.mxu0 %v2335
        %2350 = vmatpush.msra.mxu0 %v2334
        %2351 = vmatpush.msra.mxu0 %v2333
        %2352 = vmatpush.msra.mxu0 %v2332
        %2353 = vmatpush.msra.mxu0 %v2331
        %2354 = vmatpush.msra.mxu0 %v2330
        %2355 = vmatpush.msra.mxu0 %v2329
        %2356 = vmatpush.msra.mxu0 %v2328
        %2357 = vmatpush.msra.mxu0 %v2327
        %2358 = vmatpush.msra.mxu0 %v2326
        %2359 = vmatpush.msra.mxu0 %v2325
        %2360 = vmatpush.msra.mxu0 %v2324
        %2361 = vmatmul.f32.gmra.mxu0 %v2315
        %v2362 = vpop.f32.mrf.mxu0
        %v2363 = vadd.f32 %v2343, %v2362
        %2364 = vmatmul.f32.gmra.mxu0 %v2316
        %v2365 = vpop.f32.mrf.mxu0
        %v2366 = vadd.f32 %v2343, %v2365
        %2367 = vmatmul.f32.gmra.mxu0 %v2317
        %v2368 = vpop.f32.mrf.mxu0
        %v2369 = vadd.f32 %v2343, %v2368
        %2370 = vmatmul.f32.gmra.mxu0 %v2318
        %v2371 = vpop.f32.mrf.mxu0
        %v2372 = vadd.f32 %v2343, %v2371
        %2373 = vmatmul.f32.gmra.mxu0 %v2319
        %v2374 = vpop.f32.mrf.mxu0
        %v2375 = vadd.f32 %v2343, %v2374
        %2376 = vmatmul.f32.gmra.mxu0 %v2320
        %v2377 = vpop.f32.mrf.mxu0
        %v2378 = vadd.f32 %v2343, %v2377
        %2379 = vmatmul.f32.gmra.mxu0 %v2321
        %v2380 = vpop.f32.mrf.mxu0
        %v2381 = vadd.f32 %v2343, %v2380
        %2382 = vmatmul.f32.gmra.mxu0 %v2322
        %v2383 = vpop.f32.mrf.mxu0
        %v2384 = vadd.f32 %v2343, %v2383
        %2385 = vdwg.mxu0
        %v2386 = vadd.f32 %v1623, %v2363
        %v2387 = vadd.f32 %v1624, %v2366
        %v2388 = vadd.f32 %v1625, %v2369
        %v2389 = vadd.f32 %v1626, %v2372
        %v2390 = vadd.f32 %v1627, %v2375
        %v2391 = vadd.f32 %v1628, %v2378
        %v2392 = vadd.f32 %v1629, %v2381
        %v2393 = vadd.f32 %v1630, %v2384
        %s2394 = scalar_lea.vmem [#allocation12], 256
        %v2395 = vld [vmem:[%s2394] sm:$0xff]
        %v2396 = vld [vmem:[%s2394 + $0x8] sm:$0xff]
        %v2397 = vld [vmem:[%s2394 + $0x10] sm:$0xff]
        %v2398 = vld [vmem:[%s2394 + $0x18] sm:$0xff]
        %v2399 = vld [vmem:[%s2394 + $0x20] sm:$0xff]
        %v2400 = vld [vmem:[%s2394 + $0x28] sm:$0xff]
        %v2401 = vld [vmem:[%s2394 + $0x30] sm:$0xff]
        %v2402 = vld [vmem:[%s2394 + $0x38] sm:$0xff]
        %v2403 = vld [vmem:[%s2394 + $0x40] sm:$0xff]
        %v2404 = vld [vmem:[%s2394 + $0x48] sm:$0xff]
        %v2405 = vld [vmem:[%s2394 + $0x50] sm:$0xff]
        %v2406 = vld [vmem:[%s2394 + $0x58] sm:$0xff]
        %v2407 = vld [vmem:[%s2394 + $0x60] sm:$0xff]
        %v2408 = vld [vmem:[%s2394 + $0x68] sm:$0xff]
        %v2409 = vld [vmem:[%s2394 + $0x70] sm:$0xff]
        %v2410 = vld [vmem:[%s2394 + $0x78] sm:$0xff]
        %s2411 = scalar_lea.vmem [#allocation14], 2
        %v2412 = vld [vmem:[%s2411] sm:$0x1]
        %v2414 = vperm.slane %v2412, 0
        %2416 = vmatpush.msra.mxu0 %v2410
        %2417 = vmatpush.msra.mxu0 %v2409
        %2418 = vmatpush.msra.mxu0 %v2408
        %2419 = vmatpush.msra.mxu0 %v2407
        %2420 = vmatpush.msra.mxu0 %v2406
        %2421 = vmatpush.msra.mxu0 %v2405
        %2422 = vmatpush.msra.mxu0 %v2404
        %2423 = vmatpush.msra.mxu0 %v2403
        %2424 = vmatpush.msra.mxu0 %v2402
        %2425 = vmatpush.msra.mxu0 %v2401
        %2426 = vmatpush.msra.mxu0 %v2400
        %2427 = vmatpush.msra.mxu0 %v2399
        %2428 = vmatpush.msra.mxu0 %v2398
        %2429 = vmatpush.msra.mxu0 %v2397
        %2430 = vmatpush.msra.mxu0 %v2396
        %2431 = vmatpush.msra.mxu0 %v2395
        %2432 = vmatmul.f32.gmra.mxu0 %v851
        %v2433 = vpop.f32.mrf.mxu0
        %v2434 = vadd.f32 %v2414, %v2433
        %2435 = vmatmul.f32.gmra.mxu0 %v854
        %v2436 = vpop.f32.mrf.mxu0
        %v2437 = vadd.f32 %v2414, %v2436
        %2438 = vmatmul.f32.gmra.mxu0 %v857
        %v2439 = vpop.f32.mrf.mxu0
        %v2440 = vadd.f32 %v2414, %v2439
        %2441 = vmatmul.f32.gmra.mxu0 %v860
        %v2442 = vpop.f32.mrf.mxu0
        %v2443 = vadd.f32 %v2414, %v2442
        %2444 = vmatmul.f32.gmra.mxu0 %v863
        %v2445 = vpop.f32.mrf.mxu0
        %v2446 = vadd.f32 %v2414, %v2445
        %2447 = vmatmul.f32.gmra.mxu0 %v866
        %v2448 = vpop.f32.mrf.mxu0
        %v2449 = vadd.f32 %v2414, %v2448
        %2450 = vmatmul.f32.gmra.mxu0 %v869
        %v2451 = vpop.f32.mrf.mxu0
        %v2452 = vadd.f32 %v2414, %v2451
        %2453 = vmatmul.f32.gmra.mxu0 %v872
        %v2454 = vpop.f32.mrf.mxu0
        %v2455 = vadd.f32 %v2414, %v2454
        %2456 = vdwg.mxu0
        %s2457 = scalar_lea.vmem [#allocation9], 768
        %v2458 = vld [vmem:[%s2457] sm:$0xff]
        %v2459 = vld [vmem:[%s2457 + $0x8] sm:$0xff]
        %v2460 = vld [vmem:[%s2457 + $0x10] sm:$0xff]
        %v2461 = vld [vmem:[%s2457 + $0x18] sm:$0xff]
        %v2462 = vld [vmem:[%s2457 + $0x20] sm:$0xff]
        %v2463 = vld [vmem:[%s2457 + $0x28] sm:$0xff]
        %v2464 = vld [vmem:[%s2457 + $0x30] sm:$0xff]
        %v2465 = vld [vmem:[%s2457 + $0x38] sm:$0xff]
        %v2466 = vld [vmem:[%s2457 + $0x40] sm:$0xff]
        %v2467 = vld [vmem:[%s2457 + $0x48] sm:$0xff]
        %v2468 = vld [vmem:[%s2457 + $0x50] sm:$0xff]
        %v2469 = vld [vmem:[%s2457 + $0x58] sm:$0xff]
        %v2470 = vld [vmem:[%s2457 + $0x60] sm:$0xff]
        %v2471 = vld [vmem:[%s2457 + $0x68] sm:$0xff]
        %v2472 = vld [vmem:[%s2457 + $0x70] sm:$0xff]
        %v2473 = vld [vmem:[%s2457 + $0x78] sm:$0xff]
        %v2474 = vld [vmem:[%s2457 + $0x80] sm:$0xff]
        %v2475 = vld [vmem:[%s2457 + $0x88] sm:$0xff]
        %v2476 = vld [vmem:[%s2457 + $0x90] sm:$0xff]
        %v2477 = vld [vmem:[%s2457 + $0x98] sm:$0xff]
        %v2478 = vld [vmem:[%s2457 + $0xa0] sm:$0xff]
        %v2479 = vld [vmem:[%s2457 + $0xa8] sm:$0xff]
        %v2480 = vld [vmem:[%s2457 + $0xb0] sm:$0xff]
        %v2481 = vld [vmem:[%s2457 + $0xb8] sm:$0xff]
        %v2482 = vld [vmem:[%s2457 + $0xc0] sm:$0xff]
        %v2483 = vld [vmem:[%s2457 + $0xc8] sm:$0xff]
        %v2484 = vld [vmem:[%s2457 + $0xd0] sm:$0xff]
        %v2485 = vld [vmem:[%s2457 + $0xd8] sm:$0xff]
        %v2486 = vld [vmem:[%s2457 + $0xe0] sm:$0xff]
        %v2487 = vld [vmem:[%s2457 + $0xe8] sm:$0xff]
        %v2488 = vld [vmem:[%s2457 + $0xf0] sm:$0xff]
        %v2489 = vld [vmem:[%s2457 + $0xf8] sm:$0xff]
        %v2490 = vld [vmem:[%s2457 + $0x100] sm:$0xff]
        %v2491 = vld [vmem:[%s2457 + $0x108] sm:$0xff]
        %v2492 = vld [vmem:[%s2457 + $0x110] sm:$0xff]
        %v2493 = vld [vmem:[%s2457 + $0x118] sm:$0xff]
        %v2494 = vld [vmem:[%s2457 + $0x120] sm:$0xff]
        %v2495 = vld [vmem:[%s2457 + $0x128] sm:$0xff]
        %v2496 = vld [vmem:[%s2457 + $0x130] sm:$0xff]
        %v2497 = vld [vmem:[%s2457 + $0x138] sm:$0xff]
        %v2498 = vld [vmem:[%s2457 + $0x140] sm:$0xff]
        %v2499 = vld [vmem:[%s2457 + $0x148] sm:$0xff]
        %v2500 = vld [vmem:[%s2457 + $0x150] sm:$0xff]
        %v2501 = vld [vmem:[%s2457 + $0x158] sm:$0xff]
        %v2502 = vld [vmem:[%s2457 + $0x160] sm:$0xff]
        %v2503 = vld [vmem:[%s2457 + $0x168] sm:$0xff]
        %v2504 = vld [vmem:[%s2457 + $0x170] sm:$0xff]
        %v2505 = vld [vmem:[%s2457 + $0x178] sm:$0xff]
        %s2506 = scalar_lea.vmem [#allocation11], 2
        %v2507 = vld [vmem:[%s2506] sm:$0x1]
        %2508 = vst [vmem:[#allocation2 + $0x8] sm:$0xff] %v851
        %2509 = vst [vmem:[#allocation2 + $0x10] sm:$0xff] %v854
        %2510 = vst [vmem:[#allocation2 + $0x18] sm:$0xff] %v857
        %2511 = vst [vmem:[#allocation2 + $0x20] sm:$0xff] %v860
        %2512 = vst [vmem:[#allocation2 + $0x28] sm:$0xff] %v863
        %2513 = vst [vmem:[#allocation2 + $0x30] sm:$0xff] %v866
        %2514 = vst [vmem:[#allocation2 + $0x38] sm:$0xff] %v869
        %2515 = vst [vmem:[#allocation2 + $0x40] sm:$0xff] %v872
        %v2516 = vld [vmem:[#allocation2] sm:$0xff]
        %v2517 = vld [vmem:[#allocation2 + $0x8] sm:$0xff]
        %v2518 = vld [vmem:[#allocation2 + $0x10] sm:$0xff]
        %v2519 = vld [vmem:[#allocation2 + $0x18] sm:$0xff]
        %v2520 = vld [vmem:[#allocation2 + $0x20] sm:$0xff]
        %v2521 = vld [vmem:[#allocation2 + $0x28] sm:$0xff]
        %v2522 = vld [vmem:[#allocation2 + $0x30] sm:$0xff]
        %v2523 = vld [vmem:[#allocation2 + $0x38] sm:$0xff]
        %v2524 = vld [vmem:[#allocation2 + $0x4] sm:$0xff]
        %v2525 = vld [vmem:[#allocation2 + $0xc] sm:$0xff]
        %v2526 = vld [vmem:[#allocation2 + $0x14] sm:$0xff]
        %v2527 = vld [vmem:[#allocation2 + $0x1c] sm:$0xff]
        %v2528 = vld [vmem:[#allocation2 + $0x24] sm:$0xff]
        %v2529 = vld [vmem:[#allocation2 + $0x2c] sm:$0xff]
        %v2530 = vld [vmem:[#allocation2 + $0x34] sm:$0xff]
        %v2531 = vld [vmem:[#allocation2 + $0x3c] sm:$0xff]
        %v2532 = vld [vmem:[#allocation2 + $0x8] sm:$0xff]
        %v2533 = vld [vmem:[#allocation2 + $0x10] sm:$0xff]
        %v2534 = vld [vmem:[#allocation2 + $0x18] sm:$0xff]
        %v2535 = vld [vmem:[#allocation2 + $0x20] sm:$0xff]
        %v2536 = vld [vmem:[#allocation2 + $0x28] sm:$0xff]
        %v2537 = vld [vmem:[#allocation2 + $0x30] sm:$0xff]
        %v2538 = vld [vmem:[#allocation2 + $0x38] sm:$0xff]
        %v2539 = vld [vmem:[#allocation2 + $0x40] sm:$0xff]
        %v2541 = vperm.slane %v2507, 0
        %2543 = vmatpush.msra.mxu0 %v2473
        %2544 = vmatpush.msra.mxu0 %v2472
        %2545 = vmatpush.msra.mxu0 %v2471
        %2546 = vmatpush.msra.mxu0 %v2470
        %2547 = vmatpush.msra.mxu0 %v2469
        %2548 = vmatpush.msra.mxu0 %v2468
        %2549 = vmatpush.msra.mxu0 %v2467
        %2550 = vmatpush.msra.mxu0 %v2466
        %2551 = vmatpush.msra.mxu0 %v2465
        %2552 = vmatpush.msra.mxu0 %v2464
        %2553 = vmatpush.msra.mxu0 %v2463
        %2554 = vmatpush.msra.mxu0 %v2462
        %2555 = vmatpush.msra.mxu0 %v2461
        %2556 = vmatpush.msra.mxu0 %v2460
        %2557 = vmatpush.msra.mxu0 %v2459
        %2558 = vmatpush.msra.mxu0 %v2458
        %2559 = vmatmul.f32.gmra.mxu0 %v2516
        %v2560 = vpop.f32.mrf.mxu0
        %v2561 = vadd.f32 %v2541, %v2560
        %2562 = vmatmul.f32.gmra.mxu0 %v2517
        %v2563 = vpop.f32.mrf.mxu0
        %v2564 = vadd.f32 %v2541, %v2563
        %2565 = vmatmul.f32.gmra.mxu0 %v2518
        %v2566 = vpop.f32.mrf.mxu0
        %v2567 = vadd.f32 %v2541, %v2566
        %2568 = vmatmul.f32.gmra.mxu0 %v2519
        %v2569 = vpop.f32.mrf.mxu0
        %v2570 = vadd.f32 %v2541, %v2569
        %2571 = vmatmul.f32.gmra.mxu0 %v2520
        %v2572 = vpop.f32.mrf.mxu0
        %v2573 = vadd.f32 %v2541, %v2572
        %2574 = vmatmul.f32.gmra.mxu0 %v2521
        %v2575 = vpop.f32.mrf.mxu0
        %v2576 = vadd.f32 %v2541, %v2575
        %2577 = vmatmul.f32.gmra.mxu0 %v2522
        %v2578 = vpop.f32.mrf.mxu0
        %v2579 = vadd.f32 %v2541, %v2578
        %2580 = vmatmul.f32.gmra.mxu0 %v2523
        %v2581 = vpop.f32.mrf.mxu0
        %v2582 = vadd.f32 %v2541, %v2581
        %2583 = vdwg.mxu0
        %2584 = vmatpush.msra.mxu0 %v2489
        %2585 = vmatpush.msra.mxu0 %v2488
        %2586 = vmatpush.msra.mxu0 %v2487
        %2587 = vmatpush.msra.mxu0 %v2486
        %2588 = vmatpush.msra.mxu0 %v2485
        %2589 = vmatpush.msra.mxu0 %v2484
        %2590 = vmatpush.msra.mxu0 %v2483
        %2591 = vmatpush.msra.mxu0 %v2482
        %2592 = vmatpush.msra.mxu0 %v2481
        %2593 = vmatpush.msra.mxu0 %v2480
        %2594 = vmatpush.msra.mxu0 %v2479
        %2595 = vmatpush.msra.mxu0 %v2478
        %2596 = vmatpush.msra.mxu0 %v2477
        %2597 = vmatpush.msra.mxu0 %v2476
        %2598 = vmatpush.msra.mxu0 %v2475
        %2599 = vmatpush.msra.mxu0 %v2474
        %2600 = vmatmul.f32.gmra.mxu0 %v2524
        %v2601 = vpop.f32.mrf.mxu0
        %v2602 = vadd.f32 %v2561, %v2601
        %2603 = vmatmul.f32.gmra.mxu0 %v2525
        %v2604 = vpop.f32.mrf.mxu0
        %v2605 = vadd.f32 %v2564, %v2604
        %2606 = vmatmul.f32.gmra.mxu0 %v2526
        %v2607 = vpop.f32.mrf.mxu0
        %v2608 = vadd.f32 %v2567, %v2607
        %2609 = vmatmul.f32.gmra.mxu0 %v2527
        %v2610 = vpop.f32.mrf.mxu0
        %v2611 = vadd.f32 %v2570, %v2610
        %2612 = vmatmul.f32.gmra.mxu0 %v2528
        %v2613 = vpop.f32.mrf.mxu0
        %v2614 = vadd.f32 %v2573, %v2613
        %2615 = vmatmul.f32.gmra.mxu0 %v2529
        %v2616 = vpop.f32.mrf.mxu0
        %v2617 = vadd.f32 %v2576, %v2616
        %2618 = vmatmul.f32.gmra.mxu0 %v2530
        %v2619 = vpop.f32.mrf.mxu0
        %v2620 = vadd.f32 %v2579, %v2619
        %2621 = vmatmul.f32.gmra.mxu0 %v2531
        %v2622 = vpop.f32.mrf.mxu0
        %v2623 = vadd.f32 %v2582, %v2622
        %2624 = vdwg.mxu0
        %2625 = vmatpush.msra.mxu0 %v2505
        %2626 = vmatpush.msra.mxu0 %v2504
        %2627 = vmatpush.msra.mxu0 %v2503
        %2628 = vmatpush.msra.mxu0 %v2502
        %2629 = vmatpush.msra.mxu0 %v2501
        %2630 = vmatpush.msra.mxu0 %v2500
        %2631 = vmatpush.msra.mxu0 %v2499
        %2632 = vmatpush.msra.mxu0 %v2498
        %2633 = vmatpush.msra.mxu0 %v2497
        %2634 = vmatpush.msra.mxu0 %v2496
        %2635 = vmatpush.msra.mxu0 %v2495
        %2636 = vmatpush.msra.mxu0 %v2494
        %2637 = vmatpush.msra.mxu0 %v2493
        %2638 = vmatpush.msra.mxu0 %v2492
        %2639 = vmatpush.msra.mxu0 %v2491
        %2640 = vmatpush.msra.mxu0 %v2490
        %2641 = vmatmul.f32.gmra.mxu0 %v2532
        %v2642 = vpop.f32.mrf.mxu0
        %v2643 = vadd.f32 %v2602, %v2642
        %2644 = vmatmul.f32.gmra.mxu0 %v2533
        %v2645 = vpop.f32.mrf.mxu0
        %v2646 = vadd.f32 %v2605, %v2645
        %2647 = vmatmul.f32.gmra.mxu0 %v2534
        %v2648 = vpop.f32.mrf.mxu0
        %v2649 = vadd.f32 %v2608, %v2648
        %2650 = vmatmul.f32.gmra.mxu0 %v2535
        %v2651 = vpop.f32.mrf.mxu0
        %v2652 = vadd.f32 %v2611, %v2651
        %2653 = vmatmul.f32.gmra.mxu0 %v2536
        %v2654 = vpop.f32.mrf.mxu0
        %v2655 = vadd.f32 %v2614, %v2654
        %2656 = vmatmul.f32.gmra.mxu0 %v2537
        %v2657 = vpop.f32.mrf.mxu0
        %v2658 = vadd.f32 %v2617, %v2657
        %2659 = vmatmul.f32.gmra.mxu0 %v2538
        %v2660 = vpop.f32.mrf.mxu0
        %v2661 = vadd.f32 %v2620, %v2660
        %2662 = vmatmul.f32.gmra.mxu0 %v2539
        %v2663 = vpop.f32.mrf.mxu0
        %v2664 = vadd.f32 %v2623, %v2663
        %2665 = vdwg.mxu0
        %v2666 = vperm.slane %v657, 2
        %v2667 = vmul.f32 %v2643, %v2666
        %v2668 = vmul.f32 %v2646, %v2666
        %v2669 = vmul.f32 %v2649, %v2666
        %v2670 = vmul.f32 %v2652, %v2666
        %v2671 = vmul.f32 %v2655, %v2666
        %v2672 = vmul.f32 %v2658, %v2666
        %v2673 = vmul.f32 %v2661, %v2666
        %v2674 = vmul.f32 %v2664, %v2666
        %v2675 = vperm.slane %v658, 2
        %v2676 = vadd.f32 %v2667, %v2675
        %v2677 = vadd.f32 %v2668, %v2675
        %v2678 = vadd.f32 %v2669, %v2675
        %v2679 = vadd.f32 %v2670, %v2675
        %v2680 = vadd.f32 %v2671, %v2675
        %v2681 = vadd.f32 %v2672, %v2675
        %v2682 = vadd.f32 %v2673, %v2675
        %v2683 = vadd.f32 %v2674, %v2675
        %v2684 = vtanh.pop %v2676
        %v2685 = vtanh.pop %v2677
        %v2686 = vtanh.pop %v2678
        %v2687 = vtanh.pop %v2679
        %v2688 = vtanh.pop %v2680
        %v2689 = vtanh.pop %v2681
        %v2690 = vtanh.pop %v2682
        %v2691 = vtanh.pop %v2683
        %v2692 = vmul.f32 %v2676, 0.5
        %v2693 = vmul.f32 %v2677, 0.5
        %v2694 = vmul.f32 %v2678, 0.5
        %v2695 = vmul.f32 %v2679, 0.5
        %v2696 = vmul.f32 %v2680, 0.5
        %v2697 = vmul.f32 %v2681, 0.5
        %v2698 = vmul.f32 %v2682, 0.5
        %v2699 = vmul.f32 %v2683, 0.5
        %v2700 = vtanh.pop %v2692
        %v2701 = vtanh.pop %v2693
        %v2702 = vtanh.pop %v2694
        %v2703 = vtanh.pop %v2695
        %v2704 = vtanh.pop %v2696
        %v2705 = vtanh.pop %v2697
        %v2706 = vtanh.pop %v2698
        %v2707 = vtanh.pop %v2699
        %v2708 = vmul.f32 %v2700, 0.5
        %v2709 = vmul.f32 %v2701, 0.5
        %v2710 = vmul.f32 %v2702, 0.5
        %v2711 = vmul.f32 %v2703, 0.5
        %v2712 = vmul.f32 %v2704, 0.5
        %v2713 = vmul.f32 %v2705, 0.5
        %v2714 = vmul.f32 %v2706, 0.5
        %v2715 = vmul.f32 %v2707, 0.5
        %v2716 = vadd.f32 %v2708, 0.5
        %v2717 = vadd.f32 %v2709, 0.5
        %v2718 = vadd.f32 %v2710, 0.5
        %v2719 = vadd.f32 %v2711, 0.5
        %v2720 = vadd.f32 %v2712, 0.5
        %v2721 = vadd.f32 %v2713, 0.5
        %v2722 = vadd.f32 %v2714, 0.5
        %v2723 = vadd.f32 %v2715, 0.5
        %v2724 = vmul.f32 %v2684, %v2716
        %v2725 = vmul.f32 %v2685, %v2717
        %v2726 = vmul.f32 %v2686, %v2718
        %v2727 = vmul.f32 %v2687, %v2719
        %v2728 = vmul.f32 %v2688, %v2720
        %v2729 = vmul.f32 %v2689, %v2721
        %v2730 = vmul.f32 %v2690, %v2722
        %v2731 = vmul.f32 %v2691, %v2723
        %v2732 = vadd.f32 %v2724, %v2434
        %v2733 = vadd.f32 %v2725, %v2437
        %v2734 = vadd.f32 %v2726, %v2440
        %v2735 = vadd.f32 %v2727, %v2443
        %v2736 = vadd.f32 %v2728, %v2446
        %v2737 = vadd.f32 %v2729, %v2449
        %v2738 = vadd.f32 %v2730, %v2452
        %v2739 = vadd.f32 %v2731, %v2455
        %s2740 = scalar_lea.vmem [#allocation12], 640
        %v2741 = vld [vmem:[%s2740] sm:$0xff]
        %v2742 = vld [vmem:[%s2740 + $0x8] sm:$0xff]
        %v2743 = vld [vmem:[%s2740 + $0x10] sm:$0xff]
        %v2744 = vld [vmem:[%s2740 + $0x18] sm:$0xff]
        %v2745 = vld [vmem:[%s2740 + $0x20] sm:$0xff]
        %v2746 = vld [vmem:[%s2740 + $0x28] sm:$0xff]
        %v2747 = vld [vmem:[%s2740 + $0x30] sm:$0xff]
        %v2748 = vld [vmem:[%s2740 + $0x38] sm:$0xff]
        %v2749 = vld [vmem:[%s2740 + $0x40] sm:$0xff]
        %v2750 = vld [vmem:[%s2740 + $0x48] sm:$0xff]
        %v2751 = vld [vmem:[%s2740 + $0x50] sm:$0xff]
        %v2752 = vld [vmem:[%s2740 + $0x58] sm:$0xff]
        %v2753 = vld [vmem:[%s2740 + $0x60] sm:$0xff]
        %v2754 = vld [vmem:[%s2740 + $0x68] sm:$0xff]
        %v2755 = vld [vmem:[%s2740 + $0x70] sm:$0xff]
        %v2756 = vld [vmem:[%s2740 + $0x78] sm:$0xff]
        %s2757 = scalar_lea.vmem [#allocation14], 5
        %v2758 = vld [vmem:[%s2757] sm:$0x1]
        %v2760 = vperm.slane %v2758, 0
        %2762 = vmatpush.msra.mxu0 %v2756
        %2763 = vmatpush.msra.mxu0 %v2755
        %2764 = vmatpush.msra.mxu0 %v2754
        %2765 = vmatpush.msra.mxu0 %v2753
        %2766 = vmatpush.msra.mxu0 %v2752
        %2767 = vmatpush.msra.mxu0 %v2751
        %2768 = vmatpush.msra.mxu0 %v2750
        %2769 = vmatpush.msra.mxu0 %v2749
        %2770 = vmatpush.msra.mxu0 %v2748
        %2771 = vmatpush.msra.mxu0 %v2747
        %2772 = vmatpush.msra.mxu0 %v2746
        %2773 = vmatpush.msra.mxu0 %v2745
        %2774 = vmatpush.msra.mxu0 %v2744
        %2775 = vmatpush.msra.mxu0 %v2743
        %2776 = vmatpush.msra.mxu0 %v2742
        %2777 = vmatpush.msra.mxu0 %v2741
        %2778 = vmatmul.f32.gmra.mxu0 %v2732
        %v2779 = vpop.f32.mrf.mxu0
        %v2780 = vadd.f32 %v2760, %v2779
        %2781 = vmatmul.f32.gmra.mxu0 %v2733
        %v2782 = vpop.f32.mrf.mxu0
        %v2783 = vadd.f32 %v2760, %v2782
        %2784 = vmatmul.f32.gmra.mxu0 %v2734
        %v2785 = vpop.f32.mrf.mxu0
        %v2786 = vadd.f32 %v2760, %v2785
        %2787 = vmatmul.f32.gmra.mxu0 %v2735
        %v2788 = vpop.f32.mrf.mxu0
        %v2789 = vadd.f32 %v2760, %v2788
        %2790 = vmatmul.f32.gmra.mxu0 %v2736
        %v2791 = vpop.f32.mrf.mxu0
        %v2792 = vadd.f32 %v2760, %v2791
        %2793 = vmatmul.f32.gmra.mxu0 %v2737
        %v2794 = vpop.f32.mrf.mxu0
        %v2795 = vadd.f32 %v2760, %v2794
        %2796 = vmatmul.f32.gmra.mxu0 %v2738
        %v2797 = vpop.f32.mrf.mxu0
        %v2798 = vadd.f32 %v2760, %v2797
        %2799 = vmatmul.f32.gmra.mxu0 %v2739
        %v2800 = vpop.f32.mrf.mxu0
        %v2801 = vadd.f32 %v2760, %v2800
        %2802 = vdwg.mxu0
        %s2803 = scalar_lea.vmem [#allocation9], 1920
        %v2804 = vld [vmem:[%s2803] sm:$0xff]
        %v2805 = vld [vmem:[%s2803 + $0x8] sm:$0xff]
        %v2806 = vld [vmem:[%s2803 + $0x10] sm:$0xff]
        %v2807 = vld [vmem:[%s2803 + $0x18] sm:$0xff]
        %v2808 = vld [vmem:[%s2803 + $0x20] sm:$0xff]
        %v2809 = vld [vmem:[%s2803 + $0x28] sm:$0xff]
        %v2810 = vld [vmem:[%s2803 + $0x30] sm:$0xff]
        %v2811 = vld [vmem:[%s2803 + $0x38] sm:$0xff]
        %v2812 = vld [vmem:[%s2803 + $0x40] sm:$0xff]
        %v2813 = vld [vmem:[%s2803 + $0x48] sm:$0xff]
        %v2814 = vld [vmem:[%s2803 + $0x50] sm:$0xff]
        %v2815 = vld [vmem:[%s2803 + $0x58] sm:$0xff]
        %v2816 = vld [vmem:[%s2803 + $0x60] sm:$0xff]
        %v2817 = vld [vmem:[%s2803 + $0x68] sm:$0xff]
        %v2818 = vld [vmem:[%s2803 + $0x70] sm:$0xff]
        %v2819 = vld [vmem:[%s2803 + $0x78] sm:$0xff]
        %v2820 = vld [vmem:[%s2803 + $0x80] sm:$0xff]
        %v2821 = vld [vmem:[%s2803 + $0x88] sm:$0xff]
        %v2822 = vld [vmem:[%s2803 + $0x90] sm:$0xff]
        %v2823 = vld [vmem:[%s2803 + $0x98] sm:$0xff]
        %v2824 = vld [vmem:[%s2803 + $0xa0] sm:$0xff]
        %v2825 = vld [vmem:[%s2803 + $0xa8] sm:$0xff]
        %v2826 = vld [vmem:[%s2803 + $0xb0] sm:$0xff]
        %v2827 = vld [vmem:[%s2803 + $0xb8] sm:$0xff]
        %v2828 = vld [vmem:[%s2803 + $0xc0] sm:$0xff]
        %v2829 = vld [vmem:[%s2803 + $0xc8] sm:$0xff]
        %v2830 = vld [vmem:[%s2803 + $0xd0] sm:$0xff]
        %v2831 = vld [vmem:[%s2803 + $0xd8] sm:$0xff]
        %v2832 = vld [vmem:[%s2803 + $0xe0] sm:$0xff]
        %v2833 = vld [vmem:[%s2803 + $0xe8] sm:$0xff]
        %v2834 = vld [vmem:[%s2803 + $0xf0] sm:$0xff]
        %v2835 = vld [vmem:[%s2803 + $0xf8] sm:$0xff]
        %v2836 = vld [vmem:[%s2803 + $0x100] sm:$0xff]
        %v2837 = vld [vmem:[%s2803 + $0x108] sm:$0xff]
        %v2838 = vld [vmem:[%s2803 + $0x110] sm:$0xff]
        %v2839 = vld [vmem:[%s2803 + $0x118] sm:$0xff]
        %v2840 = vld [vmem:[%s2803 + $0x120] sm:$0xff]
        %v2841 = vld [vmem:[%s2803 + $0x128] sm:$0xff]
        %v2842 = vld [vmem:[%s2803 + $0x130] sm:$0xff]
        %v2843 = vld [vmem:[%s2803 + $0x138] sm:$0xff]
        %v2844 = vld [vmem:[%s2803 + $0x140] sm:$0xff]
        %v2845 = vld [vmem:[%s2803 + $0x148] sm:$0xff]
        %v2846 = vld [vmem:[%s2803 + $0x150] sm:$0xff]
        %v2847 = vld [vmem:[%s2803 + $0x158] sm:$0xff]
        %v2848 = vld [vmem:[%s2803 + $0x160] sm:$0xff]
        %v2849 = vld [vmem:[%s2803 + $0x168] sm:$0xff]
        %v2850 = vld [vmem:[%s2803 + $0x170] sm:$0xff]
        %v2851 = vld [vmem:[%s2803 + $0x178] sm:$0xff]
        %s2852 = scalar_lea.vmem [#allocation11], 5
        %v2853 = vld [vmem:[%s2852] sm:$0x1]
        %2854 = vst [vmem:[#allocation2 + $0x8] sm:$0xff] %v2732
        %2855 = vst [vmem:[#allocation2 + $0x10] sm:$0xff] %v2733
        %2856 = vst [vmem:[#allocation2 + $0x18] sm:$0xff] %v2734
        %2857 = vst [vmem:[#allocation2 + $0x20] sm:$0xff] %v2735
        %2858 = vst [vmem:[#allocation2 + $0x28] sm:$0xff] %v2736
        %2859 = vst [vmem:[#allocation2 + $0x30] sm:$0xff] %v2737
        %2860 = vst [vmem:[#allocation2 + $0x38] sm:$0xff] %v2738
        %2861 = vst [vmem:[#allocation2 + $0x40] sm:$0xff] %v2739
        %v2862 = vld [vmem:[#allocation2] sm:$0xff]
        %v2863 = vld [vmem:[#allocation2 + $0x8] sm:$0xff]
        %v2864 = vld [vmem:[#allocation2 + $0x10] sm:$0xff]
        %v2865 = vld [vmem:[#allocation2 + $0x18] sm:$0xff]
        %v2866 = vld [vmem:[#allocation2 + $0x20] sm:$0xff]
        %v2867 = vld [vmem:[#allocation2 + $0x28] sm:$0xff]
        %v2868 = vld [vmem:[#allocation2 + $0x30] sm:$0xff]
        %v2869 = vld [vmem:[#allocation2 + $0x38] sm:$0xff]
        %v2870 = vld [vmem:[#allocation2 + $0x4] sm:$0xff]
        %v2871 = vld [vmem:[#allocation2 + $0xc] sm:$0xff]
        %v2872 = vld [vmem:[#allocation2 + $0x14] sm:$0xff]
        %v2873 = vld [vmem:[#allocation2 + $0x1c] sm:$0xff]
        %v2874 = vld [vmem:[#allocation2 + $0x24] sm:$0xff]
        %v2875 = vld [vmem:[#allocation2 + $0x2c] sm:$0xff]
        %v2876 = vld [vmem:[#allocation2 + $0x34] sm:$0xff]
        %v2877 = vld [vmem:[#allocation2 + $0x3c] sm:$0xff]
        %v2878 = vld [vmem:[#allocation2 + $0x8] sm:$0xff]
        %v2879 = vld [vmem:[#allocation2 + $0x10] sm:$0xff]
        %v2880 = vld [vmem:[#allocation2 + $0x18] sm:$0xff]
        %v2881 = vld [vmem:[#allocation2 + $0x20] sm:$0xff]
        %v2882 = vld [vmem:[#allocation2 + $0x28] sm:$0xff]
        %v2883 = vld [vmem:[#allocation2 + $0x30] sm:$0xff]
        %v2884 = vld [vmem:[#allocation2 + $0x38] sm:$0xff]
        %v2885 = vld [vmem:[#allocation2 + $0x40] sm:$0xff]
        %v2887 = vperm.slane %v2853, 0
        %2889 = vmatpush.msra.mxu0 %v2819
        %2890 = vmatpush.msra.mxu0 %v2818
        %2891 = vmatpush.msra.mxu0 %v2817
        %2892 = vmatpush.msra.mxu0 %v2816
        %2893 = vmatpush.msra.mxu0 %v2815
        %2894 = vmatpush.msra.mxu0 %v2814
        %2895 = vmatpush.msra.mxu0 %v2813
        %2896 = vmatpush.msra.mxu0 %v2812
        %2897 = vmatpush.msra.mxu0 %v2811
        %2898 = vmatpush.msra.mxu0 %v2810
        %2899 = vmatpush.msra.mxu0 %v2809
        %2900 = vmatpush.msra.mxu0 %v2808
        %2901 = vmatpush.msra.mxu0 %v2807
        %2902 = vmatpush.msra.mxu0 %v2806
        %2903 = vmatpush.msra.mxu0 %v2805
        %2904 = vmatpush.msra.mxu0 %v2804
        %2905 = vmatmul.f32.gmra.mxu0 %v2862
        %v2906 = vpop.f32.mrf.mxu0
        %v2907 = vadd.f32 %v2887, %v2906
        %2908 = vmatmul.f32.gmra.mxu0 %v2863
        %v2909 = vpop.f32.mrf.mxu0
        %v2910 = vadd.f32 %v2887, %v2909
        %2911 = vmatmul.f32.gmra.mxu0 %v2864
        %v2912 = vpop.f32.mrf.mxu0
        %v2913 = vadd.f32 %v2887, %v2912
        %2914 = vmatmul.f32.gmra.mxu0 %v2865
        %v2915 = vpop.f32.mrf.mxu0
        %v2916 = vadd.f32 %v2887, %v2915
        %2917 = vmatmul.f32.gmra.mxu0 %v2866
        %v2918 = vpop.f32.mrf.mxu0
        %v2919 = vadd.f32 %v2887, %v2918
        %2920 = vmatmul.f32.gmra.mxu0 %v2867
        %v2921 = vpop.f32.mrf.mxu0
        %v2922 = vadd.f32 %v2887, %v2921
        %2923 = vmatmul.f32.gmra.mxu0 %v2868
        %v2924 = vpop.f32.mrf.mxu0
        %v2925 = vadd.f32 %v2887, %v2924
        %2926 = vmatmul.f32.gmra.mxu0 %v2869
        %v2927 = vpop.f32.mrf.mxu0
        %v2928 = vadd.f32 %v2887, %v2927
        %2929 = vdwg.mxu0
        %2930 = vmatpush.msra.mxu0 %v2835
        %2931 = vmatpush.msra.mxu0 %v2834
        %2932 = vmatpush.msra.mxu0 %v2833
        %2933 = vmatpush.msra.mxu0 %v2832
        %2934 = vmatpush.msra.mxu0 %v2831
        %2935 = vmatpush.msra.mxu0 %v2830
        %2936 = vmatpush.msra.mxu0 %v2829
        %2937 = vmatpush.msra.mxu0 %v2828
        %2938 = vmatpush.msra.mxu0 %v2827
        %2939 = vmatpush.msra.mxu0 %v2826
        %2940 = vmatpush.msra.mxu0 %v2825
        %2941 = vmatpush.msra.mxu0 %v2824
        %2942 = vmatpush.msra.mxu0 %v2823
        %2943 = vmatpush.msra.mxu0 %v2822
        %2944 = vmatpush.msra.mxu0 %v2821
        %2945 = vmatpush.msra.mxu0 %v2820
        %2946 = vmatmul.f32.gmra.mxu0 %v2870
        %v2947 = vpop.f32.mrf.mxu0
        %v2948 = vadd.f32 %v2907, %v2947
        %2949 = vmatmul.f32.gmra.mxu0 %v2871
        %v2950 = vpop.f32.mrf.mxu0
        %v2951 = vadd.f32 %v2910, %v2950
        %2952 = vmatmul.f32.gmra.mxu0 %v2872
        %v2953 = vpop.f32.mrf.mxu0
        %v2954 = vadd.f32 %v2913, %v2953
        %2955 = vmatmul.f32.gmra.mxu0 %v2873
        %v2956 = vpop.f32.mrf.mxu0
        %v2957 = vadd.f32 %v2916, %v2956
        %2958 = vmatmul.f32.gmra.mxu0 %v2874
        %v2959 = vpop.f32.mrf.mxu0
        %v2960 = vadd.f32 %v2919, %v2959
        %2961 = vmatmul.f32.gmra.mxu0 %v2875
        %v2962 = vpop.f32.mrf.mxu0
        %v2963 = vadd.f32 %v2922, %v2962
        %2964 = vmatmul.f32.gmra.mxu0 %v2876
        %v2965 = vpop.f32.mrf.mxu0
        %v2966 = vadd.f32 %v2925, %v2965
        %2967 = vmatmul.f32.gmra.mxu0 %v2877
        %v2968 = vpop.f32.mrf.mxu0
        %v2969 = vadd.f32 %v2928, %v2968
        %2970 = vdwg.mxu0
        %2971 = vmatpush.msra.mxu0 %v2851
        %2972 = vmatpush.msra.mxu0 %v2850
        %2973 = vmatpush.msra.mxu0 %v2849
        %2974 = vmatpush.msra.mxu0 %v2848
        %2975 = vmatpush.msra.mxu0 %v2847
        %2976 = vmatpush.msra.mxu0 %v2846
        %2977 = vmatpush.msra.mxu0 %v2845
        %2978 = vmatpush.msra.mxu0 %v2844
        %2979 = vmatpush.msra.mxu0 %v2843
        %2980 = vmatpush.msra.mxu0 %v2842
        %2981 = vmatpush.msra.mxu0 %v2841
        %2982 = vmatpush.msra.mxu0 %v2840
        %2983 = vmatpush.msra.mxu0 %v2839
        %2984 = vmatpush.msra.mxu0 %v2838
        %2985 = vmatpush.msra.mxu0 %v2837
        %2986 = vmatpush.msra.mxu0 %v2836
        %2987 = vmatmul.f32.gmra.mxu0 %v2878
        %v2988 = vpop.f32.mrf.mxu0
        %v2989 = vadd.f32 %v2948, %v2988
        %2990 = vmatmul.f32.gmra.mxu0 %v2879
        %v2991 = vpop.f32.mrf.mxu0
        %v2992 = vadd.f32 %v2951, %v2991
        %2993 = vmatmul.f32.gmra.mxu0 %v2880
        %v2994 = vpop.f32.mrf.mxu0
        %v2995 = vadd.f32 %v2954, %v2994
        %2996 = vmatmul.f32.gmra.mxu0 %v2881
        %v2997 = vpop.f32.mrf.mxu0
        %v2998 = vadd.f32 %v2957, %v2997
        %2999 = vmatmul.f32.gmra.mxu0 %v2882
        %v3000 = vpop.f32.mrf.mxu0
        %v3001 = vadd.f32 %v2960, %v3000
        %3002 = vmatmul.f32.gmra.mxu0 %v2883
        %v3003 = vpop.f32.mrf.mxu0
        %v3004 = vadd.f32 %v2963, %v3003
        %3005 = vmatmul.f32.gmra.mxu0 %v2884
        %v3006 = vpop.f32.mrf.mxu0
        %v3007 = vadd.f32 %v2966, %v3006
        %3008 = vmatmul.f32.gmra.mxu0 %v2885
        %v3009 = vpop.f32.mrf.mxu0
        %v3010 = vadd.f32 %v2969, %v3009
        %3011 = vdwg.mxu0
        %v3012 = vperm.slane %v657, 5
        %v3013 = vmul.f32 %v2989, %v3012
        %v3014 = vmul.f32 %v2992, %v3012
        %v3015 = vmul.f32 %v2995, %v3012
        %v3016 = vmul.f32 %v2998, %v3012
        %v3017 = vmul.f32 %v3001, %v3012
        %v3018 = vmul.f32 %v3004, %v3012
        %v3019 = vmul.f32 %v3007, %v3012
        %v3020 = vmul.f32 %v3010, %v3012
        %v3021 = vperm.slane %v658, 5
        %v3022 = vadd.f32 %v3013, %v3021
        %v3023 = vadd.f32 %v3014, %v3021
        %v3024 = vadd.f32 %v3015, %v3021
        %v3025 = vadd.f32 %v3016, %v3021
        %v3026 = vadd.f32 %v3017, %v3021
        %v3027 = vadd.f32 %v3018, %v3021
        %v3028 = vadd.f32 %v3019, %v3021
        %v3029 = vadd.f32 %v3020, %v3021
        %v3030 = vtanh.pop %v3022
        %v3031 = vtanh.pop %v3023
        %v3032 = vtanh.pop %v3024
        %v3033 = vtanh.pop %v3025
        %v3034 = vtanh.pop %v3026
        %v3035 = vtanh.pop %v3027
        %v3036 = vtanh.pop %v3028
        %v3037 = vtanh.pop %v3029
        %v3038 = vmul.f32 %v3022, 0.5
        %v3039 = vmul.f32 %v3023, 0.5
        %v3040 = vmul.f32 %v3024, 0.5
        %v3041 = vmul.f32 %v3025, 0.5
        %v3042 = vmul.f32 %v3026, 0.5
        %v3043 = vmul.f32 %v3027, 0.5
        %v3044 = vmul.f32 %v3028, 0.5
        %v3045 = vmul.f32 %v3029, 0.5
        %v3046 = vtanh.pop %v3038
        %v3047 = vtanh.pop %v3039
        %v3048 = vtanh.pop %v3040
        %v3049 = vtanh.pop %v3041
        %v3050 = vtanh.pop %v3042
        %v3051 = vtanh.pop %v3043
        %v3052 = vtanh.pop %v3044
        %v3053 = vtanh.pop %v3045
        %v3054 = vmul.f32 %v3046, 0.5
        %v3055 = vmul.f32 %v3047, 0.5
        %v3056 = vmul.f32 %v3048, 0.5
        %v3057 = vmul.f32 %v3049, 0.5
        %v3058 = vmul.f32 %v3050, 0.5
        %v3059 = vmul.f32 %v3051, 0.5
        %v3060 = vmul.f32 %v3052, 0.5
        %v3061 = vmul.f32 %v3053, 0.5
        %v3062 = vadd.f32 %v3054, 0.5
        %v3063 = vadd.f32 %v3055, 0.5
        %v3064 = vadd.f32 %v3056, 0.5
        %v3065 = vadd.f32 %v3057, 0.5
        %v3066 = vadd.f32 %v3058, 0.5
        %v3067 = vadd.f32 %v3059, 0.5
        %v3068 = vadd.f32 %v3060, 0.5
        %v3069 = vadd.f32 %v3061, 0.5
        %v3070 = vmul.f32 %v3030, %v3062
        %v3071 = vmul.f32 %v3031, %v3063
        %v3072 = vmul.f32 %v3032, %v3064
        %v3073 = vmul.f32 %v3033, %v3065
        %v3074 = vmul.f32 %v3034, %v3066
        %v3075 = vmul.f32 %v3035, %v3067
        %v3076 = vmul.f32 %v3036, %v3068
        %v3077 = vmul.f32 %v3037, %v3069
        %v3078 = vadd.f32 %v3070, %v2780
        %v3079 = vadd.f32 %v3071, %v2783
        %v3080 = vadd.f32 %v3072, %v2786
        %v3081 = vadd.f32 %v3073, %v2789
        %v3082 = vadd.f32 %v3074, %v2792
        %v3083 = vadd.f32 %v3075, %v2795
        %v3084 = vadd.f32 %v3076, %v2798
        %v3085 = vadd.f32 %v3077, %v2801
        %s3086 = scalar_lea.vmem [#allocation15], 256
        %v3087 = vld [vmem:[%s3086] sm:$0xff]
        %v3088 = vld [vmem:[%s3086 + $0x8] sm:$0xff]
        %v3089 = vld [vmem:[%s3086 + $0x10] sm:$0xff]
        %v3090 = vld [vmem:[%s3086 + $0x18] sm:$0xff]
        %v3091 = vld [vmem:[%s3086 + $0x20] sm:$0xff]
        %v3092 = vld [vmem:[%s3086 + $0x28] sm:$0xff]
        %v3093 = vld [vmem:[%s3086 + $0x30] sm:$0xff]
        %v3094 = vld [vmem:[%s3086 + $0x38] sm:$0xff]
        %v3095 = vld [vmem:[%s3086 + $0x40] sm:$0xff]
        %v3096 = vld [vmem:[%s3086 + $0x48] sm:$0xff]
        %v3097 = vld [vmem:[%s3086 + $0x50] sm:$0xff]
        %v3098 = vld [vmem:[%s3086 + $0x58] sm:$0xff]
        %v3099 = vld [vmem:[%s3086 + $0x60] sm:$0xff]
        %v3100 = vld [vmem:[%s3086 + $0x68] sm:$0xff]
        %v3101 = vld [vmem:[%s3086 + $0x70] sm:$0xff]
        %v3102 = vld [vmem:[%s3086 + $0x78] sm:$0xff]
        %s3103 = scalar_lea.vmem [#allocation17], 2
        %v3104 = vld [vmem:[%s3103] sm:$0x1]
        %v3106 = vperm.slane %v3104, 0
        %3108 = vmatpush.msra.mxu0 %v3102
        %3109 = vmatpush.msra.mxu0 %v3101
        %3110 = vmatpush.msra.mxu0 %v3100
        %3111 = vmatpush.msra.mxu0 %v3099
        %3112 = vmatpush.msra.mxu0 %v3098
        %3113 = vmatpush.msra.mxu0 %v3097
        %3114 = vmatpush.msra.mxu0 %v3096
        %3115 = vmatpush.msra.mxu0 %v3095
        %3116 = vmatpush.msra.mxu0 %v3094
        %3117 = vmatpush.msra.mxu0 %v3093
        %3118 = vmatpush.msra.mxu0 %v3092
        %3119 = vmatpush.msra.mxu0 %v3091
        %3120 = vmatpush.msra.mxu0 %v3090
        %3121 = vmatpush.msra.mxu0 %v3089
        %3122 = vmatpush.msra.mxu0 %v3088
        %3123 = vmatpush.msra.mxu0 %v3087
        %3124 = vmatmul.f32.gmra.mxu0 %v3078
        %v3125 = vpop.f32.mrf.mxu0
        %v3126 = vadd.f32 %v3106, %v3125
        %3127 = vmatmul.f32.gmra.mxu0 %v3079
        %v3128 = vpop.f32.mrf.mxu0
        %v3129 = vadd.f32 %v3106, %v3128
        %3130 = vmatmul.f32.gmra.mxu0 %v3080
        %v3131 = vpop.f32.mrf.mxu0
        %v3132 = vadd.f32 %v3106, %v3131
        %3133 = vmatmul.f32.gmra.mxu0 %v3081
        %v3134 = vpop.f32.mrf.mxu0
        %v3135 = vadd.f32 %v3106, %v3134
        %3136 = vmatmul.f32.gmra.mxu0 %v3082
        %v3137 = vpop.f32.mrf.mxu0
        %v3138 = vadd.f32 %v3106, %v3137
        %3139 = vmatmul.f32.gmra.mxu0 %v3083
        %v3140 = vpop.f32.mrf.mxu0
        %v3141 = vadd.f32 %v3106, %v3140
        %3142 = vmatmul.f32.gmra.mxu0 %v3084
        %v3143 = vpop.f32.mrf.mxu0
        %v3144 = vadd.f32 %v3106, %v3143
        %3145 = vmatmul.f32.gmra.mxu0 %v3085
        %v3146 = vpop.f32.mrf.mxu0
        %v3147 = vadd.f32 %v3106, %v3146
        %3148 = vdwg.mxu0
        %v3149 = vadd.f32 %v2386, %v3126
        %v3150 = vadd.f32 %v2387, %v3129
        %v3151 = vadd.f32 %v2388, %v3132
        %v3152 = vadd.f32 %v2389, %v3135
        %v3153 = vadd.f32 %v2390, %v3138
        %v3154 = vadd.f32 %v2391, %v3141
        %v3155 = vadd.f32 %v2392, %v3144
        %v3156 = vadd.f32 %v2393, %v3147
        %v3157 = vld [vmem:[#allocation18] sm:$0xff]
        %v3158 = vld [vmem:[#allocation18 + $0x8] sm:$0xff]
        %v3159 = vld [vmem:[#allocation18 + $0x10] sm:$0xff]
        %v3160 = vld [vmem:[#allocation18 + $0x18] sm:$0xff]
        %v3161 = vld [vmem:[#allocation18 + $0x20] sm:$0xff]
        %v3162 = vld [vmem:[#allocation18 + $0x28] sm:$0xff]
        %v3163 = vld [vmem:[#allocation18 + $0x30] sm:$0xff]
        %v3164 = vld [vmem:[#allocation18 + $0x38] sm:$0xff]
        %v3165 = vld [vmem:[#allocation18 + $0x40] sm:$0xff]
        %v3166 = vld [vmem:[#allocation18 + $0x48] sm:$0xff]
        %v3167 = vld [vmem:[#allocation18 + $0x50] sm:$0xff]
        %v3168 = vld [vmem:[#allocation18 + $0x58] sm:$0xff]
        %v3169 = vld [vmem:[#allocation18 + $0x60] sm:$0xff]
        %v3170 = vld [vmem:[#allocation18 + $0x68] sm:$0xff]
        %v3171 = vld [vmem:[#allocation18 + $0x70] sm:$0xff]
        %v3172 = vld [vmem:[#allocation18 + $0x78] sm:$0xff]
        %v3173 = vld [vmem:[#allocation20] sm:$0x1]
        %v3175 = vperm.slane %v3173, 0
        %3177 = vmatpush.msra.mxu0 %v3172
        %3178 = vmatpush.msra.mxu0 %v3171
        %3179 = vmatpush.msra.mxu0 %v3170
        %3180 = vmatpush.msra.mxu0 %v3169
        %3181 = vmatpush.msra.mxu0 %v3168
        %3182 = vmatpush.msra.mxu0 %v3167
        %3183 = vmatpush.msra.mxu0 %v3166
        %3184 = vmatpush.msra.mxu0 %v3165
        %3185 = vmatpush.msra.mxu0 %v3164
        %3186 = vmatpush.msra.mxu0 %v3163
        %3187 = vmatpush.msra.mxu0 %v3162
        %3188 = vmatpush.msra.mxu0 %v3161
        %3189 = vmatpush.msra.mxu0 %v3160
        %3190 = vmatpush.msra.mxu0 %v3159
        %3191 = vmatpush.msra.mxu0 %v3158
        %3192 = vmatpush.msra.mxu0 %v3157
        %3193 = vmatmul.f32.gmra.mxu0 %v3149
        %v3194 = vpop.f32.mrf.mxu0
        %v3195 = vadd.f32 %v3175, %v3194
        %3196 = vmatmul.f32.gmra.mxu0 %v3150
        %v3197 = vpop.f32.mrf.mxu0
        %v3198 = vadd.f32 %v3175, %v3197
        %3199 = vmatmul.f32.gmra.mxu0 %v3151
        %v3200 = vpop.f32.mrf.mxu0
        %v3201 = vadd.f32 %v3175, %v3200
        %3202 = vmatmul.f32.gmra.mxu0 %v3152
        %v3203 = vpop.f32.mrf.mxu0
        %v3204 = vadd.f32 %v3175, %v3203
        %3205 = vmatmul.f32.gmra.mxu0 %v3153
        %v3206 = vpop.f32.mrf.mxu0
        %v3207 = vadd.f32 %v3175, %v3206
        %3208 = vmatmul.f32.gmra.mxu0 %v3154
        %v3209 = vpop.f32.mrf.mxu0
        %v3210 = vadd.f32 %v3175, %v3209
        %3211 = vmatmul.f32.gmra.mxu0 %v3155
        %v3212 = vpop.f32.mrf.mxu0
        %v3213 = vadd.f32 %v3175, %v3212
        %3214 = vmatmul.f32.gmra.mxu0 %v3156
        %v3215 = vpop.f32.mrf.mxu0
        %v3216 = vadd.f32 %v3175, %v3215
        %3217 = vdwg.mxu0
        %3218 = vst [vmem:[%s647] sm:$0xff] %v3195
        %3219 = vst [vmem:[%s647 + $0x8] sm:$0xff] %v3198
        %3220 = vst [vmem:[%s647 + $0x10] sm:$0xff] %v3201
        %3221 = vst [vmem:[%s647 + $0x18] sm:$0xff] %v3204
        %3222 = vst [vmem:[%s647 + $0x20] sm:$0xff] %v3207
        %3223 = vst [vmem:[%s647 + $0x28] sm:$0xff] %v3210
        %3224 = vst [vmem:[%s647 + $0x30] sm:$0xff] %v3213
        %3225 = vst [vmem:[%s647 + $0x38] sm:$0xff] %v3216
        %s3226 = sand.u32 %s331, 1
        %s3227 = scalar_lea.sflag [#allocation5], %s3226
        %s3228 = sand.u32 %s331, 1
        %s3229 = smul.addr %s3228, 64
        %s3230 = scalar_lea.vmem [#allocation21], %s3229
        // Predicated region
        $region117: #{tpu_custom_call.1} parent=71 // pred_check
          %p3231 = pneg %p341
        $region118: #{tpu_custom_call.1} parent=71 // pred_check_branch
          %3233 = sbr.rel (%p3231) target = $region120
        $region119: #{tpu_custom_call.1} parent=71 // pred_region
          %3235 = vsyncadd %s3227, 0
          %s3236 = smul.addr %s35, 8
          %s3237 = smul.addr %s3236, 8
          %s3238 = scalar_lea.hbm %s13, %s3237
          %s3239 = sshll.u32 %s3230, 4
          %s3240 = int_to_ptr.vmem [resolvable:$true] %s3239
          %s3241 = sshll.u32 %s3238, 4
          %s3242 = int_to_ptr.hbm [resolvable:$true] %s3241
          %3247 = dma.vmem_to_hbm [thread:$0]  %s3240, 1024, %s3242, %s3227, 128, 128, 8
        $region120: #{tpu_custom_call.1} parent=71 // pred_fallthru
          _
      $region72: #{tpu_custom_call.1} parent=5 // pred_fallthru
        _
      %p3248 = scmp.le.s32.totalorder 2, %s30
      // Predicated region
      $region121: #{tpu_custom_call.1} parent=5 // pred_check
        %p3249 = pneg %p3248
      $region122: #{tpu_custom_call.1} parent=5 // pred_check_branch
        %3251 = sbr.rel (%p3249) target = $region124
      $region123: #{tpu_custom_call.1} parent=5 // pred_region
        %s3252 = ssub.s32 %s30, 2
        // Predicated region
        $region125: #{tpu_custom_call.1} parent=123 // pred_check
          %p3253 = pneg %p347
        $region126: #{tpu_custom_call.1} parent=123 // pred_check_branch
          %3255 = sbr.rel (%p3253) target = $region128
        $region127: #{tpu_custom_call.1} parent=123 // pred_region
          %s3256 = sand.u32 %s332, 1
          %s3257 = scalar_lea.sflag [#allocation5], %s3256
          %s3258 = sand.u32 %s332, 1
          %s3259 = smul.addr %s3258, 64
          %s3260 = scalar_lea.vmem [#allocation21], %s3259
          %3262 = dma.done %s3257, 1024
        $region128: #{tpu_custom_call.1} parent=123 // pred_fallthru
          _
      $region124: #{tpu_custom_call.1} parent=5 // pred_fallthru
        _
    $region6: #{tpu_custom_call.1} parent=1 // loop_footer
      %s34 = sadd.s32 1, %s30
    $region7: #{tpu_custom_call.1} parent=1 // loop_footer_branch
      %29 = sbr.rel target = $region3
    $region8: #{tpu_custom_call.1} parent=1 // loop_exit
      _
    %3263 = vsyncpa [#allocation4], 1
    %s3264 = scalar_lea.sflag [#allocation4], 1
    %3265 = vsyncpa %s3264, 1
    %3266 = vsyncpa [#allocation7], 1
    %3267 = vsyncpa [#allocation10], 1
    %3268 = vsyncpa [#allocation13], 1
    %3269 = vsyncpa [#allocation16], 1
    %3270 = vsyncpa [#allocation19], 1
    %3271 = vsyncpa [#allocation5], 1
    %s3272 = scalar_lea.sflag [#allocation5], 1
    %3273 = vsyncpa %s3272, 1

</llo_original>
